<compile_context>
chip_gen: v6e
topology: v6e:2x2x1
jax: 0.10.0
libtpu: 0.0.40
codegen_flags: <defaults>
</compile_context>

<pallas_src>
import math

import jax
import jax.numpy as jnp
from jax import lax
from jax.experimental import pallas as pl
from jax.experimental.pallas import tpu as pltpu

CHANNELS = 1
IMG_SIZE = 32
NUM_CLASSES = 10
BN_EPS = 0.8
LEAK = 0.2

LANES = 128                       # padded lane width for conv outputs / heads
VMEM_LIMIT = 32 * 1024 * 1024     # explicit, safe on v5e/v6e/v7x


def _round_up(x, m):
    return ((x + m - 1) // m) * m


# ----------------------------------------------------------------------------
# Pallas kernels
# ----------------------------------------------------------------------------
def conv_block_kernel(p_ref, w_ref, b_ref, shift_ref, o_ref):
    """im2col conv (bf16 MXU, f32 acc) + folded-BN bias + LeakyReLU + shift."""
    z = jnp.dot(p_ref[...], w_ref[...], preferred_element_type=jnp.float32)
    z = z + b_ref[...]
    y = jnp.maximum(z, LEAK * z) + shift_ref[...]
    o_ref[...] = y.astype(o_ref.dtype)


def conv4_heads_kernel(p_ref, w4_ref, b4_ref, shift4_ref, wh_ref, bh_ref, o_ref):
    """Fused conv4 + adv head (sigmoid) + aux head (softmax).

    p_ref : (4, TB, 576)  conv4 im2col patches, spatial-major / batch-minor.
    wh_ref: (4, 128, 128) head weights with the NCHW-flatten permutation folded
            in; lanes 0..11 hold [adv | aux], the rest are zero padding.
    o_ref : (TB, 128) f32; lane 0 = sigmoid(adv), lanes 1..11 = softmax(aux).
    """
    tb = o_ref.shape[0]
    hp = o_ref.shape[1]
    acc = jnp.zeros((tb, hp), jnp.float32)
    for s in range(p_ref.shape[0]):            # 4 spatial positions, unrolled
        z = jnp.dot(p_ref[s], w4_ref[...], preferred_element_type=jnp.float32)
        z = z + b4_ref[...]
        y = jnp.maximum(z, LEAK * z) + shift4_ref[...]
        acc = acc + jnp.dot(y.astype(jnp.bfloat16), wh_ref[s],
                            preferred_element_type=jnp.float32)
    logits = acc + bh_ref[...]

    lane = lax.broadcasted_iota(jnp.int32, logits.shape, 1)
    # adv head: numerically-stable sigmoid via tanh (EUP op).
    sig = 0.5 * (jnp.tanh(0.5 * logits) + 1.0)
    # aux head: softmax restricted to lanes 1 .. NUM_CLASSES+1.
    is_aux = (lane >= 1) & (lane <= NUM_CLASSES + 1)
    masked = jnp.where(is_aux, logits, -1e30)
    m = jnp.max(masked, axis=-1, keepdims=True)
    e = jnp.exp(masked - m)
    sm = e / jnp.sum(e, axis=-1, keepdims=True)
    o_ref[...] = jnp.where(lane == 0, sig, sm)


# ----------------------------------------------------------------------------
# pallas_call wrappers
# ----------------------------------------------------------------------------
def conv_block(patches, w_mat, bias, shift, tm):
    M, K = patches.shape
    CP = w_mat.shape[1]
    grid_m = M // tm
    flops = 2 * M * K * CP
    bytes_accessed = (M * K + K * CP + M * CP) * 2 + 2 * CP * 4
    return pl.pallas_call(
        conv_block_kernel,
        out_shape=jax.ShapeDtypeStruct((M, CP), jnp.bfloat16),
        grid=(grid_m,),
        in_specs=[
            pl.BlockSpec((tm, K), lambda i: (i, 0)),
            pl.BlockSpec((K, CP), lambda i: (0, 0)),
            pl.BlockSpec((1, CP), lambda i: (0, 0)),
            pl.BlockSpec((1, CP), lambda i: (0, 0)),
        ],
        out_specs=pl.BlockSpec((tm, CP), lambda i: (i, 0)),
        compiler_params=pltpu.CompilerParams(
            dimension_semantics=("parallel",),
            vmem_limit_bytes=VMEM_LIMIT,
        ),
        cost_estimate=pl.CostEstimate(
            flops=int(flops), transcendentals=0,
            bytes_accessed=int(bytes_accessed)),
    )(patches, w_mat, bias, shift)


def conv4_heads(p4, w4, b4, shift4, wh, bh):
    S, NP, K4 = p4.shape
    CP = w4.shape[1]
    HP = wh.shape[2]
    tb = NP if NP <= 256 else 256
    grid_b = NP // tb
    flops = 2 * S * NP * K4 * CP + 2 * S * NP * CP * HP
    bytes_accessed = (S * NP * K4 + K4 * CP + S * CP * HP) * 2 + NP * HP * 4
    return pl.pallas_call(
        conv4_heads_kernel,
        out_shape=jax.ShapeDtypeStruct((NP, HP), jnp.float32),
        grid=(grid_b,),
        in_specs=[
            pl.BlockSpec((S, tb, K4), lambda i: (0, i, 0)),
            pl.BlockSpec((K4, CP), lambda i: (0, 0)),
            pl.BlockSpec((1, CP), lambda i: (0, 0)),
            pl.BlockSpec((1, CP), lambda i: (0, 0)),
            pl.BlockSpec((S, CP, HP), lambda i: (0, 0, 0)),
            pl.BlockSpec((1, HP), lambda i: (0, 0)),
        ],
        out_specs=pl.BlockSpec((tb, HP), lambda i: (i, 0)),
        compiler_params=pltpu.CompilerParams(
            dimension_semantics=("parallel",),
            vmem_limit_bytes=VMEM_LIMIT,
        ),
        cost_estimate=pl.CostEstimate(
            flops=int(flops), transcendentals=int(2 * NP * HP),
            bytes_accessed=int(bytes_accessed)),
    )(p4, w4, b4, shift4, wh, bh)


# ----------------------------------------------------------------------------
# Host-side glue: im2col, weight repack, parameter construction
# ----------------------------------------------------------------------------
def extract_patches_s2_k3_p1(x):
    """im2col for kernel=3, stride=2, pad=1 on an NHWC tensor.

    Returns (N, OH, OW, 9*C); taps (ki,kj)-major, channel-minor per tap,
    matching conv_weight_to_mat().
    """
    N, H, W, C = x.shape
    OH, OW = H // 2, W // 2
    xp = jnp.pad(x, ((0, 0), (1, 1), (1, 1), (0, 0)))
    taps = []
    for ki in range(3):
        for kj in range(3):
            taps.append(xp[:, ki:ki + 2 * OH:2, kj:kj + 2 * OW:2, :])
    return jnp.concatenate(taps, axis=-1)


def conv_weight_to_mat(w_oihw):
    """(Cout, Cin, 3, 3) torch layout -> (9*Cin, Cout) matching patch order."""
    cout, cin, kh, kw = w_oihw.shape
    return jnp.transpose(w_oihw, (2, 3, 1, 0)).reshape(kh * kw * cin, cout)


def init_conv(key, cin, cout):
    k1, k2 = jax.random.split(key)
    bound = 1.0 / math.sqrt(cin * 9)
    w = jax.random.uniform(k1, (cout, cin, 3, 3), jnp.float32, -bound, bound)
    b = jax.random.uniform(k2, (cout,), jnp.float32, -bound, bound)
    return w, b


def init_linear(key, din, dout):
    k1, k2 = jax.random.split(key)
    bound = 1.0 / math.sqrt(din)
    w = jax.random.uniform(k1, (din, dout), jnp.float32, -bound, bound)
    b = jax.random.uniform(k2, (dout,), jnp.float32, -bound, bound)
    return w, b


def make_params(seed=0):
    key = jax.random.PRNGKey(seed)
    ks = jax.random.split(key, 6)
    params = {}
    chans = [(CHANNELS, 16), (16, 32), (32, 64), (64, 128)]
    bn_scale = 1.0 / math.sqrt(1.0 + BN_EPS)     # eval BN: mean=0, var=1, gamma=1

    for idx, (cin, cout) in enumerate(chans, start=1):
        w, b = init_conv(ks[idx - 1], cin, cout)
        scale = 1.0 if idx == 1 else bn_scale    # conv1 has no BN
        # Fold BN scale through LeakyReLU (positively homogeneous) into W, b.
        w_mat = conv_weight_to_mat(w) * scale    # (9*cin, cout) f32
        b_f = b * scale
        shift = jnp.zeros((cout,), jnp.float32)  # BN shift (beta - scale*mean) == 0

        K = w_mat.shape[0]
        if idx == 1:                              # pad contraction dim 9 -> 16
            w_mat = jnp.pad(w_mat, ((0, 16 - K), (0, 0)))
        if cout < LANES:                          # lane-dense padded Cout
            w_mat = jnp.pad(w_mat, ((0, 0), (0, LANES - cout)))
            b_f = jnp.pad(b_f, (0, LANES - cout))
            shift = jnp.pad(shift, (0, LANES - cout))

        params[f"conv{idx}_w"] = w_mat.astype(jnp.bfloat16)
        params[f"conv{idx}_b"] = b_f.reshape(1, LANES).astype(jnp.float32)
        params[f"conv{idx}_shift"] = shift.reshape(1, LANES).astype(jnp.float32)

    # Heads: concatenate adv(1) + aux(11) into one weight, fold the PyTorch
    # NCHW-flatten permutation (feat index c*4+s -> [s, c]), pad lanes to 128.
    ds = IMG_SIZE // 2 ** 4                      # 2
    feat_dim = 128 * ds * ds                     # 512
    n_out = NUM_CLASSES + 2                      # 1 + 11
    wa, ba = init_linear(ks[4], feat_dim, 1)
    wx, bx = init_linear(ks[5], feat_dim, NUM_CLASSES + 1)
    w_heads = jnp.concatenate([wa, wx], axis=1)                  # (512, 12)
    w_heads = w_heads.reshape(feat_dim // (ds * ds), ds * ds, n_out)  # (c, s, out)
    w_heads = jnp.transpose(w_heads, (1, 0, 2))                  # (s, c, out)
    w_heads = jnp.pad(w_heads, ((0, 0), (0, 0), (0, LANES - n_out)))
    b_heads = jnp.pad(jnp.concatenate([ba, bx]), (0, LANES - n_out))
    params["heads_w"] = w_heads.astype(jnp.bfloat16)             # (4, 128, 128)
    params["heads_b"] = b_heads.reshape(1, LANES).astype(jnp.float32)
    return params


# ----------------------------------------------------------------------------
# Forward pass
# ----------------------------------------------------------------------------
def _choose_row_tile(M):
    if M >= 256:
        return 256, _round_up(M, 256)
    tm = max(16, _round_up(M, 16))
    return tm, tm


def discriminator_forward(params, img_nchw):
    x = jnp.transpose(img_nchw, (0, 2, 3, 1)).astype(jnp.bfloat16)  # NCHW -> NHWC
    n_batch = x.shape[0]

    true_cout = {1: 16, 2: 32, 3: 64}
    for idx in (1, 2, 3):
        p = extract_patches_s2_k3_p1(x)
        N, OH, OW, K = p.shape
        pm = p.reshape(N * OH * OW, K)
        if idx == 1:                              # K: 9 -> 16 (zero fill)
            pm = jnp.pad(pm, ((0, 0), (0, 16 - K)))
        M = pm.shape[0]
        tm, M_pad = _choose_row_tile(M)
        if M_pad > M:
            pm = jnp.pad(pm, ((0, M_pad - M), (0, 0)))
        y = conv_block(pm, params[f"conv{idx}_w"], params[f"conv{idx}_b"],
                       params[f"conv{idx}_shift"], tm)
        c = true_cout[idx]
        x = y[:M, :c].reshape(N, OH, OW, c)

    # conv4 + heads (fused): patches spatial-major / batch-minor so the
    # flattened 512-feature head contraction is 4 dense (128,128) matmuls.
    p = extract_patches_s2_k3_p1(x)               # (N, 2, 2, 576)
    N, OH, OW, K4 = p.shape
    p = jnp.transpose(p, (1, 2, 0, 3)).reshape(OH * OW, N, K4)
    n_pad = _round_up(n_batch, 8)
    if n_pad > 256:
        n_pad = _round_up(n_batch, 256)
    if n_pad > N:
        p = jnp.pad(p, ((0, 0), (0, n_pad - N), (0, 0)))
    out = conv4_heads(p, params["conv4_w"], params["conv4_b"],
                      params["conv4_shift"], params["heads_w"], params["heads_b"])
    validity = out[:n_batch, 0:1].astype(jnp.float32)
    label = out[:n_batch, 1:NUM_CLASSES + 2].astype(jnp.float32)
    return validity, label


if __name__ == "__main__":
    params = make_params(seed=0)
    key = jax.random.PRNGKey(0)
    img = jax.random.normal(key, (2, CHANNELS, IMG_SIZE, IMG_SIZE), jnp.float32)

    validity, label = jax.jit(discriminator_forward)(params, img)
    jax.block_until_ready((validity, label))

    assert validity.shape == (2, 1)
    assert label.shape == (2, NUM_CLASSES + 1)
    assert bool(jnp.all(jnp.isfinite(validity)))
    assert bool(jnp.all((validity >= 0.0) & (validity <= 1.0)))
    assert bool(jnp.all(jnp.isfinite(label)))
    # softmax rows should sum to ~1
    assert bool(jnp.allclose(jnp.sum(label, axis=-1), 1.0, atol=1e-5))

    print("KERNEL_OK")
</pallas_src>

<mosaic_0001>
module attributes {stable_mosaic.version = 11 : i64} {
  func.func @conv_block_kernel(%arg0: i32, %arg1: memref<256x16xbf16, #tpu.memory_space<vmem>>, %arg2: memref<16x128xbf16, #tpu.memory_space<vmem>>, %arg3: memref<1x128xf32, #tpu.memory_space<vmem>>, %arg4: memref<1x128xf32, #tpu.memory_space<vmem>>, %arg5: memref<256x128xbf16, #tpu.memory_space<vmem>>) attributes {dimension_semantics = [#tpu.dimension_semantics<parallel>], iteration_bounds = array<i64: 2>, scalar_prefetch = 0 : i64, scratch_operands = 0 : i64, tpu.core_type = #tpu.core_type<tc>, window_params = [{transform_indices = @transform_0, window_bounds = array<i64: 256, 16>}, {pipeline_mode = #tpu.pipeline_mode<synchronous>, transform_indices = @transform_1, window_bounds = array<i64: 16, 128>}, {pipeline_mode = #tpu.pipeline_mode<synchronous>, transform_indices = @transform_2, window_bounds = array<i64: 1, 128>}, {pipeline_mode = #tpu.pipeline_mode<synchronous>, transform_indices = @transform_3, window_bounds = array<i64: 1, 128>}, {transform_indices = @transform_4, window_bounds = array<i64: 256, 128>}]} {
    %c0 = arith.constant 0 : index
    %c0_0 = arith.constant 0 : index
    %0 = vector.load %arg1[%c0, %c0_0] : memref<256x16xbf16, #tpu.memory_space<vmem>>, vector<256x16xbf16>
    %c0_1 = arith.constant 0 : index
    %c0_2 = arith.constant 0 : index
    %1 = vector.load %arg2[%c0_1, %c0_2] : memref<16x128xbf16, #tpu.memory_space<vmem>>, vector<16x128xbf16>
    %cst = arith.constant dense<0.000000e+00> : vector<256x128xf32>
    %2 = tpu.matmul %0, %1, %cst {dimension_numbers = #tpu.dot_dimension_numbers<[1], [0], [0], [1], [0, 0, 1, 1], [], []>} : vector<256x16xbf16>, vector<16x128xbf16>, vector<256x128xf32> -> vector<256x128xf32>
    %c0_3 = arith.constant 0 : index
    %c0_4 = arith.constant 0 : index
    %3 = vector.load %arg3[%c0_3, %c0_4] : memref<1x128xf32, #tpu.memory_space<vmem>>, vector<1x128xf32>
    %4 = vector.broadcast %3 : vector<1x128xf32> to vector<256x128xf32>
    %5 = arith.addf %2, %4 : vector<256x128xf32>
    %cst_5 = arith.constant 2.000000e-01 : f32
    %6 = vector.broadcast %cst_5 : f32 to vector<256x128xf32>
    %7 = arith.mulf %6, %5 : vector<256x128xf32>
    %8 = arith.maximumf %5, %7 : vector<256x128xf32>
    %c0_6 = arith.constant 0 : index
    %c0_7 = arith.constant 0 : index
    %9 = vector.load %arg4[%c0_6, %c0_7] : memref<1x128xf32, #tpu.memory_space<vmem>>, vector<1x128xf32>
    %10 = vector.broadcast %9 : vector<1x128xf32> to vector<256x128xf32>
    %11 = arith.addf %8, %10 : vector<256x128xf32>
    %12 = arith.truncf %11 : vector<256x128xf32> to vector<256x128xbf16>
    %c0_8 = arith.constant 0 : index
    %c0_9 = arith.constant 0 : index
    %13 = vector.load %arg5[%c0_8, %c0_9] : memref<256x128xbf16, #tpu.memory_space<vmem>>, vector<256x128xbf16>
    tpu.vector_store %arg5[%c0_8, %c0_9], %12 {strides = array<i32>} : memref<256x128xbf16, #tpu.memory_space<vmem>>, vector<256x128xbf16>,
    return
  }
  func.func @transform_0(%arg0: i32) -> (i32, i32) {
    %c0_i32 = arith.constant 0 : i32
    %c0_i32_0 = arith.constant 0 : i32
    return %arg0, %c0_i32 : i32, i32
  }
  func.func @transform_1(%arg0: i32) -> (i32, i32) {
    %c0_i32 = arith.constant 0 : i32
    %c0_i32_0 = arith.constant 0 : i32
    %c0_i32_1 = arith.constant 0 : i32
    return %c0_i32, %c0_i32_0 : i32, i32
  }
  func.func @transform_2(%arg0: i32) -> (i32, i32) {
    %c0_i32 = arith.constant 0 : i32
    %c0_i32_0 = arith.constant 0 : i32
    %c0_i32_1 = arith.constant 0 : i32
    return %c0_i32, %c0_i32_0 : i32, i32
  }
  func.func @transform_3(%arg0: i32) -> (i32, i32) {
    %c0_i32 = arith.constant 0 : i32
    %c0_i32_0 = arith.constant 0 : i32
    %c0_i32_1 = arith.constant 0 : i32
    return %c0_i32, %c0_i32_0 : i32, i32
  }
  func.func @transform_4(%arg0: i32) -> (i32, i32) {
    %c0_i32 = arith.constant 0 : i32
    %c0_i32_0 = arith.constant 0 : i32
    return %arg0, %c0_i32 : i32, i32
  }
}

module attributes {stable_mosaic.version = 11 : i64} {
  func.func @conv_block_kernel(%arg0: i32, %arg1: memref<128x144xbf16, #tpu.memory_space<vmem>>, %arg2: memref<144x128xbf16, #tpu.memory_space<vmem>>, %arg3: memref<1x128xf32, #tpu.memory_space<vmem>>, %arg4: memref<1x128xf32, #tpu.memory_space<vmem>>, %arg5: memref<128x128xbf16, #tpu.memory_space<vmem>>) attributes {dimension_semantics = [#tpu.dimension_semantics<parallel>], iteration_bounds = array<i64: 1>, scalar_prefetch = 0 : i64, scratch_operands = 0 : i64, tpu.core_type = #tpu.core_type<tc>, window_params = [{transform_indices = @transform_0, window_bounds = array<i64: 128, 144>}, {pipeline_mode = #tpu.pipeline_mode<synchronous>, transform_indices = @transform_1, window_bounds = array<i64: 144, 128>}, {pipeline_mode = #tpu.pipeline_mode<synchronous>, transform_indices = @transform_2, window_bounds = array<i64: 1, 128>}, {pipeline_mode = #tpu.pipeline_mode<synchronous>, transform_indices = @transform_3, window_bounds = array<i64: 1, 128>}, {transform_indices = @transform_4, window_bounds = array<i64: 128, 128>}]} {
    %c0 = arith.constant 0 : index
    %c0_0 = arith.constant 0 : index
    %0 = vector.load %arg1[%c0, %c0_0] : memref<128x144xbf16, #tpu.memory_space<vmem>>, vector<128x144xbf16>
    %c0_1 = arith.constant 0 : index
    %c0_2 = arith.constant 0 : index
    %1 = vector.load %arg2[%c0_1, %c0_2] : memref<144x128xbf16, #tpu.memory_space<vmem>>, vector<144x128xbf16>
    %cst = arith.constant dense<0.000000e+00> : vector<128x128xf32>
    %2 = tpu.matmul %0, %1, %cst {dimension_numbers = #tpu.dot_dimension_numbers<[1], [0], [0], [1], [0, 0, 1, 1], [], []>} : vector<128x144xbf16>, vector<144x128xbf16>, vector<128x128xf32> -> vector<128x128xf32>
    %c0_3 = arith.constant 0 : index
    %c0_4 = arith.constant 0 : index
    %3 = vector.load %arg3[%c0_3, %c0_4] : memref<1x128xf32, #tpu.memory_space<vmem>>, vector<1x128xf32>
    %4 = vector.broadcast %3 : vector<1x128xf32> to vector<128x128xf32>
    %5 = arith.addf %2, %4 : vector<128x128xf32>
    %cst_5 = arith.constant 2.000000e-01 : f32
    %6 = vector.broadcast %cst_5 : f32 to vector<128x128xf32>
    %7 = arith.mulf %6, %5 : vector<128x128xf32>
    %8 = arith.maximumf %5, %7 : vector<128x128xf32>
    %c0_6 = arith.constant 0 : index
    %c0_7 = arith.constant 0 : index
    %9 = vector.load %arg4[%c0_6, %c0_7] : memref<1x128xf32, #tpu.memory_space<vmem>>, vector<1x128xf32>
    %10 = vector.broadcast %9 : vector<1x128xf32> to vector<128x128xf32>
    %11 = arith.addf %8, %10 : vector<128x128xf32>
    %12 = arith.truncf %11 : vector<128x128xf32> to vector<128x128xbf16>
    %c0_8 = arith.constant 0 : index
    %c0_9 = arith.constant 0 : index
    %13 = vector.load %arg5[%c0_8, %c0_9] : memref<128x128xbf16, #tpu.memory_space<vmem>>, vector<128x128xbf16>
    tpu.vector_store %arg5[%c0_8, %c0_9], %12 {strides = array<i32>} : memref<128x128xbf16, #tpu.memory_space<vmem>>, vector<128x128xbf16>,
    return
  }
  func.func @transform_0(%arg0: i32) -> (i32, i32) {
    %c0_i32 = arith.constant 0 : i32
    %c0_i32_0 = arith.constant 0 : i32
    return %arg0, %c0_i32 : i32, i32
  }
  func.func @transform_1(%arg0: i32) -> (i32, i32) {
    %c0_i32 = arith.constant 0 : i32
    %c0_i32_0 = arith.constant 0 : i32
    %c0_i32_1 = arith.constant 0 : i32
    return %c0_i32, %c0_i32_0 : i32, i32
  }
  func.func @transform_2(%arg0: i32) -> (i32, i32) {
    %c0_i32 = arith.constant 0 : i32
    %c0_i32_0 = arith.constant 0 : i32
    %c0_i32_1 = arith.constant 0 : i32
    return %c0_i32, %c0_i32_0 : i32, i32
  }
  func.func @transform_3(%arg0: i32) -> (i32, i32) {
    %c0_i32 = arith.constant 0 : i32
    %c0_i32_0 = arith.constant 0 : i32
    %c0_i32_1 = arith.constant 0 : i32
    return %c0_i32, %c0_i32_0 : i32, i32
  }
  func.func @transform_4(%arg0: i32) -> (i32, i32) {
    %c0_i32 = arith.constant 0 : i32
    %c0_i32_0 = arith.constant 0 : i32
    return %arg0, %c0_i32 : i32, i32
  }
}

module attributes {stable_mosaic.version = 11 : i64} {
  func.func @conv_block_kernel(%arg0: i32, %arg1: memref<32x288xbf16, #tpu.memory_space<vmem>>, %arg2: memref<288x128xbf16, #tpu.memory_space<vmem>>, %arg3: memref<1x128xf32, #tpu.memory_space<vmem>>, %arg4: memref<1x128xf32, #tpu.memory_space<vmem>>, %arg5: memref<32x128xbf16, #tpu.memory_space<vmem>>) attributes {dimension_semantics = [#tpu.dimension_semantics<parallel>], iteration_bounds = array<i64: 1>, scalar_prefetch = 0 : i64, scratch_operands = 0 : i64, tpu.core_type = #tpu.core_type<tc>, window_params = [{transform_indices = @transform_0, window_bounds = array<i64: 32, 288>}, {pipeline_mode = #tpu.pipeline_mode<synchronous>, transform_indices = @transform_1, window_bounds = array<i64: 288, 128>}, {pipeline_mode = #tpu.pipeline_mode<synchronous>, transform_indices = @transform_2, window_bounds = array<i64: 1, 128>}, {pipeline_mode = #tpu.pipeline_mode<synchronous>, transform_indices = @transform_3, window_bounds = array<i64: 1, 128>}, {transform_indices = @transform_4, window_bounds = array<i64: 32, 128>}]} {
    %c0 = arith.constant 0 : index
    %c0_0 = arith.constant 0 : index
    %0 = vector.load %arg1[%c0, %c0_0] : memref<32x288xbf16, #tpu.memory_space<vmem>>, vector<32x288xbf16>
    %c0_1 = arith.constant 0 : index
    %c0_2 = arith.constant 0 : index
    %1 = vector.load %arg2[%c0_1, %c0_2] : memref<288x128xbf16, #tpu.memory_space<vmem>>, vector<288x128xbf16>
    %cst = arith.constant dense<0.000000e+00> : vector<32x128xf32>
    %2 = tpu.matmul %0, %1, %cst {dimension_numbers = #tpu.dot_dimension_numbers<[1], [0], [0], [1], [0, 0, 1, 1], [], []>} : vector<32x288xbf16>, vector<288x128xbf16>, vector<32x128xf32> -> vector<32x128xf32>
    %c0_3 = arith.constant 0 : index
    %c0_4 = arith.constant 0 : index
    %3 = vector.load %arg3[%c0_3, %c0_4] : memref<1x128xf32, #tpu.memory_space<vmem>>, vector<1x128xf32>
    %4 = vector.broadcast %3 : vector<1x128xf32> to vector<32x128xf32>
    %5 = arith.addf %2, %4 : vector<32x128xf32>
    %cst_5 = arith.constant 2.000000e-01 : f32
    %6 = vector.broadcast %cst_5 : f32 to vector<32x128xf32>
    %7 = arith.mulf %6, %5 : vector<32x128xf32>
    %8 = arith.maximumf %5, %7 : vector<32x128xf32>
    %c0_6 = arith.constant 0 : index
    %c0_7 = arith.constant 0 : index
    %9 = vector.load %arg4[%c0_6, %c0_7] : memref<1x128xf32, #tpu.memory_space<vmem>>, vector<1x128xf32>
    %10 = vector.broadcast %9 : vector<1x128xf32> to vector<32x128xf32>
    %11 = arith.addf %8, %10 : vector<32x128xf32>
    %12 = arith.truncf %11 : vector<32x128xf32> to vector<32x128xbf16>
    %c0_8 = arith.constant 0 : index
    %c0_9 = arith.constant 0 : index
    %13 = vector.load %arg5[%c0_8, %c0_9] : memref<32x128xbf16, #tpu.memory_space<vmem>>, vector<32x128xbf16>
    tpu.vector_store %arg5[%c0_8, %c0_9], %12 {strides = array<i32>} : memref<32x128xbf16, #tpu.memory_space<vmem>>, vector<32x128xbf16>,
    return
  }
  func.func @transform_0(%arg0: i32) -> (i32, i32) {
    %c0_i32 = arith.constant 0 : i32
    %c0_i32_0 = arith.constant 0 : i32
    return %arg0, %c0_i32 : i32, i32
  }
  func.func @transform_1(%arg0: i32) -> (i32, i32) {
    %c0_i32 = arith.constant 0 : i32
    %c0_i32_0 = arith.constant 0 : i32
    %c0_i32_1 = arith.constant 0 : i32
    return %c0_i32, %c0_i32_0 : i32, i32
  }
  func.func @transform_2(%arg0: i32) -> (i32, i32) {
    %c0_i32 = arith.constant 0 : i32
    %c0_i32_0 = arith.constant 0 : i32
    %c0_i32_1 = arith.constant 0 : i32
    return %c0_i32, %c0_i32_0 : i32, i32
  }
  func.func @transform_3(%arg0: i32) -> (i32, i32) {
    %c0_i32 = arith.constant 0 : i32
    %c0_i32_0 = arith.constant 0 : i32
    %c0_i32_1 = arith.constant 0 : i32
    return %c0_i32, %c0_i32_0 : i32, i32
  }
  func.func @transform_4(%arg0: i32) -> (i32, i32) {
    %c0_i32 = arith.constant 0 : i32
    %c0_i32_0 = arith.constant 0 : i32
    return %arg0, %c0_i32 : i32, i32
  }
}

module attributes {stable_mosaic.version = 11 : i64} {
  func.func @conv4_heads_kernel(%arg0: i32, %arg1: memref<4x8x576xbf16, #tpu.memory_space<vmem>>, %arg2: memref<576x128xbf16, #tpu.memory_space<vmem>>, %arg3: memref<1x128xf32, #tpu.memory_space<vmem>>, %arg4: memref<1x128xf32, #tpu.memory_space<vmem>>, %arg5: memref<4x128x128xbf16, #tpu.memory_space<vmem>>, %arg6: memref<1x128xf32, #tpu.memory_space<vmem>>, %arg7: memref<8x128xf32, #tpu.memory_space<vmem>>) attributes {dimension_semantics = [#tpu.dimension_semantics<parallel>], iteration_bounds = array<i64: 1>, scalar_prefetch = 0 : i64, scratch_operands = 0 : i64, tpu.core_type = #tpu.core_type<tc>, window_params = [{transform_indices = @transform_0, window_bounds = array<i64: 4, 8, 576>}, {pipeline_mode = #tpu.pipeline_mode<synchronous>, transform_indices = @transform_1, window_bounds = array<i64: 576, 128>}, {pipeline_mode = #tpu.pipeline_mode<synchronous>, transform_indices = @transform_2, window_bounds = array<i64: 1, 128>}, {pipeline_mode = #tpu.pipeline_mode<synchronous>, transform_indices = @transform_3, window_bounds = array<i64: 1, 128>}, {pipeline_mode = #tpu.pipeline_mode<synchronous>, transform_indices = @transform_4, window_bounds = array<i64: 4, 128, 128>}, {pipeline_mode = #tpu.pipeline_mode<synchronous>, transform_indices = @transform_5, window_bounds = array<i64: 1, 128>}, {transform_indices = @transform_6, window_bounds = array<i64: 8, 128>}]} {
    %cst = arith.constant 0.000000e+00 : f32
    %0 = vector.broadcast %cst : f32 to vector<8x128xf32>
    %c0 = arith.constant 0 : index
    %c0_0 = arith.constant 0 : index
    %c0_1 = arith.constant 0 : index
    %1 = vector.load %arg1[%c0, %c0_0, %c0_1] : memref<4x8x576xbf16, #tpu.memory_space<vmem>>, vector<1x8x576xbf16>
    %2 = vector.shape_cast %1 : vector<1x8x576xbf16> to vector<8x576xbf16>
    %c0_2 = arith.constant 0 : index
    %c0_3 = arith.constant 0 : index
    %3 = vector.load %arg2[%c0_2, %c0_3] : memref<576x128xbf16, #tpu.memory_space<vmem>>, vector<576x128xbf16>
    %cst_4 = arith.constant dense<0.000000e+00> : vector<8x128xf32>
    %4 = tpu.matmul %2, %3, %cst_4 {dimension_numbers = #tpu.dot_dimension_numbers<[1], [0], [0], [1], [0, 0, 1, 1], [], []>} : vector<8x576xbf16>, vector<576x128xbf16>, vector<8x128xf32> -> vector<8x128xf32>
    %c0_5 = arith.constant 0 : index
    %c0_6 = arith.constant 0 : index
    %5 = vector.load %arg3[%c0_5, %c0_6] : memref<1x128xf32, #tpu.memory_space<vmem>>, vector<1x128xf32>
    %6 = vector.broadcast %5 : vector<1x128xf32> to vector<8x128xf32>
    %7 = arith.addf %4, %6 : vector<8x128xf32>
    %cst_7 = arith.constant 2.000000e-01 : f32
    %8 = vector.broadcast %cst_7 : f32 to vector<8x128xf32>
    %9 = arith.mulf %8, %7 : vector<8x128xf32>
    %10 = arith.maximumf %7, %9 : vector<8x128xf32>
    %c0_8 = arith.constant 0 : index
    %c0_9 = arith.constant 0 : index
    %11 = vector.load %arg4[%c0_8, %c0_9] : memref<1x128xf32, #tpu.memory_space<vmem>>, vector<1x128xf32>
    %12 = vector.broadcast %11 : vector<1x128xf32> to vector<8x128xf32>
    %13 = arith.addf %10, %12 : vector<8x128xf32>
    %14 = arith.truncf %13 : vector<8x128xf32> to vector<8x128xbf16>
    %c0_10 = arith.constant 0 : index
    %c0_11 = arith.constant 0 : index
    %c0_12 = arith.constant 0 : index
    %15 = vector.load %arg5[%c0_10, %c0_11, %c0_12] : memref<4x128x128xbf16, #tpu.memory_space<vmem>>, vector<1x128x128xbf16>
    %16 = vector.shape_cast %15 : vector<1x128x128xbf16> to vector<128x128xbf16>
    %cst_13 = arith.constant dense<0.000000e+00> : vector<8x128xf32>
    %17 = tpu.matmul %14, %16, %cst_13 {dimension_numbers = #tpu.dot_dimension_numbers<[1], [0], [0], [1], [0, 0, 1, 1], [], []>} : vector<8x128xbf16>, vector<128x128xbf16>, vector<8x128xf32> -> vector<8x128xf32>
    %18 = arith.addf %0, %17 : vector<8x128xf32>
    %c1 = arith.constant 1 : index
    %c0_14 = arith.constant 0 : index
    %c0_15 = arith.constant 0 : index
    %19 = vector.load %arg1[%c1, %c0_14, %c0_15] : memref<4x8x576xbf16, #tpu.memory_space<vmem>>, vector<1x8x576xbf16>
    %20 = vector.shape_cast %19 : vector<1x8x576xbf16> to vector<8x576xbf16>
    %c0_16 = arith.constant 0 : index
    %c0_17 = arith.constant 0 : index
    %21 = vector.load %arg2[%c0_16, %c0_17] : memref<576x128xbf16, #tpu.memory_space<vmem>>, vector<576x128xbf16>
    %cst_18 = arith.constant dense<0.000000e+00> : vector<8x128xf32>
    %22 = tpu.matmul %20, %21, %cst_18 {dimension_numbers = #tpu.dot_dimension_numbers<[1], [0], [0], [1], [0, 0, 1, 1], [], []>} : vector<8x576xbf16>, vector<576x128xbf16>, vector<8x128xf32> -> vector<8x128xf32>
    %c0_19 = arith.constant 0 : index
    %c0_20 = arith.constant 0 : index
    %23 = vector.load %arg3[%c0_19, %c0_20] : memref<1x128xf32, #tpu.memory_space<vmem>>, vector<1x128xf32>
    %24 = vector.broadcast %23 : vector<1x128xf32> to vector<8x128xf32>
    %25 = arith.addf %22, %24 : vector<8x128xf32>
    %cst_21 = arith.constant 2.000000e-01 : f32
    %26 = vector.broadcast %cst_21 : f32 to vector<8x128xf32>
    %27 = arith.mulf %26, %25 : vector<8x128xf32>
    %28 = arith.maximumf %25, %27 : vector<8x128xf32>
    %c0_22 = arith.constant 0 : index
    %c0_23 = arith.constant 0 : index
    %29 = vector.load %arg4[%c0_22, %c0_23] : memref<1x128xf32, #tpu.memory_space<vmem>>, vector<1x128xf32>
    %30 = vector.broadcast %29 : vector<1x128xf32> to vector<8x128xf32>
    %31 = arith.addf %28, %30 : vector<8x128xf32>
    %32 = arith.truncf %31 : vector<8x128xf32> to vector<8x128xbf16>
    %c1_24 = arith.constant 1 : index
    %c0_25 = arith.constant 0 : index
    %c0_26 = arith.constant 0 : index
    %33 = vector.load %arg5[%c1_24, %c0_25, %c0_26] : memref<4x128x128xbf16, #tpu.memory_space<vmem>>, vector<1x128x128xbf16>
    %34 = vector.shape_cast %33 : vector<1x128x128xbf16> to vector<128x128xbf16>
    %cst_27 = arith.constant dense<0.000000e+00> : vector<8x128xf32>
    %35 = tpu.matmul %32, %34, %cst_27 {dimension_numbers = #tpu.dot_dimension_numbers<[1], [0], [0], [1], [0, 0, 1, 1], [], []>} : vector<8x128xbf16>, vector<128x128xbf16>, vector<8x128xf32> -> vector<8x128xf32>
    %36 = arith.addf %18, %35 : vector<8x128xf32>
    %c2 = arith.constant 2 : index
    %c0_28 = arith.constant 0 : index
    %c0_29 = arith.constant 0 : index
    %37 = vector.load %arg1[%c2, %c0_28, %c0_29] : memref<4x8x576xbf16, #tpu.memory_space<vmem>>, vector<1x8x576xbf16>
    %38 = vector.shape_cast %37 : vector<1x8x576xbf16> to vector<8x576xbf16>
    %c0_30 = arith.constant 0 : index
    %c0_31 = arith.constant 0 : index
    %39 = vector.load %arg2[%c0_30, %c0_31] : memref<576x128xbf16, #tpu.memory_space<vmem>>, vector<576x128xbf16>
    %cst_32 = arith.constant dense<0.000000e+00> : vector<8x128xf32>
    %40 = tpu.matmul %38, %39, %cst_32 {dimension_numbers = #tpu.dot_dimension_numbers<[1], [0], [0], [1], [0, 0, 1, 1], [], []>} : vector<8x576xbf16>, vector<576x128xbf16>, vector<8x128xf32> -> vector<8x128xf32>
    %c0_33 = arith.constant 0 : index
    %c0_34 = arith.constant 0 : index
    %41 = vector.load %arg3[%c0_33, %c0_34] : memref<1x128xf32, #tpu.memory_space<vmem>>, vector<1x128xf32>
    %42 = vector.broadcast %41 : vector<1x128xf32> to vector<8x128xf32>
    %43 = arith.addf %40, %42 : vector<8x128xf32>
    %cst_35 = arith.constant 2.000000e-01 : f32
    %44 = vector.broadcast %cst_35 : f32 to vector<8x128xf32>
    %45 = arith.mulf %44, %43 : vector<8x128xf32>
    %46 = arith.maximumf %43, %45 : vector<8x128xf32>
    %c0_36 = arith.constant 0 : index
    %c0_37 = arith.constant 0 : index
    %47 = vector.load %arg4[%c0_36, %c0_37] : memref<1x128xf32, #tpu.memory_space<vmem>>, vector<1x128xf32>
    %48 = vector.broadcast %47 : vector<1x128xf32> to vector<8x128xf32>
    %49 = arith.addf %46, %48 : vector<8x128xf32>
    %50 = arith.truncf %49 : vector<8x128xf32> to vector<8x128xbf16>
    %c2_38 = arith.constant 2 : index
    %c0_39 = arith.constant 0 : index
    %c0_40 = arith.constant 0 : index
    %51 = vector.load %arg5[%c2_38, %c0_39, %c0_40] : memref<4x128x128xbf16, #tpu.memory_space<vmem>>, vector<1x128x128xbf16>
    %52 = vector.shape_cast %51 : vector<1x128x128xbf16> to vector<128x128xbf16>
    %cst_41 = arith.constant dense<0.000000e+00> : vector<8x128xf32>
    %53 = tpu.matmul %50, %52, %cst_41 {dimension_numbers = #tpu.dot_dimension_numbers<[1], [0], [0], [1], [0, 0, 1, 1], [], []>} : vector<8x128xbf16>, vector<128x128xbf16>, vector<8x128xf32> -> vector<8x128xf32>
    %54 = arith.addf %36, %53 : vector<8x128xf32>
    %c3 = arith.constant 3 : index
    %c0_42 = arith.constant 0 : index
    %c0_43 = arith.constant 0 : index
    %55 = vector.load %arg1[%c3, %c0_42, %c0_43] : memref<4x8x576xbf16, #tpu.memory_space<vmem>>, vector<1x8x576xbf16>
    %56 = vector.shape_cast %55 : vector<1x8x576xbf16> to vector<8x576xbf16>
    %c0_44 = arith.constant 0 : index
    %c0_45 = arith.constant 0 : index
    %57 = vector.load %arg2[%c0_44, %c0_45] : memref<576x128xbf16, #tpu.memory_space<vmem>>, vector<576x128xbf16>
    %cst_46 = arith.constant dense<0.000000e+00> : vector<8x128xf32>
    %58 = tpu.matmul %56, %57, %cst_46 {dimension_numbers = #tpu.dot_dimension_numbers<[1], [0], [0], [1], [0, 0, 1, 1], [], []>} : vector<8x576xbf16>, vector<576x128xbf16>, vector<8x128xf32> -> vector<8x128xf32>
    %c0_47 = arith.constant 0 : index
    %c0_48 = arith.constant 0 : index
    %59 = vector.load %arg3[%c0_47, %c0_48] : memref<1x128xf32, #tpu.memory_space<vmem>>, vector<1x128xf32>
    %60 = vector.broadcast %59 : vector<1x128xf32> to vector<8x128xf32>
    %61 = arith.addf %58, %60 : vector<8x128xf32>
    %cst_49 = arith.constant 2.000000e-01 : f32
    %62 = vector.broadcast %cst_49 : f32 to vector<8x128xf32>
    %63 = arith.mulf %62, %61 : vector<8x128xf32>
    %64 = arith.maximumf %61, %63 : vector<8x128xf32>
    %c0_50 = arith.constant 0 : index
    %c0_51 = arith.constant 0 : index
    %65 = vector.load %arg4[%c0_50, %c0_51] : memref<1x128xf32, #tpu.memory_space<vmem>>, vector<1x128xf32>
    %66 = vector.broadcast %65 : vector<1x128xf32> to vector<8x128xf32>
    %67 = arith.addf %64, %66 : vector<8x128xf32>
    %68 = arith.truncf %67 : vector<8x128xf32> to vector<8x128xbf16>
    %c3_52 = arith.constant 3 : index
    %c0_53 = arith.constant 0 : index
    %c0_54 = arith.constant 0 : index
    %69 = vector.load %arg5[%c3_52, %c0_53, %c0_54] : memref<4x128x128xbf16, #tpu.memory_space<vmem>>, vector<1x128x128xbf16>
    %70 = vector.shape_cast %69 : vector<1x128x128xbf16> to vector<128x128xbf16>
    %cst_55 = arith.constant dense<0.000000e+00> : vector<8x128xf32>
    %71 = tpu.matmul %68, %70, %cst_55 {dimension_numbers = #tpu.dot_dimension_numbers<[1], [0], [0], [1], [0, 0, 1, 1], [], []>} : vector<8x128xbf16>, vector<128x128xbf16>, vector<8x128xf32> -> vector<8x128xf32>
    %72 = arith.addf %54, %71 : vector<8x128xf32>
    %c0_56 = arith.constant 0 : index
    %c0_57 = arith.constant 0 : index
    %73 = vector.load %arg6[%c0_56, %c0_57] : memref<1x128xf32, #tpu.memory_space<vmem>>, vector<1x128xf32>
    %74 = vector.broadcast %73 : vector<1x128xf32> to vector<8x128xf32>
    %75 = arith.addf %72, %74 : vector<8x128xf32>
    %76 = tpu.iota {dimensions = array<i32: 1>} : vector<8x128xi32>
    %cst_58 = arith.constant 5.000000e-01 : f32
    %77 = vector.broadcast %cst_58 : f32 to vector<8x128xf32>
    %78 = arith.mulf %77, %75 : vector<8x128xf32>
    %79 = math.tanh %78 : vector<8x128xf32>
    %cst_59 = arith.constant 1.000000e+00 : f32
    %80 = vector.broadcast %cst_59 : f32 to vector<8x128xf32>
    %81 = arith.addf %79, %80 : vector<8x128xf32>
    %cst_60 = arith.constant 5.000000e-01 : f32
    %82 = vector.broadcast %cst_60 : f32 to vector<8x128xf32>
    %83 = arith.mulf %82, %81 : vector<8x128xf32>
    %c1_i32 = arith.constant 1 : i32
    %84 = vector.broadcast %c1_i32 : i32 to vector<8x128xi32>
    %85 = arith.cmpi sge, %76, %84 : vector<8x128xi32>
    %c11_i32 = arith.constant 11 : i32
    %86 = vector.broadcast %c11_i32 : i32 to vector<8x128xi32>
    %87 = arith.cmpi sle, %76, %86 : vector<8x128xi32>
    %88 = arith.andi %85, %87 : vector<8x128xi1>
    %cst_61 = arith.constant -1.000000e+30 : f32
    %89 = vector.broadcast %cst_61 : f32 to vector<8x128xf32>
    %90 = arith.select %88, %75, %89 : vector<8x128xi1>, vector<8x128xf32>
    %cst_62 = arith.constant dense<0xFF800000> : vector<8xf32>
    %91 = vector.multi_reduction <maximumf>, %90, %cst_62 [1] : vector<8x128xf32> to vector<8xf32>
    %92 = vector.shape_cast %91 : vector<8xf32> to vector<8x1xf32>
    %93 = vector.broadcast %92 : vector<8x1xf32> to vector<8x128xf32>
    %94 = arith.subf %90, %93 : vector<8x128xf32>
    %95 = math.exp %94 : vector<8x128xf32>
    %cst_63 = arith.constant dense<0.000000e+00> : vector<8xf32>
    %96 = vector.multi_reduction <add>, %95, %cst_63 [1] : vector<8x128xf32> to vector<8xf32>
    %97 = vector.shape_cast %96 : vector<8xf32> to vector<8x1xf32>
    %98 = vector.broadcast %97 : vector<8x1xf32> to vector<8x128xf32>
    %99 = arith.divf %95, %98 : vector<8x128xf32>
    %c0_i32 = arith.constant 0 : i32
    %100 = vector.broadcast %c0_i32 : i32 to vector<8x128xi32>
    %101 = arith.cmpi eq, %76, %100 : vector<8x128xi32>
    %102 = arith.select %101, %83, %99 : vector<8x128xi1>, vector<8x128xf32>
    %c0_64 = arith.constant 0 : index
    %c0_65 = arith.constant 0 : index
    %103 = vector.load %arg7[%c0_64, %c0_65] : memref<8x128xf32, #tpu.memory_space<vmem>>, vector<8x128xf32>
    tpu.vector_store %arg7[%c0_64, %c0_65], %102 {strides = array<i32>} : memref<8x128xf32, #tpu.memory_space<vmem>>, vector<8x128xf32>,
    return
  }
  func.func @transform_0(%arg0: i32) -> (i32, i32, i32) {
    %c0_i32 = arith.constant 0 : i32
    %c0_i32_0 = arith.constant 0 : i32
    %c0_i32_1 = arith.constant 0 : i32
    return %c0_i32, %arg0, %c0_i32_0 : i32, i32, i32
  }
  func.func @transform_1(%arg0: i32) -> (i32, i32) {
    %c0_i32 = arith.constant 0 : i32
    %c0_i32_0 = arith.constant 0 : i32
    %c0_i32_1 = arith.constant 0 : i32
    return %c0_i32, %c0_i32_0 : i32, i32
  }
  func.func @transform_2(%arg0: i32) -> (i32, i32) {
    %c0_i32 = arith.constant 0 : i32
    %c0_i32_0 = arith.constant 0 : i32
    %c0_i32_1 = arith.constant 0 : i32
    return %c0_i32, %c0_i32_0 : i32, i32
  }
  func.func @transform_3(%arg0: i32) -> (i32, i32) {
    %c0_i32 = arith.constant 0 : i32
    %c0_i32_0 = arith.constant 0 : i32
    %c0_i32_1 = arith.constant 0 : i32
    return %c0_i32, %c0_i32_0 : i32, i32
  }
  func.func @transform_4(%arg0: i32) -> (i32, i32, i32) {
    %c0_i32 = arith.constant 0 : i32
    %c0_i32_0 = arith.constant 0 : i32
    %c0_i32_1 = arith.constant 0 : i32
    %c0_i32_2 = arith.constant 0 : i32
    return %c0_i32, %c0_i32_0, %c0_i32_1 : i32, i32, i32
  }
  func.func @transform_5(%arg0: i32) -> (i32, i32) {
    %c0_i32 = arith.constant 0 : i32
    %c0_i32_0 = arith.constant 0 : i32
    %c0_i32_1 = arith.constant 0 : i32
    return %c0_i32, %c0_i32_0 : i32, i32
  }
  func.func @transform_6(%arg0: i32) -> (i32, i32) {
    %c0_i32 = arith.constant 0 : i32
    %c0_i32_0 = arith.constant 0 : i32
    return %arg0, %c0_i32 : i32, i32
  }
}

</mosaic_0001>

<llo_original>
// kernel: discriminator_forward.4
$region0: #{discriminator_forward.4}
  #allocation0 [shape = 'u32[]', space=smem, size = 0x4, offset = 0x4, fixed_abs, tag = 'smem constant byte address 0x4 - core index']
  #allocation1 [shape = 'u32[144,128]{1,0:T(1,128)}', space=vmem, size = 0x12000, scoped, tag = 'internal scratch']
  %s0 = inlined_call_operand.vmem [shape: bf16[512,16], index: 0, kind: input, shape index: {}]
  %s1 = inlined_call_operand.vmem [shape: bf16[16,128], index: 1, kind: input, shape index: {}]
  %s2 = inlined_call_operand.vmem [shape: f32[1,128], index: 2, kind: input, shape index: {}]
  %s3 = inlined_call_operand.vmem [shape: f32[1,128], index: 3, kind: input, shape index: {}]
  %s4 = inlined_call_operand.vmem [shape: bf16[512,128], index: 4, kind: output, shape index: {}]
  %s5 = sld [smem:[#allocation0]]
  $region49: #{discriminator_forward.4} parent=0
    _
  %s7 = ssub.s32 1, %s5
  %s8 = scalar_select 0, %s7, %s5
  loop: start=0, step=1, limit=4
  $region2: #{discriminator_forward.4} parent=0 // loop_pre_header
    _
  $region3: #{discriminator_forward.4} parent=0 // loop_header
    %s10 = sphi 0, %s14
    %p11 = scmp.ge.s32.totalorder %s10, 4
    %s20 = sphi 0, %s22
    %s23 = sphi 0, %s20
    %s24 = sphi 0, %s23
    %s40 = sphi 0, %s24
    %s44 = sphi 0, %s44
    %s46 = sphi 0, %s44
    %s47 = sphi 0, %s46
    %s61 = sphi 0, %s47
    %s65 = sphi 0, %s65
    %s67 = sphi 0, %s65
    %s68 = sphi 0, %s67
    %s82 = sphi 0, %s68
    %s86 = sphi 0, %s86
    %s88 = sphi 0, %s86
    %s89 = sphi 0, %s88
    %s103 = sphi 0, %s89
    %s109 = sphi 0, %s111
    %s112 = sphi 0, %s109
    %s113 = sphi 0, %s112
    %s129 = sphi 0, %s113
  $region4: #{discriminator_forward.4} parent=0 // loop_header_branch
    %13 = sbr.rel (%p11) target = $region8
  $region5: #{discriminator_forward.4} parent=0 // loop_body
    %s15 = ssub.s32 %s10, 1
    %s16 = ssub.s32 %s10, 2
    %s17 = sadd.s32 %s10, 1
    %s18 = ssub.s32 %s10, %s17
    %p19 = scmp.eq.s32.totalorder %s18, 0
    %s21 = sadd.s32 %s20, 1
    %s22 = scalar_select %p19, %s20, %s21
    %p25 = pneg %p19
    %p26 = scmp.eq.s32.totalorder %s10, 1
    %p27 = por %p25, %p26
    %p28 = scmp.ne.s32.totalorder %s20, %s23
    %p29 = scmp.eq.s32.totalorder %s10, 0
    %p30 = por %p28, %p29
    %p31 = scmp.ne.s32.totalorder %s20, %s23
    %p32 = scmp.eq.s32.totalorder %s15, 1
    %p33 = por %p31, %p32
    %p34 = scmp.ne.s32.totalorder %s23, %s24
    %p35 = scmp.eq.s32.totalorder %s15, 0
    %p36 = por %p34, %p35
    %p37 = scmp.ne.s32.totalorder %s23, %s24
    %p38 = scmp.eq.s32.totalorder %s16, 1
    %p39 = por %p37, %p38
    %p41 = scmp.ne.s32.totalorder %s24, %s40
    %p42 = scmp.eq.s32.totalorder %s16, 0
    %p43 = por %p41, %p42
    %s45 = sadd.s32 %s44, 1
    %p48 = scmp.eq.s32.totalorder %s10, 1
    %p49 = scmp.ne.s32.totalorder %s44, %s46
    %p50 = scmp.eq.s32.totalorder %s10, 0
    %p51 = por %p49, %p50
    %p52 = scmp.ne.s32.totalorder %s44, %s46
    %p53 = scmp.eq.s32.totalorder %s15, 1
    %p54 = por %p52, %p53
    %p55 = scmp.ne.s32.totalorder %s46, %s47
    %p56 = scmp.eq.s32.totalorder %s15, 0
    %p57 = por %p55, %p56
    %p58 = scmp.ne.s32.totalorder %s46, %s47
    %p59 = scmp.eq.s32.totalorder %s16, 1
    %p60 = por %p58, %p59
    %p62 = scmp.ne.s32.totalorder %s47, %s61
    %p63 = scmp.eq.s32.totalorder %s16, 0
    %p64 = por %p62, %p63
    %s66 = sadd.s32 %s65, 1
    %p69 = scmp.eq.s32.totalorder %s10, 1
    %p70 = scmp.ne.s32.totalorder %s65, %s67
    %p71 = scmp.eq.s32.totalorder %s10, 0
    %p72 = por %p70, %p71
    %p73 = scmp.ne.s32.totalorder %s65, %s67
    %p74 = scmp.eq.s32.totalorder %s15, 1
    %p75 = por %p73, %p74
    %p76 = scmp.ne.s32.totalorder %s67, %s68
    %p77 = scmp.eq.s32.totalorder %s15, 0
    %p78 = por %p76, %p77
    %p79 = scmp.ne.s32.totalorder %s67, %s68
    %p80 = scmp.eq.s32.totalorder %s16, 1
    %p81 = por %p79, %p80
    %p83 = scmp.ne.s32.totalorder %s68, %s82
    %p84 = scmp.eq.s32.totalorder %s16, 0
    %p85 = por %p83, %p84
    %s87 = sadd.s32 %s86, 1
    %p90 = scmp.eq.s32.totalorder %s10, 1
    %p91 = scmp.ne.s32.totalorder %s86, %s88
    %p92 = scmp.eq.s32.totalorder %s10, 0
    %p93 = por %p91, %p92
    %p94 = scmp.ne.s32.totalorder %s86, %s88
    %p95 = scmp.eq.s32.totalorder %s15, 1
    %p96 = por %p94, %p95
    %p97 = scmp.ne.s32.totalorder %s88, %s89
    %p98 = scmp.eq.s32.totalorder %s15, 0
    %p99 = por %p97, %p98
    %p100 = scmp.ne.s32.totalorder %s88, %s89
    %p101 = scmp.eq.s32.totalorder %s16, 1
    %p102 = por %p100, %p101
    %p104 = scmp.ne.s32.totalorder %s89, %s103
    %p105 = scmp.eq.s32.totalorder %s16, 0
    %p106 = por %p104, %p105
    %s107 = ssub.s32 %s10, %s17
    %p108 = scmp.eq.s32.totalorder %s107, 0
    %s110 = sadd.s32 %s109, 1
    %s111 = scalar_select %p108, %s109, %s110
    %p114 = pneg %p108
    %p115 = scmp.eq.s32.totalorder %s10, 1
    %p116 = por %p114, %p115
    %p117 = scmp.ne.s32.totalorder %s109, %s112
    %p118 = scmp.eq.s32.totalorder %s10, 0
    %p119 = por %p117, %p118
    %p120 = scmp.ne.s32.totalorder %s109, %s112
    %p121 = scmp.eq.s32.totalorder %s15, 1
    %p122 = por %p120, %p121
    %p123 = scmp.ne.s32.totalorder %s112, %s113
    %p124 = scmp.eq.s32.totalorder %s15, 0
    %p125 = por %p123, %p124
    %p126 = scmp.ne.s32.totalorder %s112, %s113
    %p127 = scmp.eq.s32.totalorder %s16, 1
    %p128 = por %p126, %p127
    %p130 = scmp.ne.s32.totalorder %s113, %s129
    %p131 = scmp.eq.s32.totalorder %s16, 0
    %p132 = por %p130, %p131
    %p133 = scmp.le.s32.totalorder 1, %s10
    %p134 = scmp.lt.s32.totalorder %s10, 3
    %p135 = pnand %p133, %p134
    %p136 = pneg %p135
    // Predicated region
    $region9: #{discriminator_forward.4} parent=5 // pred_check
      _
    $region10: #{discriminator_forward.4} parent=5 // pred_check_branch
      %138 = sbr.rel (%p135) target = $region12
    $region11: #{discriminator_forward.4} parent=5 // pred_region
      %s139 = ssub.s32 %s10, 1
      // Predicated region
      $region13: #{discriminator_forward.4} parent=11 // pred_check
        %p140 = pneg %p57
      $region14: #{discriminator_forward.4} parent=11 // pred_check_branch
        %142 = sbr.rel (%p140) target = $region16
      $region15: #{discriminator_forward.4} parent=11 // pred_region
        _
      $region16: #{discriminator_forward.4} parent=11 // pred_fallthru
        _
      // Predicated region
      $region17: #{discriminator_forward.4} parent=11 // pred_check
        %p143 = pneg %p78
      $region18: #{discriminator_forward.4} parent=11 // pred_check_branch
        %145 = sbr.rel (%p143) target = $region20
      $region19: #{discriminator_forward.4} parent=11 // pred_region
        _
      $region20: #{discriminator_forward.4} parent=11 // pred_fallthru
        _
      // Predicated region
      $region21: #{discriminator_forward.4} parent=11 // pred_check
        %p146 = pneg %p99
      $region22: #{discriminator_forward.4} parent=11 // pred_check_branch
        %148 = sbr.rel (%p146) target = $region24
      $region23: #{discriminator_forward.4} parent=11 // pred_region
        _
      $region24: #{discriminator_forward.4} parent=11 // pred_fallthru
        _
    $region12: #{discriminator_forward.4} parent=5 // pred_fallthru
      _
    %p149 = scmp.lt.s32.totalorder %s10, 2
    // Predicated region
    $region25: #{discriminator_forward.4} parent=5 // pred_check
      %p150 = pneg %p149
    $region26: #{discriminator_forward.4} parent=5 // pred_check_branch
      %152 = sbr.rel (%p150) target = $region28
    $region27: #{discriminator_forward.4} parent=5 // pred_region
      // Predicated region
      $region29: #{discriminator_forward.4} parent=27 // pred_check
        %p153 = pneg %p30
      $region30: #{discriminator_forward.4} parent=27 // pred_check_branch
        %155 = sbr.rel (%p153) target = $region32
      $region31: #{discriminator_forward.4} parent=27 // pred_region
        %s156 = smul.u32 32, %s10
        %p157 = scmp.lt.s32.totalorder %s156, 63
        %s158 = scalar_select %p157, %s156, 63
        %s159 = smul.addr %s158, 4
        %s160 = scalar_lea.vmem %s0, %s159
        %s161 = smul.u32 32, %s10
      $region32: #{discriminator_forward.4} parent=27 // pred_fallthru
        _
    $region28: #{discriminator_forward.4} parent=5 // pred_fallthru
      _
    %p162 = scmp.le.s32.totalorder 1, %s10
    %p163 = scmp.lt.s32.totalorder %s10, 3
    %p164 = pnand %p162, %p163
    %p165 = pneg %p164
    // Predicated region
    $region33: #{discriminator_forward.4} parent=5 // pred_check
      _
    $region34: #{discriminator_forward.4} parent=5 // pred_check_branch
      %167 = sbr.rel (%p164) target = $region36
    $region35: #{discriminator_forward.4} parent=5 // pred_region
      %s168 = ssub.s32 %s10, 1
      %s169 = smul.u32 32, %s15
      %p170 = scmp.lt.s32.totalorder %s169, 63
      %s171 = scalar_select %p170, %s169, 63
      %s172 = smul.addr %s171, 4
      %s173 = scalar_lea.vmem %s0, %s172
      %p174 = pneg %p36
      %p175 = pneg %p33
      %p176 = pneg %p57
      %p177 = pneg %p54
      %p178 = pneg %p78
      %p179 = pneg %p75
      %p180 = pneg %p99
      %p181 = pneg %p96
      %p182 = pneg %p125
      %p183 = pneg %p122
      %s184 = smul.u32 32, %s15
      %p185 = scmp.lt.s32.totalorder %s184, 63
      %s186 = scalar_select %p185, %s184, 63
      %s187 = smul.addr %s186, 4
      %s188 = scalar_lea.vmem %s4, %s187
      %s189 = smul.u32 32, %s15
      %p190 = scmp.lt.s32.totalorder %s189, 63
      %s191 = scalar_select %p190, %s189, 63
      %s192 = smul.addr %s191, 4
      %s193 = scalar_lea.vmem %s0, %s192
      %s194 = smul.u32 32, %s15
      %s195 = smul.u32 32, %s15
      %p196 = scmp.lt.s32.totalorder %s195, 63
      %s197 = scalar_select %p196, %s195, 63
      %s198 = smul.addr %s197, 4
      %s199 = scalar_lea.vmem %s4, %s198
      %s200 = smul.u32 32, %s15
      %v202 = vld [vmem:[%s193] sm:$0xf]
      %v203 = vld [vmem:[%s193 + $0x4] sm:$0xf]
      %v204 = vld [vmem:[%s193 + $0x8] sm:$0xf]
      %v205 = vld [vmem:[%s193 + $0xc] sm:$0xf]
      %v206 = vld [vmem:[%s193 + $0x10] sm:$0xf]
      %v207 = vld [vmem:[%s193 + $0x14] sm:$0xf]
      %v208 = vld [vmem:[%s193 + $0x18] sm:$0xf]
      %v209 = vld [vmem:[%s193 + $0x1c] sm:$0xf]
      %v210 = vld [vmem:[%s193 + $0x20] sm:$0xf]
      %v211 = vld [vmem:[%s193 + $0x24] sm:$0xf]
      %v212 = vld [vmem:[%s193 + $0x28] sm:$0xf]
      %v213 = vld [vmem:[%s193 + $0x2c] sm:$0xf]
      %v214 = vld [vmem:[%s193 + $0x30] sm:$0xf]
      %v215 = vld [vmem:[%s193 + $0x34] sm:$0xf]
      %v216 = vld [vmem:[%s193 + $0x38] sm:$0xf]
      %v217 = vld [vmem:[%s193 + $0x3c] sm:$0xf]
      %v218 = vld [vmem:[%s193 + $0x40] sm:$0xf]
      %v219 = vld [vmem:[%s193 + $0x44] sm:$0xf]
      %v220 = vld [vmem:[%s193 + $0x48] sm:$0xf]
      %v221 = vld [vmem:[%s193 + $0x4c] sm:$0xf]
      %v222 = vld [vmem:[%s193 + $0x50] sm:$0xf]
      %v223 = vld [vmem:[%s193 + $0x54] sm:$0xf]
      %v224 = vld [vmem:[%s193 + $0x58] sm:$0xf]
      %v225 = vld [vmem:[%s193 + $0x5c] sm:$0xf]
      %v226 = vld [vmem:[%s193 + $0x60] sm:$0xf]
      %v227 = vld [vmem:[%s193 + $0x64] sm:$0xf]
      %v228 = vld [vmem:[%s193 + $0x68] sm:$0xf]
      %v229 = vld [vmem:[%s193 + $0x6c] sm:$0xf]
      %v230 = vld [vmem:[%s193 + $0x70] sm:$0xf]
      %v231 = vld [vmem:[%s193 + $0x74] sm:$0xf]
      %v232 = vld [vmem:[%s193 + $0x78] sm:$0xf]
      %v233 = vld [vmem:[%s193 + $0x7c] sm:$0xf]
      %v234 = vld [vmem:[%s1] sm:$0xf]
      %v235 = vld [vmem:[%s1 + $0x4] sm:$0xf]
      %v236 = vld [vmem:[%s2] sm:$0x1]
      %v238 = vlaneseq
      %v239 = vshrl.u32 %v238, 7
      %v240 = vsub.s32 0, %v239
      %v241 = vrot.slane %v236, %v240
      %v275 = vunpack.c.l.b16 %v202
      %v276 = vunpack.c.l.b16 %v203
      %v277 = vunpack.c.l.b16 %v204
      %v278 = vunpack.c.l.b16 %v205
      %v279 = vunpack.c.l.b16 %v206
      %v280 = vunpack.c.l.b16 %v207
      %v281 = vunpack.c.l.b16 %v208
      %v282 = vunpack.c.l.b16 %v209
      %v283 = vunpack.c.l.b16 %v210
      %v284 = vunpack.c.l.b16 %v211
      %v285 = vunpack.c.l.b16 %v212
      %v286 = vunpack.c.l.b16 %v213
      %v287 = vunpack.c.l.b16 %v214
      %v288 = vunpack.c.l.b16 %v215
      %v289 = vunpack.c.l.b16 %v216
      %v290 = vunpack.c.l.b16 %v217
      %v291 = vunpack.c.l.b16 %v218
      %v292 = vunpack.c.l.b16 %v219
      %v293 = vunpack.c.l.b16 %v220
      %v294 = vunpack.c.l.b16 %v221
      %v295 = vunpack.c.l.b16 %v222
      %v296 = vunpack.c.l.b16 %v223
      %v297 = vunpack.c.l.b16 %v224
      %v298 = vunpack.c.l.b16 %v225
      %v299 = vunpack.c.l.b16 %v226
      %v300 = vunpack.c.l.b16 %v227
      %v301 = vunpack.c.l.b16 %v228
      %v302 = vunpack.c.l.b16 %v229
      %v303 = vunpack.c.l.b16 %v230
      %v304 = vunpack.c.l.b16 %v231
      %v305 = vunpack.c.l.b16 %v232
      %v306 = vunpack.c.l.b16 %v233
      %v307 = vpack.c.b16 %v276, %v275
      %v308 = vpack.c.b16 %v278, %v277
      %v309 = vpack.c.b16 %v280, %v279
      %v310 = vpack.c.b16 %v282, %v281
      %v311 = vpack.c.b16 %v284, %v283
      %v312 = vpack.c.b16 %v286, %v285
      %v313 = vpack.c.b16 %v288, %v287
      %v314 = vpack.c.b16 %v290, %v289
      %v315 = vpack.c.b16 %v292, %v291
      %v316 = vpack.c.b16 %v294, %v293
      %v317 = vpack.c.b16 %v296, %v295
      %v318 = vpack.c.b16 %v298, %v297
      %v319 = vpack.c.b16 %v300, %v299
      %v320 = vpack.c.b16 %v302, %v301
      %v321 = vpack.c.b16 %v304, %v303
      %v322 = vpack.c.b16 %v306, %v305
      %v325 = vunpack.c.l.b16 %v234
      %v326 = vunpack.c.l.b16 %v235
      %v327 = vpack.c.b16 %v326, %v325
      %vm329 = vcmask 130048
      %v331 = vsel %vm329, %v307, 0
      %v334 = vsel %vm329, %v308, 0
      %v337 = vsel %vm329, %v309, 0
      %v340 = vsel %vm329, %v310, 0
      %v343 = vsel %vm329, %v311, 0
      %v346 = vsel %vm329, %v312, 0
      %v349 = vsel %vm329, %v313, 0
      %v352 = vsel %vm329, %v314, 0
      %v355 = vsel %vm329, %v315, 0
      %v358 = vsel %vm329, %v316, 0
      %v361 = vsel %vm329, %v317, 0
      %v364 = vsel %vm329, %v318, 0
      %v367 = vsel %vm329, %v319, 0
      %v370 = vsel %vm329, %v320, 0
      %v373 = vsel %vm329, %v321, 0
      %v376 = vsel %vm329, %v322, 0
      %378 = vmatprep.subr.bf16.mxu0 0
      %379 = vmatpush1.bf16.msra.mxu0 0
      %380 = vmatprep.subr.bf16.mxu0 0
      %381 = vmatpush1.bf16.msra.mxu0 0
      %382 = vmatprep.subr.bf16.mxu0 0
      %383 = vmatpush1.bf16.msra.mxu0 0
      %384 = vmatprep.subr.bf16.mxu0 0
      %385 = vmatpush1.bf16.msra.mxu0 0
      %386 = vmatprep.subr.bf16.mxu0 0
      %387 = vmatpush1.bf16.msra.mxu0 0
      %388 = vmatprep.subr.bf16.mxu0 0
      %389 = vmatpush1.bf16.msra.mxu0 0
      %390 = vmatprep.subr.bf16.mxu0 0
      %391 = vmatpush1.bf16.msra.mxu0 0
      %392 = vmatprep.subr.bf16.mxu0 0
      %393 = vmatpush1.bf16.msra.mxu0 %v327
      %394 = vmatprep.subr.bf16.mxu0 0
      %395 = vmatpush2.bf16.msra.mxu0 0
      %396 = vmatprep.subr.bf16.mxu0 0
      %397 = vmatpush2.bf16.msra.mxu0 0
      %398 = vmatprep.subr.bf16.mxu0 0
      %399 = vmatpush2.bf16.msra.mxu0 0
      %400 = vmatprep.subr.bf16.mxu0 0
      %401 = vmatpush2.bf16.msra.mxu0 0
      %402 = vmatprep.subr.bf16.mxu0 0
      %403 = vmatpush2.bf16.msra.mxu0 0
      %404 = vmatprep.subr.bf16.mxu0 0
      %405 = vmatpush2.bf16.msra.mxu0 0
      %406 = vmatprep.subr.bf16.mxu0 0
      %407 = vmatpush2.bf16.msra.mxu0 0
      %408 = vmatprep.subr.bf16.mxu0 0
      %409 = vmatpush2.bf16.msra.mxu0 0
      %410 = vmatprep.mubr.bf16.mxu0 0
      %411 = vmatmul.mubr.bf16.gmra.mxu0 %v331
      %v412 = vpop.f32.mrf.mxu0
      %v413 = vadd.f32 %v241, %v412
      %v414 = vpop.f32.mrf.mxu0
      %v415 = vpop.f32.mrf.mxu0
      %v416 = vadd.f32 %v241, %v415
      %v417 = vpop.f32.mrf.mxu0
      %418 = vmatprep.mubr.bf16.mxu0 0
      %419 = vmatmul.mubr.bf16.gmra.mxu0 %v334
      %v420 = vpop.f32.mrf.mxu0
      %v421 = vadd.f32 %v241, %v420
      %v422 = vpop.f32.mrf.mxu0
      %v423 = vpop.f32.mrf.mxu0
      %v424 = vadd.f32 %v241, %v423
      %v425 = vpop.f32.mrf.mxu0
      %426 = vmatprep.mubr.bf16.mxu0 0
      %427 = vmatmul.mubr.bf16.gmra.mxu0 %v337
      %v428 = vpop.f32.mrf.mxu0
      %v429 = vadd.f32 %v241, %v428
      %v430 = vpop.f32.mrf.mxu0
      %v431 = vpop.f32.mrf.mxu0
      %v432 = vadd.f32 %v241, %v431
      %v433 = vpop.f32.mrf.mxu0
      %434 = vmatprep.mubr.bf16.mxu0 0
      %435 = vmatmul.mubr.bf16.gmra.mxu0 %v340
      %v436 = vpop.f32.mrf.mxu0
      %v437 = vadd.f32 %v241, %v436
      %v438 = vpop.f32.mrf.mxu0
      %v439 = vpop.f32.mrf.mxu0
      %v440 = vadd.f32 %v241, %v439
      %v441 = vpop.f32.mrf.mxu0
      %442 = vmatprep.mubr.bf16.mxu0 0
      %443 = vmatmul.mubr.bf16.gmra.mxu0 %v343
      %v444 = vpop.f32.mrf.mxu0
      %v445 = vadd.f32 %v241, %v444
      %v446 = vpop.f32.mrf.mxu0
      %v447 = vpop.f32.mrf.mxu0
      %v448 = vadd.f32 %v241, %v447
      %v449 = vpop.f32.mrf.mxu0
      %450 = vmatprep.mubr.bf16.mxu0 0
      %451 = vmatmul.mubr.bf16.gmra.mxu0 %v346
      %v452 = vpop.f32.mrf.mxu0
      %v453 = vadd.f32 %v241, %v452
      %v454 = vpop.f32.mrf.mxu0
      %v455 = vpop.f32.mrf.mxu0
      %v456 = vadd.f32 %v241, %v455
      %v457 = vpop.f32.mrf.mxu0
      %458 = vmatprep.mubr.bf16.mxu0 0
      %459 = vmatmul.mubr.bf16.gmra.mxu0 %v349
      %v460 = vpop.f32.mrf.mxu0
      %v461 = vadd.f32 %v241, %v460
      %v462 = vpop.f32.mrf.mxu0
      %v463 = vpop.f32.mrf.mxu0
      %v464 = vadd.f32 %v241, %v463
      %v465 = vpop.f32.mrf.mxu0
      %466 = vmatprep.mubr.bf16.mxu0 0
      %467 = vmatmul.mubr.bf16.gmra.mxu0 %v352
      %v468 = vpop.f32.mrf.mxu0
      %v469 = vadd.f32 %v241, %v468
      %v470 = vpop.f32.mrf.mxu0
      %v471 = vpop.f32.mrf.mxu0
      %v472 = vadd.f32 %v241, %v471
      %v473 = vpop.f32.mrf.mxu0
      %474 = vmatprep.mubr.bf16.mxu0 0
      %475 = vmatmul.mubr.bf16.gmra.mxu0 %v355
      %v476 = vpop.f32.mrf.mxu0
      %v477 = vadd.f32 %v241, %v476
      %v478 = vpop.f32.mrf.mxu0
      %v479 = vpop.f32.mrf.mxu0
      %v480 = vadd.f32 %v241, %v479
      %v481 = vpop.f32.mrf.mxu0
      %482 = vmatprep.mubr.bf16.mxu0 0
      %483 = vmatmul.mubr.bf16.gmra.mxu0 %v358
      %v484 = vpop.f32.mrf.mxu0
      %v485 = vadd.f32 %v241, %v484
      %v486 = vpop.f32.mrf.mxu0
      %v487 = vpop.f32.mrf.mxu0
      %v488 = vadd.f32 %v241, %v487
      %v489 = vpop.f32.mrf.mxu0
      %490 = vmatprep.mubr.bf16.mxu0 0
      %491 = vmatmul.mubr.bf16.gmra.mxu0 %v361
      %v492 = vpop.f32.mrf.mxu0
      %v493 = vadd.f32 %v241, %v492
      %v494 = vpop.f32.mrf.mxu0
      %v495 = vpop.f32.mrf.mxu0
      %v496 = vadd.f32 %v241, %v495
      %v497 = vpop.f32.mrf.mxu0
      %498 = vmatprep.mubr.bf16.mxu0 0
      %499 = vmatmul.mubr.bf16.gmra.mxu0 %v364
      %v500 = vpop.f32.mrf.mxu0
      %v501 = vadd.f32 %v241, %v500
      %v502 = vpop.f32.mrf.mxu0
      %v503 = vpop.f32.mrf.mxu0
      %v504 = vadd.f32 %v241, %v503
      %v505 = vpop.f32.mrf.mxu0
      %506 = vmatprep.mubr.bf16.mxu0 0
      %507 = vmatmul.mubr.bf16.gmra.mxu0 %v367
      %v508 = vpop.f32.mrf.mxu0
      %v509 = vadd.f32 %v241, %v508
      %v510 = vpop.f32.mrf.mxu0
      %v511 = vpop.f32.mrf.mxu0
      %v512 = vadd.f32 %v241, %v511
      %v513 = vpop.f32.mrf.mxu0
      %514 = vmatprep.mubr.bf16.mxu0 0
      %515 = vmatmul.mubr.bf16.gmra.mxu0 %v370
      %v516 = vpop.f32.mrf.mxu0
      %v517 = vadd.f32 %v241, %v516
      %v518 = vpop.f32.mrf.mxu0
      %v519 = vpop.f32.mrf.mxu0
      %v520 = vadd.f32 %v241, %v519
      %v521 = vpop.f32.mrf.mxu0
      %522 = vmatprep.mubr.bf16.mxu0 0
      %523 = vmatmul.mubr.bf16.gmra.mxu0 %v373
      %v524 = vpop.f32.mrf.mxu0
      %v525 = vadd.f32 %v241, %v524
      %v526 = vpop.f32.mrf.mxu0
      %v527 = vpop.f32.mrf.mxu0
      %v528 = vadd.f32 %v241, %v527
      %v529 = vpop.f32.mrf.mxu0
      %530 = vmatprep.mubr.bf16.mxu0 0
      %531 = vmatmul.mubr.bf16.gmra.mxu0 %v376
      %v532 = vpop.f32.mrf.mxu0
      %v533 = vadd.f32 %v241, %v532
      %v534 = vpop.f32.mrf.mxu0
      %v535 = vpop.f32.mrf.mxu0
      %v536 = vadd.f32 %v241, %v535
      %v537 = vpop.f32.mrf.mxu0
      %538 = vdwg.mxu0
      %v539 = vmul.f32 %v413, 0.2
      %v540 = vmul.f32 %v416, 0.2
      %v541 = vmul.f32 %v421, 0.2
      %v542 = vmul.f32 %v424, 0.2
      %v543 = vmul.f32 %v429, 0.2
      %v544 = vmul.f32 %v432, 0.2
      %v545 = vmul.f32 %v437, 0.2
      %v546 = vmul.f32 %v440, 0.2
      %v547 = vmul.f32 %v445, 0.2
      %v548 = vmul.f32 %v448, 0.2
      %v549 = vmul.f32 %v453, 0.2
      %v550 = vmul.f32 %v456, 0.2
      %v551 = vmul.f32 %v461, 0.2
      %v552 = vmul.f32 %v464, 0.2
      %v553 = vmul.f32 %v469, 0.2
      %v554 = vmul.f32 %v472, 0.2
      %v555 = vmul.f32 %v477, 0.2
      %v556 = vmul.f32 %v480, 0.2
      %v557 = vmul.f32 %v485, 0.2
      %v558 = vmul.f32 %v488, 0.2
      %v559 = vmul.f32 %v493, 0.2
      %v560 = vmul.f32 %v496, 0.2
      %v561 = vmul.f32 %v501, 0.2
      %v562 = vmul.f32 %v504, 0.2
      %v563 = vmul.f32 %v509, 0.2
      %v564 = vmul.f32 %v512, 0.2
      %v565 = vmul.f32 %v517, 0.2
      %v566 = vmul.f32 %v520, 0.2
      %v567 = vmul.f32 %v525, 0.2
      %v568 = vmul.f32 %v528, 0.2
      %v569 = vmul.f32 %v533, 0.2
      %v570 = vmul.f32 %v536, 0.2
      %v571 = vmax.f32 %v413, %v539
      %v572 = vmax.f32 %v416, %v540
      %v573 = vmax.f32 %v421, %v541
      %v574 = vmax.f32 %v424, %v542
      %v575 = vmax.f32 %v429, %v543
      %v576 = vmax.f32 %v432, %v544
      %v577 = vmax.f32 %v437, %v545
      %v578 = vmax.f32 %v440, %v546
      %v579 = vmax.f32 %v445, %v547
      %v580 = vmax.f32 %v448, %v548
      %v581 = vmax.f32 %v453, %v549
      %v582 = vmax.f32 %v456, %v550
      %v583 = vmax.f32 %v461, %v551
      %v584 = vmax.f32 %v464, %v552
      %v585 = vmax.f32 %v469, %v553
      %v586 = vmax.f32 %v472, %v554
      %v587 = vmax.f32 %v477, %v555
      %v588 = vmax.f32 %v480, %v556
      %v589 = vmax.f32 %v485, %v557
      %v590 = vmax.f32 %v488, %v558
      %v591 = vmax.f32 %v493, %v559
      %v592 = vmax.f32 %v496, %v560
      %v593 = vmax.f32 %v501, %v561
      %v594 = vmax.f32 %v504, %v562
      %v595 = vmax.f32 %v509, %v563
      %v596 = vmax.f32 %v512, %v564
      %v597 = vmax.f32 %v517, %v565
      %v598 = vmax.f32 %v520, %v566
      %v599 = vmax.f32 %v525, %v567
      %v600 = vmax.f32 %v528, %v568
      %v601 = vmax.f32 %v533, %v569
      %v602 = vmax.f32 %v536, %v570
      %v603 = vld [vmem:[%s3] sm:$0x1]
      %v605 = vlaneseq
      %v606 = vshrl.u32 %v605, 7
      %v607 = vsub.s32 0, %v606
      %v608 = vrot.slane %v603, %v607
      %v610 = vadd.f32 %v571, %v608
      %v611 = vadd.f32 %v572, %v608
      %v612 = vadd.f32 %v573, %v608
      %v613 = vadd.f32 %v574, %v608
      %v614 = vadd.f32 %v575, %v608
      %v615 = vadd.f32 %v576, %v608
      %v616 = vadd.f32 %v577, %v608
      %v617 = vadd.f32 %v578, %v608
      %v618 = vadd.f32 %v579, %v608
      %v619 = vadd.f32 %v580, %v608
      %v620 = vadd.f32 %v581, %v608
      %v621 = vadd.f32 %v582, %v608
      %v622 = vadd.f32 %v583, %v608
      %v623 = vadd.f32 %v584, %v608
      %v624 = vadd.f32 %v585, %v608
      %v625 = vadd.f32 %v586, %v608
      %v626 = vadd.f32 %v587, %v608
      %v627 = vadd.f32 %v588, %v608
      %v628 = vadd.f32 %v589, %v608
      %v629 = vadd.f32 %v590, %v608
      %v630 = vadd.f32 %v591, %v608
      %v631 = vadd.f32 %v592, %v608
      %v632 = vadd.f32 %v593, %v608
      %v633 = vadd.f32 %v594, %v608
      %v634 = vadd.f32 %v595, %v608
      %v635 = vadd.f32 %v596, %v608
      %v636 = vadd.f32 %v597, %v608
      %v637 = vadd.f32 %v598, %v608
      %v638 = vadd.f32 %v599, %v608
      %v639 = vadd.f32 %v600, %v608
      %v640 = vadd.f32 %v601, %v608
      %v641 = vadd.f32 %v602, %v608
      %v642 = vpack.c.bf16 %v611, %v610
      %v643 = vpack.c.bf16 %v613, %v612
      %v644 = vpack.c.bf16 %v615, %v614
      %v645 = vpack.c.bf16 %v617, %v616
      %v646 = vpack.c.bf16 %v619, %v618
      %v647 = vpack.c.bf16 %v621, %v620
      %v648 = vpack.c.bf16 %v623, %v622
      %v649 = vpack.c.bf16 %v625, %v624
      %v650 = vpack.c.bf16 %v627, %v626
      %v651 = vpack.c.bf16 %v629, %v628
      %v652 = vpack.c.bf16 %v631, %v630
      %v653 = vpack.c.bf16 %v633, %v632
      %v654 = vpack.c.bf16 %v635, %v634
      %v655 = vpack.c.bf16 %v637, %v636
      %v656 = vpack.c.bf16 %v639, %v638
      %v657 = vpack.c.bf16 %v641, %v640
      %v674 = vunpack.c.l.b16 %v642
      %v675 = vunpack.c.h.b16 %v642
      %v676 = vunpack.c.l.b16 %v643
      %v677 = vunpack.c.h.b16 %v643
      %v678 = vunpack.c.l.b16 %v644
      %v679 = vunpack.c.h.b16 %v644
      %v680 = vunpack.c.l.b16 %v645
      %v681 = vunpack.c.h.b16 %v645
      %v682 = vunpack.c.l.b16 %v646
      %v683 = vunpack.c.h.b16 %v646
      %v684 = vunpack.c.l.b16 %v647
      %v685 = vunpack.c.h.b16 %v647
      %v686 = vunpack.c.l.b16 %v648
      %v687 = vunpack.c.h.b16 %v648
      %v688 = vunpack.c.l.b16 %v649
      %v689 = vunpack.c.h.b16 %v649
      %v690 = vunpack.c.l.b16 %v650
      %v691 = vunpack.c.h.b16 %v650
      %v692 = vunpack.c.l.b16 %v651
      %v693 = vunpack.c.h.b16 %v651
      %v694 = vunpack.c.l.b16 %v652
      %v695 = vunpack.c.h.b16 %v652
      %v696 = vunpack.c.l.b16 %v653
      %v697 = vunpack.c.h.b16 %v653
      %v698 = vunpack.c.l.b16 %v654
      %v699 = vunpack.c.h.b16 %v654
      %v700 = vunpack.c.l.b16 %v655
      %v701 = vunpack.c.h.b16 %v655
      %v702 = vunpack.c.l.b16 %v656
      %v703 = vunpack.c.h.b16 %v656
      %v704 = vunpack.c.l.b16 %v657
      %v705 = vunpack.c.h.b16 %v657
      %v706 = vpack.c.b16 %v674, %v674
      %v707 = vpack.c.b16 %v675, %v675
      %v708 = vpack.c.b16 %v676, %v676
      %v709 = vpack.c.b16 %v677, %v677
      %v710 = vpack.c.b16 %v678, %v678
      %v711 = vpack.c.b16 %v679, %v679
      %v712 = vpack.c.b16 %v680, %v680
      %v713 = vpack.c.b16 %v681, %v681
      %v714 = vpack.c.b16 %v682, %v682
      %v715 = vpack.c.b16 %v683, %v683
      %v716 = vpack.c.b16 %v684, %v684
      %v717 = vpack.c.b16 %v685, %v685
      %v718 = vpack.c.b16 %v686, %v686
      %v719 = vpack.c.b16 %v687, %v687
      %v720 = vpack.c.b16 %v688, %v688
      %v721 = vpack.c.b16 %v689, %v689
      %v722 = vpack.c.b16 %v690, %v690
      %v723 = vpack.c.b16 %v691, %v691
      %v724 = vpack.c.b16 %v692, %v692
      %v725 = vpack.c.b16 %v693, %v693
      %v726 = vpack.c.b16 %v694, %v694
      %v727 = vpack.c.b16 %v695, %v695
      %v728 = vpack.c.b16 %v696, %v696
      %v729 = vpack.c.b16 %v697, %v697
      %v730 = vpack.c.b16 %v698, %v698
      %v731 = vpack.c.b16 %v699, %v699
      %v732 = vpack.c.b16 %v700, %v700
      %v733 = vpack.c.b16 %v701, %v701
      %v734 = vpack.c.b16 %v702, %v702
      %v735 = vpack.c.b16 %v703, %v703
      %v736 = vpack.c.b16 %v704, %v704
      %v737 = vpack.c.b16 %v705, %v705
      %770 = vst [vmem:[%s199] sm:$0xf] %v706
      %771 = vst [vmem:[%s199 + $0x4] sm:$0xf] %v707
      %772 = vst [vmem:[%s199 + $0x8] sm:$0xf] %v708
      %773 = vst [vmem:[%s199 + $0xc] sm:$0xf] %v709
      %774 = vst [vmem:[%s199 + $0x10] sm:$0xf] %v710
      %775 = vst [vmem:[%s199 + $0x14] sm:$0xf] %v711
      %776 = vst [vmem:[%s199 + $0x18] sm:$0xf] %v712
      %777 = vst [vmem:[%s199 + $0x1c] sm:$0xf] %v713
      %778 = vst [vmem:[%s199 + $0x20] sm:$0xf] %v714
      %779 = vst [vmem:[%s199 + $0x24] sm:$0xf] %v715
      %780 = vst [vmem:[%s199 + $0x28] sm:$0xf] %v716
      %781 = vst [vmem:[%s199 + $0x2c] sm:$0xf] %v717
      %782 = vst [vmem:[%s199 + $0x30] sm:$0xf] %v718
      %783 = vst [vmem:[%s199 + $0x34] sm:$0xf] %v719
      %784 = vst [vmem:[%s199 + $0x38] sm:$0xf] %v720
      %785 = vst [vmem:[%s199 + $0x3c] sm:$0xf] %v721
      %786 = vst [vmem:[%s199 + $0x40] sm:$0xf] %v722
      %787 = vst [vmem:[%s199 + $0x44] sm:$0xf] %v723
      %788 = vst [vmem:[%s199 + $0x48] sm:$0xf] %v724
      %789 = vst [vmem:[%s199 + $0x4c] sm:$0xf] %v725
      %790 = vst [vmem:[%s199 + $0x50] sm:$0xf] %v726
      %791 = vst [vmem:[%s199 + $0x54] sm:$0xf] %v727
      %792 = vst [vmem:[%s199 + $0x58] sm:$0xf] %v728
      %793 = vst [vmem:[%s199 + $0x5c] sm:$0xf] %v729
      %794 = vst [vmem:[%s199 + $0x60] sm:$0xf] %v730
      %795 = vst [vmem:[%s199 + $0x64] sm:$0xf] %v731
      %796 = vst [vmem:[%s199 + $0x68] sm:$0xf] %v732
      %797 = vst [vmem:[%s199 + $0x6c] sm:$0xf] %v733
      %798 = vst [vmem:[%s199 + $0x70] sm:$0xf] %v734
      %799 = vst [vmem:[%s199 + $0x74] sm:$0xf] %v735
      %800 = vst [vmem:[%s199 + $0x78] sm:$0xf] %v736
      %801 = vst [vmem:[%s199 + $0x7c] sm:$0xf] %v737
      %s802 = smul.u32 32, %s15
      %p803 = scmp.lt.s32.totalorder %s802, 63
      %s804 = scalar_select %p803, %s802, 63
      %s805 = smul.addr %s804, 4
      %s806 = scalar_lea.vmem %s4, %s805
      // Predicated region
      $region37: #{discriminator_forward.4} parent=35 // pred_check
        %p807 = pneg %p122
      $region38: #{discriminator_forward.4} parent=35 // pred_check_branch
        %809 = sbr.rel (%p807) target = $region40
      $region39: #{discriminator_forward.4} parent=35 // pred_region
        %s810 = smul.u32 32, %s15
      $region40: #{discriminator_forward.4} parent=35 // pred_fallthru
        _
    $region36: #{discriminator_forward.4} parent=5 // pred_fallthru
      _
    %p811 = scmp.le.s32.totalorder 2, %s10
    // Predicated region
    $region41: #{discriminator_forward.4} parent=5 // pred_check
      %p812 = pneg %p811
    $region42: #{discriminator_forward.4} parent=5 // pred_check_branch
      %814 = sbr.rel (%p812) target = $region44
    $region43: #{discriminator_forward.4} parent=5 // pred_region
      %s815 = ssub.s32 %s10, 2
      // Predicated region
      $region45: #{discriminator_forward.4} parent=43 // pred_check
        %p816 = pneg %p128
      $region46: #{discriminator_forward.4} parent=43 // pred_check_branch
        %818 = sbr.rel (%p816) target = $region48
      $region47: #{discriminator_forward.4} parent=43 // pred_region
        %s819 = smul.u32 32, %s16
        %p820 = scmp.lt.s32.totalorder %s819, 63
        %s821 = scalar_select %p820, %s819, 63
        %s822 = smul.addr %s821, 4
        %s823 = scalar_lea.vmem %s4, %s822
      $region48: #{discriminator_forward.4} parent=43 // pred_fallthru
        _
    $region44: #{discriminator_forward.4} parent=5 // pred_fallthru
      _
  $region6: #{discriminator_forward.4} parent=0 // loop_footer
    %s14 = sadd.s32 1, %s10
  $region7: #{discriminator_forward.4} parent=0 // loop_footer_branch
    %9 = sbr.rel target = $region3
  $region8: #{discriminator_forward.4} parent=0 // loop_exit
    _

// kernel: discriminator_forward.5
$region0: #{discriminator_forward.5}
  #allocation0 [shape = 'u32[]', space=smem, size = 0x4, offset = 0x4, fixed_abs, tag = 'smem constant byte address 0x4 - core index']
  #allocation1 [shape = 'u32[144,128]{1,0:T(1,128)}', space=vmem, size = 0x12000, scoped, tag = 'internal scratch']
  %s0 = inlined_call_operand.vmem [shape: bf16[128,144], index: 0, kind: input, shape index: {}]
  %s1 = inlined_call_operand.vmem [shape: bf16[144,128], index: 1, kind: input, shape index: {}]
  %s2 = inlined_call_operand.vmem [shape: f32[1,128], index: 2, kind: input, shape index: {}]
  %s3 = inlined_call_operand.vmem [shape: f32[1,128], index: 3, kind: input, shape index: {}]
  %s4 = inlined_call_operand.vmem [shape: bf16[128,128], index: 4, kind: output, shape index: {}]
  %s5 = sld [smem:[#allocation0]]
  $region26: #{discriminator_forward.5} parent=0
    _
  %s7 = ssub.s32 1, %s5
  %s8 = scalar_select 0, %s7, %s5
  // Predicated region
  $region2: #{discriminator_forward.5} parent=0 // pred_check
    _
  $region3: #{discriminator_forward.5} parent=0 // pred_check_branch
    %10 = sbr.rel (0) target = $region5
  $region4: #{discriminator_forward.5} parent=0 // pred_region
    _
  $region5: #{discriminator_forward.5} parent=0 // pred_fallthru
    _
  // Predicated region
  $region6: #{discriminator_forward.5} parent=0 // pred_check
    _
  $region7: #{discriminator_forward.5} parent=0 // pred_check_branch
    %12 = sbr.rel (0) target = $region9
  $region8: #{discriminator_forward.5} parent=0 // pred_region
    _
  $region9: #{discriminator_forward.5} parent=0 // pred_fallthru
    _
  // Predicated region
  $region10: #{discriminator_forward.5} parent=0 // pred_check
    _
  $region11: #{discriminator_forward.5} parent=0 // pred_check_branch
    %14 = sbr.rel (0) target = $region13
  $region12: #{discriminator_forward.5} parent=0 // pred_region
    _
  $region13: #{discriminator_forward.5} parent=0 // pred_fallthru
    _
  // Predicated region
  $region14: #{discriminator_forward.5} parent=0 // pred_check
    _
  $region15: #{discriminator_forward.5} parent=0 // pred_check_branch
    %16 = sbr.rel (0) target = $region17
  $region16: #{discriminator_forward.5} parent=0 // pred_region
    _
  $region17: #{discriminator_forward.5} parent=0 // pred_fallthru
    _
  %v18 = vld [vmem:[%s0] sm:$0xff]
  %v19 = vld [vmem:[%s0 + $0x8] sm:$0xff]
  %v20 = vld [vmem:[%s0 + $0x10] sm:$0xff]
  %v21 = vld [vmem:[%s0 + $0x18] sm:$0xff]
  %v22 = vld [vmem:[%s0 + $0x20] sm:$0xff]
  %v23 = vld [vmem:[%s0 + $0x28] sm:$0xff]
  %v24 = vld [vmem:[%s0 + $0x30] sm:$0xff]
  %v25 = vld [vmem:[%s0 + $0x38] sm:$0xff]
  %v26 = vld [vmem:[%s0 + $0x40] sm:$0xff]
  %v27 = vld [vmem:[%s0 + $0x48] sm:$0xff]
  %v28 = vld [vmem:[%s0 + $0x50] sm:$0xff]
  %v29 = vld [vmem:[%s0 + $0x58] sm:$0xff]
  %v30 = vld [vmem:[%s0 + $0x60] sm:$0xff]
  %v31 = vld [vmem:[%s0 + $0x68] sm:$0xff]
  %v32 = vld [vmem:[%s0 + $0x70] sm:$0xff]
  %v33 = vld [vmem:[%s0 + $0x78] sm:$0xff]
  %v34 = vld [vmem:[%s1] sm:$0xf]
  %v35 = vld [vmem:[%s1 + $0x4] sm:$0xf]
  %v36 = vld [vmem:[%s1 + $0x8] sm:$0xf]
  %v37 = vld [vmem:[%s1 + $0xc] sm:$0xf]
  %v38 = vld [vmem:[%s1 + $0x10] sm:$0xf]
  %v39 = vld [vmem:[%s1 + $0x14] sm:$0xf]
  %v40 = vld [vmem:[%s1 + $0x18] sm:$0xf]
  %v41 = vld [vmem:[%s1 + $0x1c] sm:$0xf]
  %v42 = vld [vmem:[%s1 + $0x20] sm:$0xf]
  %v43 = vld [vmem:[%s1 + $0x24] sm:$0xf]
  %v44 = vld [vmem:[%s1 + $0x28] sm:$0xf]
  %v45 = vld [vmem:[%s1 + $0x2c] sm:$0xf]
  %v46 = vld [vmem:[%s1 + $0x30] sm:$0xf]
  %v47 = vld [vmem:[%s1 + $0x34] sm:$0xf]
  %v48 = vld [vmem:[%s1 + $0x38] sm:$0xf]
  %v49 = vld [vmem:[%s1 + $0x3c] sm:$0xf]
  %v50 = vld [vmem:[%s1 + $0x40] sm:$0xf]
  %v51 = vld [vmem:[%s1 + $0x44] sm:$0xf]
  %v52 = vld [vmem:[%s2] sm:$0x1]
  %v54 = vlaneseq
  %v55 = vshrl.u32 %v54, 7
  %v56 = vsub.s32 0, %v55
  %v57 = vrot.slane %v52, %v56
  %v75 = vunpack.c.l.b16 %v18
  %v76 = vunpack.c.h.b16 %v18
  %v77 = vunpack.c.l.b16 %v19
  %v78 = vunpack.c.h.b16 %v19
  %v79 = vunpack.c.l.b16 %v20
  %v80 = vunpack.c.h.b16 %v20
  %v81 = vunpack.c.l.b16 %v21
  %v82 = vunpack.c.h.b16 %v21
  %v83 = vunpack.c.l.b16 %v22
  %v84 = vunpack.c.h.b16 %v22
  %v85 = vunpack.c.l.b16 %v23
  %v86 = vunpack.c.h.b16 %v23
  %v87 = vunpack.c.l.b16 %v24
  %v88 = vunpack.c.h.b16 %v24
  %v89 = vunpack.c.l.b16 %v25
  %v90 = vunpack.c.h.b16 %v25
  %v91 = vunpack.c.l.b16 %v26
  %v92 = vunpack.c.h.b16 %v26
  %v93 = vunpack.c.l.b16 %v27
  %v94 = vunpack.c.h.b16 %v27
  %v95 = vunpack.c.l.b16 %v28
  %v96 = vunpack.c.h.b16 %v28
  %v97 = vunpack.c.l.b16 %v29
  %v98 = vunpack.c.h.b16 %v29
  %v99 = vunpack.c.l.b16 %v30
  %v100 = vunpack.c.h.b16 %v30
  %v101 = vunpack.c.l.b16 %v31
  %v102 = vunpack.c.h.b16 %v31
  %v103 = vunpack.c.l.b16 %v32
  %v104 = vunpack.c.h.b16 %v32
  %v105 = vunpack.c.l.b16 %v33
  %v106 = vunpack.c.h.b16 %v33
  %v107 = vpack.c.b16 %v77, %v75
  %v108 = vpack.c.b16 %v78, %v76
  %v109 = vpack.c.b16 %v81, %v79
  %v110 = vpack.c.b16 %v82, %v80
  %v111 = vpack.c.b16 %v85, %v83
  %v112 = vpack.c.b16 %v86, %v84
  %v113 = vpack.c.b16 %v89, %v87
  %v114 = vpack.c.b16 %v90, %v88
  %v115 = vpack.c.b16 %v93, %v91
  %v116 = vpack.c.b16 %v94, %v92
  %v117 = vpack.c.b16 %v97, %v95
  %v118 = vpack.c.b16 %v98, %v96
  %v119 = vpack.c.b16 %v101, %v99
  %v120 = vpack.c.b16 %v102, %v100
  %v121 = vpack.c.b16 %v105, %v103
  %v122 = vpack.c.b16 %v106, %v104
  %v149 = vunpack.c.l.b16 %v34
  %v150 = vunpack.c.l.b16 %v35
  %v151 = vunpack.c.l.b16 %v36
  %v152 = vunpack.c.l.b16 %v37
  %v153 = vunpack.c.l.b16 %v38
  %v154 = vunpack.c.l.b16 %v39
  %v155 = vunpack.c.l.b16 %v40
  %v156 = vunpack.c.l.b16 %v41
  %v157 = vunpack.c.l.b16 %v42
  %v158 = vunpack.c.l.b16 %v43
  %v159 = vunpack.c.l.b16 %v44
  %v160 = vunpack.c.l.b16 %v45
  %v161 = vunpack.c.l.b16 %v46
  %v162 = vunpack.c.l.b16 %v47
  %v163 = vunpack.c.l.b16 %v48
  %v164 = vunpack.c.l.b16 %v49
  %v165 = vunpack.c.l.b16 %v50
  %v166 = vunpack.c.l.b16 %v51
  %v167 = vpack.c.b16 %v150, %v149
  %v168 = vpack.c.b16 %v152, %v151
  %v169 = vpack.c.b16 %v154, %v153
  %v170 = vpack.c.b16 %v156, %v155
  %v171 = vpack.c.b16 %v158, %v157
  %v172 = vpack.c.b16 %v160, %v159
  %v173 = vpack.c.b16 %v162, %v161
  %v174 = vpack.c.b16 %v164, %v163
  %v175 = vpack.c.b16 %v166, %v165
  %vm185 = vcmask 130048
  %v187 = vsel %vm185, %v108, 0
  %v190 = vsel %vm185, %v110, 0
  %v193 = vsel %vm185, %v112, 0
  %v196 = vsel %vm185, %v114, 0
  %v199 = vsel %vm185, %v116, 0
  %v202 = vsel %vm185, %v118, 0
  %v205 = vsel %vm185, %v120, 0
  %v208 = vsel %vm185, %v122, 0
  %210 = vmatprep.subr.bf16.mxu0 0
  %211 = vmatpush1.bf16.msra.mxu0 %v174
  %212 = vmatprep.subr.bf16.mxu0 0
  %213 = vmatpush1.bf16.msra.mxu0 %v173
  %214 = vmatprep.subr.bf16.mxu0 0
  %215 = vmatpush1.bf16.msra.mxu0 %v172
  %216 = vmatprep.subr.bf16.mxu0 0
  %217 = vmatpush1.bf16.msra.mxu0 %v171
  %218 = vmatprep.subr.bf16.mxu0 0
  %219 = vmatpush1.bf16.msra.mxu0 %v170
  %220 = vmatprep.subr.bf16.mxu0 0
  %221 = vmatpush1.bf16.msra.mxu0 %v169
  %222 = vmatprep.subr.bf16.mxu0 0
  %223 = vmatpush1.bf16.msra.mxu0 %v168
  %224 = vmatprep.subr.bf16.mxu0 0
  %225 = vmatpush1.bf16.msra.mxu0 %v167
  %226 = vmatprep.subr.bf16.mxu0 0
  %227 = vmatpush2.bf16.msra.mxu0 0
  %228 = vmatprep.subr.bf16.mxu0 0
  %229 = vmatpush2.bf16.msra.mxu0 0
  %230 = vmatprep.subr.bf16.mxu0 0
  %231 = vmatpush2.bf16.msra.mxu0 0
  %232 = vmatprep.subr.bf16.mxu0 0
  %233 = vmatpush2.bf16.msra.mxu0 0
  %234 = vmatprep.subr.bf16.mxu0 0
  %235 = vmatpush2.bf16.msra.mxu0 0
  %236 = vmatprep.subr.bf16.mxu0 0
  %237 = vmatpush2.bf16.msra.mxu0 0
  %238 = vmatprep.subr.bf16.mxu0 0
  %239 = vmatpush2.bf16.msra.mxu0 0
  %240 = vmatprep.subr.bf16.mxu0 0
  %241 = vmatpush2.bf16.msra.mxu0 %v175
  %242 = vmatprep.mubr.bf16.mxu0 %v187
  %243 = vmatmul.mubr.bf16.gmra.mxu0 %v107
  %v244 = vpop.f32.mrf.mxu0
  %v245 = vadd.f32 %v57, %v244
  %v246 = vpop.f32.mrf.mxu0
  %v247 = vpop.f32.mrf.mxu0
  %v248 = vadd.f32 %v57, %v247
  %v249 = vpop.f32.mrf.mxu0
  %250 = vmatprep.mubr.bf16.mxu0 %v190
  %251 = vmatmul.mubr.bf16.gmra.mxu0 %v109
  %v252 = vpop.f32.mrf.mxu0
  %v253 = vadd.f32 %v57, %v252
  %v254 = vpop.f32.mrf.mxu0
  %v255 = vpop.f32.mrf.mxu0
  %v256 = vadd.f32 %v57, %v255
  %v257 = vpop.f32.mrf.mxu0
  %258 = vmatprep.mubr.bf16.mxu0 %v193
  %259 = vmatmul.mubr.bf16.gmra.mxu0 %v111
  %v260 = vpop.f32.mrf.mxu0
  %v261 = vadd.f32 %v57, %v260
  %v262 = vpop.f32.mrf.mxu0
  %v263 = vpop.f32.mrf.mxu0
  %v264 = vadd.f32 %v57, %v263
  %v265 = vpop.f32.mrf.mxu0
  %266 = vmatprep.mubr.bf16.mxu0 %v196
  %267 = vmatmul.mubr.bf16.gmra.mxu0 %v113
  %v268 = vpop.f32.mrf.mxu0
  %v269 = vadd.f32 %v57, %v268
  %v270 = vpop.f32.mrf.mxu0
  %v271 = vpop.f32.mrf.mxu0
  %v272 = vadd.f32 %v57, %v271
  %v273 = vpop.f32.mrf.mxu0
  %274 = vmatprep.mubr.bf16.mxu0 %v199
  %275 = vmatmul.mubr.bf16.gmra.mxu0 %v115
  %v276 = vpop.f32.mrf.mxu0
  %v277 = vadd.f32 %v57, %v276
  %v278 = vpop.f32.mrf.mxu0
  %v279 = vpop.f32.mrf.mxu0
  %v280 = vadd.f32 %v57, %v279
  %v281 = vpop.f32.mrf.mxu0
  %282 = vmatprep.mubr.bf16.mxu0 %v202
  %283 = vmatmul.mubr.bf16.gmra.mxu0 %v117
  %v284 = vpop.f32.mrf.mxu0
  %v285 = vadd.f32 %v57, %v284
  %v286 = vpop.f32.mrf.mxu0
  %v287 = vpop.f32.mrf.mxu0
  %v288 = vadd.f32 %v57, %v287
  %v289 = vpop.f32.mrf.mxu0
  %290 = vmatprep.mubr.bf16.mxu0 %v205
  %291 = vmatmul.mubr.bf16.gmra.mxu0 %v119
  %v292 = vpop.f32.mrf.mxu0
  %v293 = vadd.f32 %v57, %v292
  %v294 = vpop.f32.mrf.mxu0
  %v295 = vpop.f32.mrf.mxu0
  %v296 = vadd.f32 %v57, %v295
  %v297 = vpop.f32.mrf.mxu0
  %298 = vmatprep.mubr.bf16.mxu0 %v208
  %299 = vmatmul.mubr.bf16.gmra.mxu0 %v121
  %v300 = vpop.f32.mrf.mxu0
  %v301 = vadd.f32 %v57, %v300
  %v302 = vpop.f32.mrf.mxu0
  %v303 = vpop.f32.mrf.mxu0
  %v304 = vadd.f32 %v57, %v303
  %v305 = vpop.f32.mrf.mxu0
  %306 = vdwg.mxu0
  %v307 = vmul.f32 %v245, 0.2
  %v308 = vmul.f32 %v248, 0.2
  %v309 = vmul.f32 %v253, 0.2
  %v310 = vmul.f32 %v256, 0.2
  %v311 = vmul.f32 %v261, 0.2
  %v312 = vmul.f32 %v264, 0.2
  %v313 = vmul.f32 %v269, 0.2
  %v314 = vmul.f32 %v272, 0.2
  %v315 = vmul.f32 %v277, 0.2
  %v316 = vmul.f32 %v280, 0.2
  %v317 = vmul.f32 %v285, 0.2
  %v318 = vmul.f32 %v288, 0.2
  %v319 = vmul.f32 %v293, 0.2
  %v320 = vmul.f32 %v296, 0.2
  %v321 = vmul.f32 %v301, 0.2
  %v322 = vmul.f32 %v304, 0.2
  %v323 = vmax.f32 %v245, %v307
  %v324 = vmax.f32 %v248, %v308
  %v325 = vmax.f32 %v253, %v309
  %v326 = vmax.f32 %v256, %v310
  %v327 = vmax.f32 %v261, %v311
  %v328 = vmax.f32 %v264, %v312
  %v329 = vmax.f32 %v269, %v313
  %v330 = vmax.f32 %v272, %v314
  %v331 = vmax.f32 %v277, %v315
  %v332 = vmax.f32 %v280, %v316
  %v333 = vmax.f32 %v285, %v317
  %v334 = vmax.f32 %v288, %v318
  %v335 = vmax.f32 %v293, %v319
  %v336 = vmax.f32 %v296, %v320
  %v337 = vmax.f32 %v301, %v321
  %v338 = vmax.f32 %v304, %v322
  %v339 = vld [vmem:[%s3] sm:$0x1]
  %v341 = vlaneseq
  %v342 = vshrl.u32 %v341, 7
  %v343 = vsub.s32 0, %v342
  %v344 = vrot.slane %v339, %v343
  %v346 = vadd.f32 %v323, %v344
  %v347 = vadd.f32 %v324, %v344
  %v348 = vadd.f32 %v325, %v344
  %v349 = vadd.f32 %v326, %v344
  %v350 = vadd.f32 %v327, %v344
  %v351 = vadd.f32 %v328, %v344
  %v352 = vadd.f32 %v329, %v344
  %v353 = vadd.f32 %v330, %v344
  %v354 = vadd.f32 %v331, %v344
  %v355 = vadd.f32 %v332, %v344
  %v356 = vadd.f32 %v333, %v344
  %v357 = vadd.f32 %v334, %v344
  %v358 = vadd.f32 %v335, %v344
  %v359 = vadd.f32 %v336, %v344
  %v360 = vadd.f32 %v337, %v344
  %v361 = vadd.f32 %v338, %v344
  %v362 = vpack.c.bf16 %v347, %v346
  %v363 = vpack.c.bf16 %v349, %v348
  %v364 = vpack.c.bf16 %v351, %v350
  %v365 = vpack.c.bf16 %v353, %v352
  %v366 = vpack.c.bf16 %v355, %v354
  %v367 = vpack.c.bf16 %v357, %v356
  %v368 = vpack.c.bf16 %v359, %v358
  %v369 = vpack.c.bf16 %v361, %v360
  %v378 = vunpack.c.l.b16 %v362
  %v379 = vunpack.c.h.b16 %v362
  %v380 = vunpack.c.l.b16 %v363
  %v381 = vunpack.c.h.b16 %v363
  %v382 = vunpack.c.l.b16 %v364
  %v383 = vunpack.c.h.b16 %v364
  %v384 = vunpack.c.l.b16 %v365
  %v385 = vunpack.c.h.b16 %v365
  %v386 = vunpack.c.l.b16 %v366
  %v387 = vunpack.c.h.b16 %v366
  %v388 = vunpack.c.l.b16 %v367
  %v389 = vunpack.c.h.b16 %v367
  %v390 = vunpack.c.l.b16 %v368
  %v391 = vunpack.c.h.b16 %v368
  %v392 = vunpack.c.l.b16 %v369
  %v393 = vunpack.c.h.b16 %v369
  %v394 = vpack.c.b16 %v378, %v378
  %v395 = vpack.c.b16 %v379, %v379
  %v396 = vpack.c.b16 %v380, %v380
  %v397 = vpack.c.b16 %v381, %v381
  %v398 = vpack.c.b16 %v382, %v382
  %v399 = vpack.c.b16 %v383, %v383
  %v400 = vpack.c.b16 %v384, %v384
  %v401 = vpack.c.b16 %v385, %v385
  %v402 = vpack.c.b16 %v386, %v386
  %v403 = vpack.c.b16 %v387, %v387
  %v404 = vpack.c.b16 %v388, %v388
  %v405 = vpack.c.b16 %v389, %v389
  %v406 = vpack.c.b16 %v390, %v390
  %v407 = vpack.c.b16 %v391, %v391
  %v408 = vpack.c.b16 %v392, %v392
  %v409 = vpack.c.b16 %v393, %v393
  %426 = vst [vmem:[%s4] sm:$0xf] %v394
  %427 = vst [vmem:[%s4 + $0x4] sm:$0xf] %v395
  %428 = vst [vmem:[%s4 + $0x8] sm:$0xf] %v396
  %429 = vst [vmem:[%s4 + $0xc] sm:$0xf] %v397
  %430 = vst [vmem:[%s4 + $0x10] sm:$0xf] %v398
  %431 = vst [vmem:[%s4 + $0x14] sm:$0xf] %v399
  %432 = vst [vmem:[%s4 + $0x18] sm:$0xf] %v400
  %433 = vst [vmem:[%s4 + $0x1c] sm:$0xf] %v401
  %434 = vst [vmem:[%s4 + $0x20] sm:$0xf] %v402
  %435 = vst [vmem:[%s4 + $0x24] sm:$0xf] %v403
  %436 = vst [vmem:[%s4 + $0x28] sm:$0xf] %v404
  %437 = vst [vmem:[%s4 + $0x2c] sm:$0xf] %v405
  %438 = vst [vmem:[%s4 + $0x30] sm:$0xf] %v406
  %439 = vst [vmem:[%s4 + $0x34] sm:$0xf] %v407
  %440 = vst [vmem:[%s4 + $0x38] sm:$0xf] %v408
  %441 = vst [vmem:[%s4 + $0x3c] sm:$0xf] %v409
  // Predicated region
  $region18: #{discriminator_forward.5} parent=0 // pred_check
    _
  $region19: #{discriminator_forward.5} parent=0 // pred_check_branch
    %443 = sbr.rel (0) target = $region21
  $region20: #{discriminator_forward.5} parent=0 // pred_region
    _
  $region21: #{discriminator_forward.5} parent=0 // pred_fallthru
    _
  // Predicated region
  $region22: #{discriminator_forward.5} parent=0 // pred_check
    _
  $region23: #{discriminator_forward.5} parent=0 // pred_check_branch
    %445 = sbr.rel (0) target = $region25
  $region24: #{discriminator_forward.5} parent=0 // pred_region
    _
  $region25: #{discriminator_forward.5} parent=0 // pred_fallthru
    _

// kernel: discriminator_forward.6
$region0: #{discriminator_forward.6}
  #allocation0 [shape = 'u32[]', space=smem, size = 0x4, offset = 0x4, fixed_abs, tag = 'smem constant byte address 0x4 - core index']
  #allocation1 [shape = 'u32[144,128]{1,0:T(1,128)}', space=vmem, size = 0x12000, scoped, tag = 'internal scratch']
  %s0 = inlined_call_operand.vmem [shape: bf16[32,288], index: 0, kind: input, shape index: {}]
  %s1 = inlined_call_operand.vmem [shape: bf16[288,128], index: 1, kind: input, shape index: {}]
  %s2 = inlined_call_operand.vmem [shape: f32[1,128], index: 2, kind: input, shape index: {}]
  %s3 = inlined_call_operand.vmem [shape: f32[1,128], index: 3, kind: input, shape index: {}]
  %s4 = inlined_call_operand.vmem [shape: bf16[32,128], index: 4, kind: output, shape index: {}]
  %s5 = sld [smem:[#allocation0]]
  $region26: #{discriminator_forward.6} parent=0
    _
  %s7 = ssub.s32 1, %s5
  %s8 = scalar_select 0, %s7, %s5
  // Predicated region
  $region2: #{discriminator_forward.6} parent=0 // pred_check
    _
  $region3: #{discriminator_forward.6} parent=0 // pred_check_branch
    %10 = sbr.rel (0) target = $region5
  $region4: #{discriminator_forward.6} parent=0 // pred_region
    _
  $region5: #{discriminator_forward.6} parent=0 // pred_fallthru
    _
  // Predicated region
  $region6: #{discriminator_forward.6} parent=0 // pred_check
    _
  $region7: #{discriminator_forward.6} parent=0 // pred_check_branch
    %12 = sbr.rel (0) target = $region9
  $region8: #{discriminator_forward.6} parent=0 // pred_region
    _
  $region9: #{discriminator_forward.6} parent=0 // pred_fallthru
    _
  // Predicated region
  $region10: #{discriminator_forward.6} parent=0 // pred_check
    _
  $region11: #{discriminator_forward.6} parent=0 // pred_check_branch
    %14 = sbr.rel (0) target = $region13
  $region12: #{discriminator_forward.6} parent=0 // pred_region
    _
  $region13: #{discriminator_forward.6} parent=0 // pred_fallthru
    _
  // Predicated region
  $region14: #{discriminator_forward.6} parent=0 // pred_check
    _
  $region15: #{discriminator_forward.6} parent=0 // pred_check_branch
    %16 = sbr.rel (0) target = $region17
  $region16: #{discriminator_forward.6} parent=0 // pred_region
    _
  $region17: #{discriminator_forward.6} parent=0 // pred_fallthru
    _
  %v18 = vld [vmem:[%s0] sm:$0xff]
  %v19 = vld [vmem:[%s0 + $0x8] sm:$0xf]
  %v20 = vld [vmem:[%s0 + $0xc] sm:$0xff]
  %v21 = vld [vmem:[%s0 + $0x14] sm:$0xf]
  %v22 = vld [vmem:[%s0 + $0x18] sm:$0xff]
  %v23 = vld [vmem:[%s0 + $0x20] sm:$0xf]
  %v24 = vld [vmem:[%s0 + $0x24] sm:$0xff]
  %v25 = vld [vmem:[%s0 + $0x2c] sm:$0xf]
  %v26 = vld [vmem:[%s1] sm:$0xf]
  %v27 = vld [vmem:[%s1 + $0x4] sm:$0xf]
  %v28 = vld [vmem:[%s1 + $0x8] sm:$0xf]
  %v29 = vld [vmem:[%s1 + $0xc] sm:$0xf]
  %v30 = vld [vmem:[%s1 + $0x10] sm:$0xf]
  %v31 = vld [vmem:[%s1 + $0x14] sm:$0xf]
  %v32 = vld [vmem:[%s1 + $0x18] sm:$0xf]
  %v33 = vld [vmem:[%s1 + $0x1c] sm:$0xf]
  %v34 = vld [vmem:[%s1 + $0x20] sm:$0xf]
  %v35 = vld [vmem:[%s1 + $0x24] sm:$0xf]
  %v36 = vld [vmem:[%s1 + $0x28] sm:$0xf]
  %v37 = vld [vmem:[%s1 + $0x2c] sm:$0xf]
  %v38 = vld [vmem:[%s1 + $0x30] sm:$0xf]
  %v39 = vld [vmem:[%s1 + $0x34] sm:$0xf]
  %v40 = vld [vmem:[%s1 + $0x38] sm:$0xf]
  %v41 = vld [vmem:[%s1 + $0x3c] sm:$0xf]
  %v42 = vld [vmem:[%s1 + $0x40] sm:$0xf]
  %v43 = vld [vmem:[%s1 + $0x44] sm:$0xf]
  %v44 = vld [vmem:[%s1 + $0x48] sm:$0xf]
  %v45 = vld [vmem:[%s1 + $0x4c] sm:$0xf]
  %v46 = vld [vmem:[%s1 + $0x50] sm:$0xf]
  %v47 = vld [vmem:[%s1 + $0x54] sm:$0xf]
  %v48 = vld [vmem:[%s1 + $0x58] sm:$0xf]
  %v49 = vld [vmem:[%s1 + $0x5c] sm:$0xf]
  %v50 = vld [vmem:[%s1 + $0x60] sm:$0xf]
  %v51 = vld [vmem:[%s1 + $0x64] sm:$0xf]
  %v52 = vld [vmem:[%s1 + $0x68] sm:$0xf]
  %v53 = vld [vmem:[%s1 + $0x6c] sm:$0xf]
  %v54 = vld [vmem:[%s1 + $0x70] sm:$0xf]
  %v55 = vld [vmem:[%s1 + $0x74] sm:$0xf]
  %v56 = vld [vmem:[%s1 + $0x78] sm:$0xf]
  %v57 = vld [vmem:[%s1 + $0x7c] sm:$0xf]
  %v58 = vld [vmem:[%s1 + $0x80] sm:$0xf]
  %v59 = vld [vmem:[%s1 + $0x84] sm:$0xf]
  %v60 = vld [vmem:[%s1 + $0x88] sm:$0xf]
  %v61 = vld [vmem:[%s1 + $0x8c] sm:$0xf]
  %v62 = vld [vmem:[%s2] sm:$0x1]
  %v64 = vlaneseq
  %v65 = vshrl.u32 %v64, 7
  %v66 = vsub.s32 0, %v65
  %v67 = vrot.slane %v62, %v66
  %v77 = vunpack.c.l.b16 %v18
  %v78 = vunpack.c.h.b16 %v18
  %v79 = vunpack.c.l.b16 %v19
  %v80 = vunpack.c.l.b16 %v20
  %v81 = vunpack.c.h.b16 %v20
  %v82 = vunpack.c.l.b16 %v21
  %v83 = vunpack.c.l.b16 %v22
  %v84 = vunpack.c.h.b16 %v22
  %v85 = vunpack.c.l.b16 %v23
  %v86 = vunpack.c.l.b16 %v24
  %v87 = vunpack.c.h.b16 %v24
  %v88 = vunpack.c.l.b16 %v25
  %v89 = vpack.c.b16 %v80, %v77
  %v90 = vpack.c.b16 %v81, %v78
  %v91 = vpack.c.b16 %v82, %v79
  %v92 = vpack.c.b16 %v86, %v83
  %v93 = vpack.c.b16 %v87, %v84
  %v94 = vpack.c.b16 %v88, %v85
  %v135 = vunpack.c.l.b16 %v26
  %v136 = vunpack.c.l.b16 %v27
  %v137 = vunpack.c.l.b16 %v28
  %v138 = vunpack.c.l.b16 %v29
  %v139 = vunpack.c.l.b16 %v30
  %v140 = vunpack.c.l.b16 %v31
  %v141 = vunpack.c.l.b16 %v32
  %v142 = vunpack.c.l.b16 %v33
  %v143 = vunpack.c.l.b16 %v34
  %v144 = vunpack.c.l.b16 %v35
  %v145 = vunpack.c.l.b16 %v36
  %v146 = vunpack.c.l.b16 %v37
  %v147 = vunpack.c.l.b16 %v38
  %v148 = vunpack.c.l.b16 %v39
  %v149 = vunpack.c.l.b16 %v40
  %v150 = vunpack.c.l.b16 %v41
  %v151 = vunpack.c.l.b16 %v42
  %v152 = vunpack.c.l.b16 %v43
  %v153 = vunpack.c.l.b16 %v44
  %v154 = vunpack.c.l.b16 %v45
  %v155 = vunpack.c.l.b16 %v46
  %v156 = vunpack.c.l.b16 %v47
  %v157 = vunpack.c.l.b16 %v48
  %v158 = vunpack.c.l.b16 %v49
  %v159 = vunpack.c.l.b16 %v50
  %v160 = vunpack.c.l.b16 %v51
  %v161 = vunpack.c.l.b16 %v52
  %v162 = vunpack.c.l.b16 %v53
  %v163 = vunpack.c.l.b16 %v54
  %v164 = vunpack.c.l.b16 %v55
  %v165 = vunpack.c.l.b16 %v56
  %v166 = vunpack.c.l.b16 %v57
  %v167 = vunpack.c.l.b16 %v58
  %v168 = vunpack.c.l.b16 %v59
  %v169 = vunpack.c.l.b16 %v60
  %v170 = vunpack.c.l.b16 %v61
  %v171 = vpack.c.b16 %v136, %v135
  %v172 = vpack.c.b16 %v138, %v137
  %v173 = vpack.c.b16 %v140, %v139
  %v174 = vpack.c.b16 %v142, %v141
  %v175 = vpack.c.b16 %v144, %v143
  %v176 = vpack.c.b16 %v146, %v145
  %v177 = vpack.c.b16 %v148, %v147
  %v178 = vpack.c.b16 %v150, %v149
  %v179 = vpack.c.b16 %v152, %v151
  %v180 = vpack.c.b16 %v154, %v153
  %v181 = vpack.c.b16 %v156, %v155
  %v182 = vpack.c.b16 %v158, %v157
  %v183 = vpack.c.b16 %v160, %v159
  %v184 = vpack.c.b16 %v162, %v161
  %v185 = vpack.c.b16 %v164, %v163
  %v186 = vpack.c.b16 %v166, %v165
  %v187 = vpack.c.b16 %v168, %v167
  %v188 = vpack.c.b16 %v170, %v169
  %vm207 = vcmask 261120
  %v209 = vsel %vm207, %v91, 0
  %v212 = vsel %vm207, %v94, 0
  %214 = vmatprep.subr.bf16.mxu0 0
  %215 = vmatpush1.bf16.msra.mxu0 %v178
  %216 = vmatprep.subr.bf16.mxu0 0
  %217 = vmatpush1.bf16.msra.mxu0 %v177
  %218 = vmatprep.subr.bf16.mxu0 0
  %219 = vmatpush1.bf16.msra.mxu0 %v176
  %220 = vmatprep.subr.bf16.mxu0 0
  %221 = vmatpush1.bf16.msra.mxu0 %v175
  %222 = vmatprep.subr.bf16.mxu0 0
  %223 = vmatpush1.bf16.msra.mxu0 %v174
  %224 = vmatprep.subr.bf16.mxu0 0
  %225 = vmatpush1.bf16.msra.mxu0 %v173
  %226 = vmatprep.subr.bf16.mxu0 0
  %227 = vmatpush1.bf16.msra.mxu0 %v172
  %228 = vmatprep.subr.bf16.mxu0 0
  %229 = vmatpush1.bf16.msra.mxu0 %v171
  %230 = vmatprep.subr.bf16.mxu0 0
  %231 = vmatpush2.bf16.msra.mxu0 %v186
  %232 = vmatprep.subr.bf16.mxu0 0
  %233 = vmatpush2.bf16.msra.mxu0 %v185
  %234 = vmatprep.subr.bf16.mxu0 0
  %235 = vmatpush2.bf16.msra.mxu0 %v184
  %236 = vmatprep.subr.bf16.mxu0 0
  %237 = vmatpush2.bf16.msra.mxu0 %v183
  %238 = vmatprep.subr.bf16.mxu0 0
  %239 = vmatpush2.bf16.msra.mxu0 %v182
  %240 = vmatprep.subr.bf16.mxu0 0
  %241 = vmatpush2.bf16.msra.mxu0 %v181
  %242 = vmatprep.subr.bf16.mxu0 0
  %243 = vmatpush2.bf16.msra.mxu0 %v180
  %244 = vmatprep.subr.bf16.mxu0 0
  %245 = vmatpush2.bf16.msra.mxu0 %v179
  %246 = vmatprep.mubr.bf16.mxu0 %v90
  %247 = vmatmul.mubr.bf16.gmra.mxu0 %v89
  %v248 = vpop.f32.mrf.mxu0
  %v249 = vadd.f32 %v67, %v248
  %v250 = vpop.f32.mrf.mxu0
  %v251 = vpop.f32.mrf.mxu0
  %v252 = vadd.f32 %v67, %v251
  %v253 = vpop.f32.mrf.mxu0
  %254 = vmatprep.mubr.bf16.mxu0 %v93
  %255 = vmatmul.mubr.bf16.gmra.mxu0 %v92
  %v256 = vpop.f32.mrf.mxu0
  %v257 = vadd.f32 %v67, %v256
  %v258 = vpop.f32.mrf.mxu0
  %v259 = vpop.f32.mrf.mxu0
  %v260 = vadd.f32 %v67, %v259
  %v261 = vpop.f32.mrf.mxu0
  %262 = vdwg.mxu0
  %263 = vmatprep.subr.bf16.mxu0 0
  %264 = vmatpush1.bf16.msra.mxu0 0
  %265 = vmatprep.subr.bf16.mxu0 0
  %266 = vmatpush1.bf16.msra.mxu0 0
  %267 = vmatprep.subr.bf16.mxu0 0
  %268 = vmatpush1.bf16.msra.mxu0 0
  %269 = vmatprep.subr.bf16.mxu0 0
  %270 = vmatpush1.bf16.msra.mxu0 0
  %271 = vmatprep.subr.bf16.mxu0 0
  %272 = vmatpush1.bf16.msra.mxu0 0
  %273 = vmatprep.subr.bf16.mxu0 0
  %274 = vmatpush1.bf16.msra.mxu0 0
  %275 = vmatprep.subr.bf16.mxu0 0
  %276 = vmatpush1.bf16.msra.mxu0 %v188
  %277 = vmatprep.subr.bf16.mxu0 0
  %278 = vmatpush1.bf16.msra.mxu0 %v187
  %279 = vmatprep.subr.bf16.mxu0 0
  %280 = vmatpush2.bf16.msra.mxu0 0
  %281 = vmatprep.subr.bf16.mxu0 0
  %282 = vmatpush2.bf16.msra.mxu0 0
  %283 = vmatprep.subr.bf16.mxu0 0
  %284 = vmatpush2.bf16.msra.mxu0 0
  %285 = vmatprep.subr.bf16.mxu0 0
  %286 = vmatpush2.bf16.msra.mxu0 0
  %287 = vmatprep.subr.bf16.mxu0 0
  %288 = vmatpush2.bf16.msra.mxu0 0
  %289 = vmatprep.subr.bf16.mxu0 0
  %290 = vmatpush2.bf16.msra.mxu0 0
  %291 = vmatprep.subr.bf16.mxu0 0
  %292 = vmatpush2.bf16.msra.mxu0 0
  %293 = vmatprep.subr.bf16.mxu0 0
  %294 = vmatpush2.bf16.msra.mxu0 0
  %295 = vmatprep.mubr.bf16.mxu0 0
  %296 = vmatmul.mubr.bf16.gmra.mxu0 %v209
  %v297 = vpop.f32.mrf.mxu0
  %v298 = vadd.f32 %v249, %v297
  %v299 = vpop.f32.mrf.mxu0
  %v300 = vpop.f32.mrf.mxu0
  %v301 = vadd.f32 %v252, %v300
  %v302 = vpop.f32.mrf.mxu0
  %303 = vmatprep.mubr.bf16.mxu0 0
  %304 = vmatmul.mubr.bf16.gmra.mxu0 %v212
  %v305 = vpop.f32.mrf.mxu0
  %v306 = vadd.f32 %v257, %v305
  %v307 = vpop.f32.mrf.mxu0
  %v308 = vpop.f32.mrf.mxu0
  %v309 = vadd.f32 %v260, %v308
  %v310 = vpop.f32.mrf.mxu0
  %311 = vdwg.mxu0
  %v312 = vmul.f32 %v298, 0.2
  %v313 = vmul.f32 %v301, 0.2
  %v314 = vmul.f32 %v306, 0.2
  %v315 = vmul.f32 %v309, 0.2
  %v316 = vmax.f32 %v298, %v312
  %v317 = vmax.f32 %v301, %v313
  %v318 = vmax.f32 %v306, %v314
  %v319 = vmax.f32 %v309, %v315
  %v320 = vld [vmem:[%s3] sm:$0x1]
  %v322 = vlaneseq
  %v323 = vshrl.u32 %v322, 7
  %v324 = vsub.s32 0, %v323
  %v325 = vrot.slane %v320, %v324
  %v327 = vadd.f32 %v316, %v325
  %v328 = vadd.f32 %v317, %v325
  %v329 = vadd.f32 %v318, %v325
  %v330 = vadd.f32 %v319, %v325
  %v331 = vpack.c.bf16 %v328, %v327
  %v332 = vpack.c.bf16 %v330, %v329
  %v335 = vunpack.c.l.b16 %v331
  %v336 = vunpack.c.h.b16 %v331
  %v337 = vunpack.c.l.b16 %v332
  %v338 = vunpack.c.h.b16 %v332
  %v339 = vpack.c.b16 %v335, %v335
  %v340 = vpack.c.b16 %v336, %v336
  %v341 = vpack.c.b16 %v337, %v337
  %v342 = vpack.c.b16 %v338, %v338
  %347 = vst [vmem:[%s4] sm:$0xf] %v339
  %348 = vst [vmem:[%s4 + $0x4] sm:$0xf] %v340
  %349 = vst [vmem:[%s4 + $0x8] sm:$0xf] %v341
  %350 = vst [vmem:[%s4 + $0xc] sm:$0xf] %v342
  // Predicated region
  $region18: #{discriminator_forward.6} parent=0 // pred_check
    _
  $region19: #{discriminator_forward.6} parent=0 // pred_check_branch
    %352 = sbr.rel (0) target = $region21
  $region20: #{discriminator_forward.6} parent=0 // pred_region
    _
  $region21: #{discriminator_forward.6} parent=0 // pred_fallthru
    _
  // Predicated region
  $region22: #{discriminator_forward.6} parent=0 // pred_check
    _
  $region23: #{discriminator_forward.6} parent=0 // pred_check_branch
    %354 = sbr.rel (0) target = $region25
  $region24: #{discriminator_forward.6} parent=0 // pred_region
    _
  $region25: #{discriminator_forward.6} parent=0 // pred_fallthru
    _

// kernel: discriminator_forward.7
$region0: #{discriminator_forward.7}
  #allocation0 [shape = 'u32[]', space=smem, size = 0x4, offset = 0x4, fixed_abs, tag = 'smem constant byte address 0x4 - core index']
  #allocation1 [shape = 'u32[144,128]{1,0:T(1,128)}', space=vmem, size = 0x12000, scoped, tag = 'internal scratch']
  %s0 = inlined_call_operand.vmem [shape: bf16[4,8,576], index: 0, kind: input, shape index: {}]
  %s1 = inlined_call_operand.vmem [shape: bf16[576,128], index: 1, kind: input, shape index: {}]
  %s2 = inlined_call_operand.vmem [shape: f32[1,128], index: 2, kind: input, shape index: {}]
  %s3 = inlined_call_operand.vmem [shape: f32[1,128], index: 3, kind: input, shape index: {}]
  %s4 = inlined_call_operand.vmem [shape: bf16[4,128,128], index: 4, kind: input, shape index: {}]
  %s5 = inlined_call_operand.vmem [shape: f32[1,128], index: 5, kind: input, shape index: {}]
  %s6 = inlined_call_operand.vmem [shape: f32[8,128], index: 6, kind: output, shape index: {}]
  %s7 = sld [smem:[#allocation0]]
  $region34: #{discriminator_forward.7} parent=0
    _
  %s9 = ssub.s32 1, %s7
  %s10 = scalar_select 0, %s9, %s7
  // Predicated region
  $region2: #{discriminator_forward.7} parent=0 // pred_check
    _
  $region3: #{discriminator_forward.7} parent=0 // pred_check_branch
    %12 = sbr.rel (0) target = $region5
  $region4: #{discriminator_forward.7} parent=0 // pred_region
    _
  $region5: #{discriminator_forward.7} parent=0 // pred_fallthru
    _
  // Predicated region
  $region6: #{discriminator_forward.7} parent=0 // pred_check
    _
  $region7: #{discriminator_forward.7} parent=0 // pred_check_branch
    %14 = sbr.rel (0) target = $region9
  $region8: #{discriminator_forward.7} parent=0 // pred_region
    _
  $region9: #{discriminator_forward.7} parent=0 // pred_fallthru
    _
  // Predicated region
  $region10: #{discriminator_forward.7} parent=0 // pred_check
    _
  $region11: #{discriminator_forward.7} parent=0 // pred_check_branch
    %16 = sbr.rel (0) target = $region13
  $region12: #{discriminator_forward.7} parent=0 // pred_region
    _
  $region13: #{discriminator_forward.7} parent=0 // pred_fallthru
    _
  // Predicated region
  $region14: #{discriminator_forward.7} parent=0 // pred_check
    _
  $region15: #{discriminator_forward.7} parent=0 // pred_check_branch
    %18 = sbr.rel (0) target = $region17
  $region16: #{discriminator_forward.7} parent=0 // pred_region
    _
  $region17: #{discriminator_forward.7} parent=0 // pred_fallthru
    _
  // Predicated region
  $region18: #{discriminator_forward.7} parent=0 // pred_check
    _
  $region19: #{discriminator_forward.7} parent=0 // pred_check_branch
    %20 = sbr.rel (0) target = $region21
  $region20: #{discriminator_forward.7} parent=0 // pred_region
    _
  $region21: #{discriminator_forward.7} parent=0 // pred_fallthru
    _
  // Predicated region
  $region22: #{discriminator_forward.7} parent=0 // pred_check
    _
  $region23: #{discriminator_forward.7} parent=0 // pred_check_branch
    %22 = sbr.rel (0) target = $region25
  $region24: #{discriminator_forward.7} parent=0 // pred_region
    _
  $region25: #{discriminator_forward.7} parent=0 // pred_fallthru
    _
  %v24 = vld [vmem:[%s0] sm:$0xff]
  %v25 = vld [vmem:[%s0 + $0x8] sm:$0xff]
  %v26 = vld [vmem:[%s0 + $0x10] sm:$0xf]
  %v27 = vld [vmem:[%s1] sm:$0xf]
  %v28 = vld [vmem:[%s1 + $0x4] sm:$0xf]
  %v29 = vld [vmem:[%s1 + $0x8] sm:$0xf]
  %v30 = vld [vmem:[%s1 + $0xc] sm:$0xf]
  %v31 = vld [vmem:[%s1 + $0x10] sm:$0xf]
  %v32 = vld [vmem:[%s1 + $0x14] sm:$0xf]
  %v33 = vld [vmem:[%s1 + $0x18] sm:$0xf]
  %v34 = vld [vmem:[%s1 + $0x1c] sm:$0xf]
  %v35 = vld [vmem:[%s1 + $0x20] sm:$0xf]
  %v36 = vld [vmem:[%s1 + $0x24] sm:$0xf]
  %v37 = vld [vmem:[%s1 + $0x28] sm:$0xf]
  %v38 = vld [vmem:[%s1 + $0x2c] sm:$0xf]
  %v39 = vld [vmem:[%s1 + $0x30] sm:$0xf]
  %v40 = vld [vmem:[%s1 + $0x34] sm:$0xf]
  %v41 = vld [vmem:[%s1 + $0x38] sm:$0xf]
  %v42 = vld [vmem:[%s1 + $0x3c] sm:$0xf]
  %v43 = vld [vmem:[%s1 + $0x40] sm:$0xf]
  %v44 = vld [vmem:[%s1 + $0x44] sm:$0xf]
  %v45 = vld [vmem:[%s1 + $0x48] sm:$0xf]
  %v46 = vld [vmem:[%s1 + $0x4c] sm:$0xf]
  %v47 = vld [vmem:[%s1 + $0x50] sm:$0xf]
  %v48 = vld [vmem:[%s1 + $0x54] sm:$0xf]
  %v49 = vld [vmem:[%s1 + $0x58] sm:$0xf]
  %v50 = vld [vmem:[%s1 + $0x5c] sm:$0xf]
  %v51 = vld [vmem:[%s1 + $0x60] sm:$0xf]
  %v52 = vld [vmem:[%s1 + $0x64] sm:$0xf]
  %v53 = vld [vmem:[%s1 + $0x68] sm:$0xf]
  %v54 = vld [vmem:[%s1 + $0x6c] sm:$0xf]
  %v55 = vld [vmem:[%s1 + $0x70] sm:$0xf]
  %v56 = vld [vmem:[%s1 + $0x74] sm:$0xf]
  %v57 = vld [vmem:[%s1 + $0x78] sm:$0xf]
  %v58 = vld [vmem:[%s1 + $0x7c] sm:$0xf]
  %v59 = vld [vmem:[%s1 + $0x80] sm:$0xf]
  %v60 = vld [vmem:[%s1 + $0x84] sm:$0xf]
  %v61 = vld [vmem:[%s1 + $0x88] sm:$0xf]
  %v62 = vld [vmem:[%s1 + $0x8c] sm:$0xf]
  %v63 = vld [vmem:[%s1 + $0x90] sm:$0xf]
  %v64 = vld [vmem:[%s1 + $0x94] sm:$0xf]
  %v65 = vld [vmem:[%s1 + $0x98] sm:$0xf]
  %v66 = vld [vmem:[%s1 + $0x9c] sm:$0xf]
  %v67 = vld [vmem:[%s1 + $0xa0] sm:$0xf]
  %v68 = vld [vmem:[%s1 + $0xa4] sm:$0xf]
  %v69 = vld [vmem:[%s1 + $0xa8] sm:$0xf]
  %v70 = vld [vmem:[%s1 + $0xac] sm:$0xf]
  %v71 = vld [vmem:[%s1 + $0xb0] sm:$0xf]
  %v72 = vld [vmem:[%s1 + $0xb4] sm:$0xf]
  %v73 = vld [vmem:[%s1 + $0xb8] sm:$0xf]
  %v74 = vld [vmem:[%s1 + $0xbc] sm:$0xf]
  %v75 = vld [vmem:[%s1 + $0xc0] sm:$0xf]
  %v76 = vld [vmem:[%s1 + $0xc4] sm:$0xf]
  %v77 = vld [vmem:[%s1 + $0xc8] sm:$0xf]
  %v78 = vld [vmem:[%s1 + $0xcc] sm:$0xf]
  %v79 = vld [vmem:[%s1 + $0xd0] sm:$0xf]
  %v80 = vld [vmem:[%s1 + $0xd4] sm:$0xf]
  %v81 = vld [vmem:[%s1 + $0xd8] sm:$0xf]
  %v82 = vld [vmem:[%s1 + $0xdc] sm:$0xf]
  %v83 = vld [vmem:[%s1 + $0xe0] sm:$0xf]
  %v84 = vld [vmem:[%s1 + $0xe4] sm:$0xf]
  %v85 = vld [vmem:[%s1 + $0xe8] sm:$0xf]
  %v86 = vld [vmem:[%s1 + $0xec] sm:$0xf]
  %v87 = vld [vmem:[%s1 + $0xf0] sm:$0xf]
  %v88 = vld [vmem:[%s1 + $0xf4] sm:$0xf]
  %v89 = vld [vmem:[%s1 + $0xf8] sm:$0xf]
  %v90 = vld [vmem:[%s1 + $0xfc] sm:$0xf]
  %v91 = vld [vmem:[%s1 + $0x100] sm:$0xf]
  %v92 = vld [vmem:[%s1 + $0x104] sm:$0xf]
  %v93 = vld [vmem:[%s1 + $0x108] sm:$0xf]
  %v94 = vld [vmem:[%s1 + $0x10c] sm:$0xf]
  %v95 = vld [vmem:[%s1 + $0x110] sm:$0xf]
  %v96 = vld [vmem:[%s1 + $0x114] sm:$0xf]
  %v97 = vld [vmem:[%s1 + $0x118] sm:$0xf]
  %v98 = vld [vmem:[%s1 + $0x11c] sm:$0xf]
  %v99 = vld [vmem:[%s2] sm:$0x1]
  %v101 = vlaneseq
  %v102 = vshrl.u32 %v101, 7
  %v103 = vsub.s32 0, %v102
  %v104 = vrot.slane %v99, %v103
  %v109 = vunpack.c.l.b16 %v24
  %v110 = vunpack.c.h.b16 %v24
  %v111 = vunpack.c.l.b16 %v25
  %v112 = vunpack.c.h.b16 %v25
  %v113 = vunpack.c.l.b16 %v26
  %v114 = vpack.c.b16 %v109, %v109
  %v115 = vpack.c.b16 %v110, %v110
  %v116 = vpack.c.b16 %v111, %v111
  %v117 = vpack.c.b16 %v112, %v112
  %v118 = vpack.c.b16 %v113, %v113
  %v195 = vunpack.c.l.b16 %v27
  %v196 = vunpack.c.l.b16 %v28
  %v197 = vunpack.c.l.b16 %v29
  %v198 = vunpack.c.l.b16 %v30
  %v199 = vunpack.c.l.b16 %v31
  %v200 = vunpack.c.l.b16 %v32
  %v201 = vunpack.c.l.b16 %v33
  %v202 = vunpack.c.l.b16 %v34
  %v203 = vunpack.c.l.b16 %v35
  %v204 = vunpack.c.l.b16 %v36
  %v205 = vunpack.c.l.b16 %v37
  %v206 = vunpack.c.l.b16 %v38
  %v207 = vunpack.c.l.b16 %v39
  %v208 = vunpack.c.l.b16 %v40
  %v209 = vunpack.c.l.b16 %v41
  %v210 = vunpack.c.l.b16 %v42
  %v211 = vunpack.c.l.b16 %v43
  %v212 = vunpack.c.l.b16 %v44
  %v213 = vunpack.c.l.b16 %v45
  %v214 = vunpack.c.l.b16 %v46
  %v215 = vunpack.c.l.b16 %v47
  %v216 = vunpack.c.l.b16 %v48
  %v217 = vunpack.c.l.b16 %v49
  %v218 = vunpack.c.l.b16 %v50
  %v219 = vunpack.c.l.b16 %v51
  %v220 = vunpack.c.l.b16 %v52
  %v221 = vunpack.c.l.b16 %v53
  %v222 = vunpack.c.l.b16 %v54
  %v223 = vunpack.c.l.b16 %v55
  %v224 = vunpack.c.l.b16 %v56
  %v225 = vunpack.c.l.b16 %v57
  %v226 = vunpack.c.l.b16 %v58
  %v227 = vunpack.c.l.b16 %v59
  %v228 = vunpack.c.l.b16 %v60
  %v229 = vunpack.c.l.b16 %v61
  %v230 = vunpack.c.l.b16 %v62
  %v231 = vunpack.c.l.b16 %v63
  %v232 = vunpack.c.l.b16 %v64
  %v233 = vunpack.c.l.b16 %v65
  %v234 = vunpack.c.l.b16 %v66
  %v235 = vunpack.c.l.b16 %v67
  %v236 = vunpack.c.l.b16 %v68
  %v237 = vunpack.c.l.b16 %v69
  %v238 = vunpack.c.l.b16 %v70
  %v239 = vunpack.c.l.b16 %v71
  %v240 = vunpack.c.l.b16 %v72
  %v241 = vunpack.c.l.b16 %v73
  %v242 = vunpack.c.l.b16 %v74
  %v243 = vunpack.c.l.b16 %v75
  %v244 = vunpack.c.l.b16 %v76
  %v245 = vunpack.c.l.b16 %v77
  %v246 = vunpack.c.l.b16 %v78
  %v247 = vunpack.c.l.b16 %v79
  %v248 = vunpack.c.l.b16 %v80
  %v249 = vunpack.c.l.b16 %v81
  %v250 = vunpack.c.l.b16 %v82
  %v251 = vunpack.c.l.b16 %v83
  %v252 = vunpack.c.l.b16 %v84
  %v253 = vunpack.c.l.b16 %v85
  %v254 = vunpack.c.l.b16 %v86
  %v255 = vunpack.c.l.b16 %v87
  %v256 = vunpack.c.l.b16 %v88
  %v257 = vunpack.c.l.b16 %v89
  %v258 = vunpack.c.l.b16 %v90
  %v259 = vunpack.c.l.b16 %v91
  %v260 = vunpack.c.l.b16 %v92
  %v261 = vunpack.c.l.b16 %v93
  %v262 = vunpack.c.l.b16 %v94
  %v263 = vunpack.c.l.b16 %v95
  %v264 = vunpack.c.l.b16 %v96
  %v265 = vunpack.c.l.b16 %v97
  %v266 = vunpack.c.l.b16 %v98
  %v267 = vpack.c.b16 %v196, %v195
  %v268 = vpack.c.b16 %v198, %v197
  %v269 = vpack.c.b16 %v200, %v199
  %v270 = vpack.c.b16 %v202, %v201
  %v271 = vpack.c.b16 %v204, %v203
  %v272 = vpack.c.b16 %v206, %v205
  %v273 = vpack.c.b16 %v208, %v207
  %v274 = vpack.c.b16 %v210, %v209
  %v275 = vpack.c.b16 %v212, %v211
  %v276 = vpack.c.b16 %v214, %v213
  %v277 = vpack.c.b16 %v216, %v215
  %v278 = vpack.c.b16 %v218, %v217
  %v279 = vpack.c.b16 %v220, %v219
  %v280 = vpack.c.b16 %v222, %v221
  %v281 = vpack.c.b16 %v224, %v223
  %v282 = vpack.c.b16 %v226, %v225
  %v283 = vpack.c.b16 %v228, %v227
  %v284 = vpack.c.b16 %v230, %v229
  %v285 = vpack.c.b16 %v232, %v231
  %v286 = vpack.c.b16 %v234, %v233
  %v287 = vpack.c.b16 %v236, %v235
  %v288 = vpack.c.b16 %v238, %v237
  %v289 = vpack.c.b16 %v240, %v239
  %v290 = vpack.c.b16 %v242, %v241
  %v291 = vpack.c.b16 %v244, %v243
  %v292 = vpack.c.b16 %v246, %v245
  %v293 = vpack.c.b16 %v248, %v247
  %v294 = vpack.c.b16 %v250, %v249
  %v295 = vpack.c.b16 %v252, %v251
  %v296 = vpack.c.b16 %v254, %v253
  %v297 = vpack.c.b16 %v256, %v255
  %v298 = vpack.c.b16 %v258, %v257
  %v299 = vpack.c.b16 %v260, %v259
  %v300 = vpack.c.b16 %v262, %v261
  %v301 = vpack.c.b16 %v264, %v263
  %v302 = vpack.c.b16 %v266, %v265
  %vm339 = vcmask 523264
  %v341 = vsel %vm339, %v118, 0
  %343 = vmatprep.subr.bf16.mxu0 0
  %344 = vmatpush1.bf16.msra.mxu0 %v274
  %345 = vmatprep.subr.bf16.mxu0 0
  %346 = vmatpush1.bf16.msra.mxu0 %v273
  %347 = vmatprep.subr.bf16.mxu0 0
  %348 = vmatpush1.bf16.msra.mxu0 %v272
  %349 = vmatprep.subr.bf16.mxu0 0
  %350 = vmatpush1.bf16.msra.mxu0 %v271
  %351 = vmatprep.subr.bf16.mxu0 0
  %352 = vmatpush1.bf16.msra.mxu0 %v270
  %353 = vmatprep.subr.bf16.mxu0 0
  %354 = vmatpush1.bf16.msra.mxu0 %v269
  %355 = vmatprep.subr.bf16.mxu0 0
  %356 = vmatpush1.bf16.msra.mxu0 %v268
  %357 = vmatprep.subr.bf16.mxu0 0
  %358 = vmatpush1.bf16.msra.mxu0 %v267
  %359 = vmatprep.subr.bf16.mxu0 0
  %360 = vmatpush2.bf16.msra.mxu0 %v282
  %361 = vmatprep.subr.bf16.mxu0 0
  %362 = vmatpush2.bf16.msra.mxu0 %v281
  %363 = vmatprep.subr.bf16.mxu0 0
  %364 = vmatpush2.bf16.msra.mxu0 %v280
  %365 = vmatprep.subr.bf16.mxu0 0
  %366 = vmatpush2.bf16.msra.mxu0 %v279
  %367 = vmatprep.subr.bf16.mxu0 0
  %368 = vmatpush2.bf16.msra.mxu0 %v278
  %369 = vmatprep.subr.bf16.mxu0 0
  %370 = vmatpush2.bf16.msra.mxu0 %v277
  %371 = vmatprep.subr.bf16.mxu0 0
  %372 = vmatpush2.bf16.msra.mxu0 %v276
  %373 = vmatprep.subr.bf16.mxu0 0
  %374 = vmatpush2.bf16.msra.mxu0 %v275
  %375 = vmatprep.mubr.bf16.mxu0 %v115
  %376 = vmatmul.mubr.bf16.gmra.mxu0 %v114
  %v377 = vpop.f32.mrf.mxu0
  %v378 = vadd.f32 %v104, %v377
  %v379 = vpop.f32.mrf.mxu0
  %v380 = vpop.f32.mrf.mxu0
  %v381 = vpop.f32.mrf.mxu0
  %382 = vdwg.mxu0
  %383 = vmatprep.subr.bf16.mxu0 0
  %384 = vmatpush1.bf16.msra.mxu0 %v290
  %385 = vmatprep.subr.bf16.mxu0 0
  %386 = vmatpush1.bf16.msra.mxu0 %v289
  %387 = vmatprep.subr.bf16.mxu0 0
  %388 = vmatpush1.bf16.msra.mxu0 %v288
  %389 = vmatprep.subr.bf16.mxu0 0
  %390 = vmatpush1.bf16.msra.mxu0 %v287
  %391 = vmatprep.subr.bf16.mxu0 0
  %392 = vmatpush1.bf16.msra.mxu0 %v286
  %393 = vmatprep.subr.bf16.mxu0 0
  %394 = vmatpush1.bf16.msra.mxu0 %v285
  %395 = vmatprep.subr.bf16.mxu0 0
  %396 = vmatpush1.bf16.msra.mxu0 %v284
  %397 = vmatprep.subr.bf16.mxu0 0
  %398 = vmatpush1.bf16.msra.mxu0 %v283
  %399 = vmatprep.subr.bf16.mxu0 0
  %400 = vmatpush2.bf16.msra.mxu0 %v298
  %401 = vmatprep.subr.bf16.mxu0 0
  %402 = vmatpush2.bf16.msra.mxu0 %v297
  %403 = vmatprep.subr.bf16.mxu0 0
  %404 = vmatpush2.bf16.msra.mxu0 %v296
  %405 = vmatprep.subr.bf16.mxu0 0
  %406 = vmatpush2.bf16.msra.mxu0 %v295
  %407 = vmatprep.subr.bf16.mxu0 0
  %408 = vmatpush2.bf16.msra.mxu0 %v294
  %409 = vmatprep.subr.bf16.mxu0 0
  %410 = vmatpush2.bf16.msra.mxu0 %v293
  %411 = vmatprep.subr.bf16.mxu0 0
  %412 = vmatpush2.bf16.msra.mxu0 %v292
  %413 = vmatprep.subr.bf16.mxu0 0
  %414 = vmatpush2.bf16.msra.mxu0 %v291
  %415 = vmatprep.mubr.bf16.mxu0 %v117
  %416 = vmatmul.mubr.bf16.gmra.mxu0 %v116
  %v417 = vpop.f32.mrf.mxu0
  %v418 = vadd.f32 %v378, %v417
  %v419 = vpop.f32.mrf.mxu0
  %v420 = vpop.f32.mrf.mxu0
  %v421 = vpop.f32.mrf.mxu0
  %422 = vdwg.mxu0
  %423 = vmatprep.subr.bf16.mxu0 0
  %424 = vmatpush1.bf16.msra.mxu0 0
  %425 = vmatprep.subr.bf16.mxu0 0
  %426 = vmatpush1.bf16.msra.mxu0 0
  %427 = vmatprep.subr.bf16.mxu0 0
  %428 = vmatpush1.bf16.msra.mxu0 0
  %429 = vmatprep.subr.bf16.mxu0 0
  %430 = vmatpush1.bf16.msra.mxu0 0
  %431 = vmatprep.subr.bf16.mxu0 0
  %432 = vmatpush1.bf16.msra.mxu0 %v302
  %433 = vmatprep.subr.bf16.mxu0 0
  %434 = vmatpush1.bf16.msra.mxu0 %v301
  %435 = vmatprep.subr.bf16.mxu0 0
  %436 = vmatpush1.bf16.msra.mxu0 %v300
  %437 = vmatprep.subr.bf16.mxu0 0
  %438 = vmatpush1.bf16.msra.mxu0 %v299
  %439 = vmatprep.subr.bf16.mxu0 0
  %440 = vmatpush2.bf16.msra.mxu0 0
  %441 = vmatprep.subr.bf16.mxu0 0
  %442 = vmatpush2.bf16.msra.mxu0 0
  %443 = vmatprep.subr.bf16.mxu0 0
  %444 = vmatpush2.bf16.msra.mxu0 0
  %445 = vmatprep.subr.bf16.mxu0 0
  %446 = vmatpush2.bf16.msra.mxu0 0
  %447 = vmatprep.subr.bf16.mxu0 0
  %448 = vmatpush2.bf16.msra.mxu0 0
  %449 = vmatprep.subr.bf16.mxu0 0
  %450 = vmatpush2.bf16.msra.mxu0 0
  %451 = vmatprep.subr.bf16.mxu0 0
  %452 = vmatpush2.bf16.msra.mxu0 0
  %453 = vmatprep.subr.bf16.mxu0 0
  %454 = vmatpush2.bf16.msra.mxu0 0
  %455 = vmatprep.mubr.bf16.mxu0 0
  %456 = vmatmul.mubr.bf16.gmra.mxu0 %v341
  %v457 = vpop.f32.mrf.mxu0
  %v458 = vadd.f32 %v418, %v457
  %v459 = vpop.f32.mrf.mxu0
  %v460 = vpop.f32.mrf.mxu0
  %v461 = vpop.f32.mrf.mxu0
  %462 = vdwg.mxu0
  %v463 = vmul.f32 %v458, 0.2
  %v464 = vmax.f32 %v458, %v463
  %v465 = vld [vmem:[%s3] sm:$0x1]
  %v467 = vlaneseq
  %v468 = vshrl.u32 %v467, 7
  %v469 = vsub.s32 0, %v468
  %v470 = vrot.slane %v465, %v469
  %v472 = vadd.f32 %v464, %v470
  %v473 = vpack.c.bf16 %v472, %v472
  %v474 = vld [vmem:[%s4] sm:$0xf]
  %v475 = vld [vmem:[%s4 + $0x4] sm:$0xf]
  %v476 = vld [vmem:[%s4 + $0x8] sm:$0xf]
  %v477 = vld [vmem:[%s4 + $0xc] sm:$0xf]
  %v478 = vld [vmem:[%s4 + $0x10] sm:$0xf]
  %v479 = vld [vmem:[%s4 + $0x14] sm:$0xf]
  %v480 = vld [vmem:[%s4 + $0x18] sm:$0xf]
  %v481 = vld [vmem:[%s4 + $0x1c] sm:$0xf]
  %v482 = vld [vmem:[%s4 + $0x20] sm:$0xf]
  %v483 = vld [vmem:[%s4 + $0x24] sm:$0xf]
  %v484 = vld [vmem:[%s4 + $0x28] sm:$0xf]
  %v485 = vld [vmem:[%s4 + $0x2c] sm:$0xf]
  %v486 = vld [vmem:[%s4 + $0x30] sm:$0xf]
  %v487 = vld [vmem:[%s4 + $0x34] sm:$0xf]
  %v488 = vld [vmem:[%s4 + $0x38] sm:$0xf]
  %v489 = vld [vmem:[%s4 + $0x3c] sm:$0xf]
  %s490 = scalar_lea.vmem %s0, 20
  %v491 = vld [vmem:[%s490] sm:$0xff]
  %v492 = vld [vmem:[%s490 + $0x8] sm:$0xff]
  %v493 = vld [vmem:[%s490 + $0x10] sm:$0xf]
  %v497 = vunpack.c.l.b16 %v491
  %v498 = vunpack.c.h.b16 %v491
  %v499 = vunpack.c.l.b16 %v492
  %v500 = vunpack.c.h.b16 %v492
  %v501 = vunpack.c.l.b16 %v493
  %v502 = vpack.c.b16 %v497, %v497
  %v503 = vpack.c.b16 %v498, %v498
  %v504 = vpack.c.b16 %v499, %v499
  %v505 = vpack.c.b16 %v500, %v500
  %v506 = vpack.c.b16 %v501, %v501
  %v512 = vsel %vm339, %v506, 0
  %514 = vmatprep.subr.bf16.mxu0 0
  %515 = vmatpush1.bf16.msra.mxu0 %v274
  %516 = vmatprep.subr.bf16.mxu0 0
  %517 = vmatpush1.bf16.msra.mxu0 %v273
  %518 = vmatprep.subr.bf16.mxu0 0
  %519 = vmatpush1.bf16.msra.mxu0 %v272
  %520 = vmatprep.subr.bf16.mxu0 0
  %521 = vmatpush1.bf16.msra.mxu0 %v271
  %522 = vmatprep.subr.bf16.mxu0 0
  %523 = vmatpush1.bf16.msra.mxu0 %v270
  %524 = vmatprep.subr.bf16.mxu0 0
  %525 = vmatpush1.bf16.msra.mxu0 %v269
  %526 = vmatprep.subr.bf16.mxu0 0
  %527 = vmatpush1.bf16.msra.mxu0 %v268
  %528 = vmatprep.subr.bf16.mxu0 0
  %529 = vmatpush1.bf16.msra.mxu0 %v267
  %530 = vmatprep.subr.bf16.mxu0 0
  %531 = vmatpush2.bf16.msra.mxu0 %v282
  %532 = vmatprep.subr.bf16.mxu0 0
  %533 = vmatpush2.bf16.msra.mxu0 %v281
  %534 = vmatprep.subr.bf16.mxu0 0
  %535 = vmatpush2.bf16.msra.mxu0 %v280
  %536 = vmatprep.subr.bf16.mxu0 0
  %537 = vmatpush2.bf16.msra.mxu0 %v279
  %538 = vmatprep.subr.bf16.mxu0 0
  %539 = vmatpush2.bf16.msra.mxu0 %v278
  %540 = vmatprep.subr.bf16.mxu0 0
  %541 = vmatpush2.bf16.msra.mxu0 %v277
  %542 = vmatprep.subr.bf16.mxu0 0
  %543 = vmatpush2.bf16.msra.mxu0 %v276
  %544 = vmatprep.subr.bf16.mxu0 0
  %545 = vmatpush2.bf16.msra.mxu0 %v275
  %546 = vmatprep.mubr.bf16.mxu0 %v503
  %547 = vmatmul.mubr.bf16.gmra.mxu0 %v502
  %v548 = vpop.f32.mrf.mxu0
  %v549 = vadd.f32 %v104, %v548
  %v550 = vpop.f32.mrf.mxu0
  %v551 = vpop.f32.mrf.mxu0
  %v552 = vpop.f32.mrf.mxu0
  %553 = vdwg.mxu0
  %554 = vmatprep.subr.bf16.mxu0 0
  %555 = vmatpush1.bf16.msra.mxu0 %v290
  %556 = vmatprep.subr.bf16.mxu0 0
  %557 = vmatpush1.bf16.msra.mxu0 %v289
  %558 = vmatprep.subr.bf16.mxu0 0
  %559 = vmatpush1.bf16.msra.mxu0 %v288
  %560 = vmatprep.subr.bf16.mxu0 0
  %561 = vmatpush1.bf16.msra.mxu0 %v287
  %562 = vmatprep.subr.bf16.mxu0 0
  %563 = vmatpush1.bf16.msra.mxu0 %v286
  %564 = vmatprep.subr.bf16.mxu0 0
  %565 = vmatpush1.bf16.msra.mxu0 %v285
  %566 = vmatprep.subr.bf16.mxu0 0
  %567 = vmatpush1.bf16.msra.mxu0 %v284
  %568 = vmatprep.subr.bf16.mxu0 0
  %569 = vmatpush1.bf16.msra.mxu0 %v283
  %570 = vmatprep.subr.bf16.mxu0 0
  %571 = vmatpush2.bf16.msra.mxu0 %v298
  %572 = vmatprep.subr.bf16.mxu0 0
  %573 = vmatpush2.bf16.msra.mxu0 %v297
  %574 = vmatprep.subr.bf16.mxu0 0
  %575 = vmatpush2.bf16.msra.mxu0 %v296
  %576 = vmatprep.subr.bf16.mxu0 0
  %577 = vmatpush2.bf16.msra.mxu0 %v295
  %578 = vmatprep.subr.bf16.mxu0 0
  %579 = vmatpush2.bf16.msra.mxu0 %v294
  %580 = vmatprep.subr.bf16.mxu0 0
  %581 = vmatpush2.bf16.msra.mxu0 %v293
  %582 = vmatprep.subr.bf16.mxu0 0
  %583 = vmatpush2.bf16.msra.mxu0 %v292
  %584 = vmatprep.subr.bf16.mxu0 0
  %585 = vmatpush2.bf16.msra.mxu0 %v291
  %586 = vmatprep.mubr.bf16.mxu0 %v505
  %587 = vmatmul.mubr.bf16.gmra.mxu0 %v504
  %v588 = vpop.f32.mrf.mxu0
  %v589 = vadd.f32 %v549, %v588
  %v590 = vpop.f32.mrf.mxu0
  %v591 = vpop.f32.mrf.mxu0
  %v592 = vpop.f32.mrf.mxu0
  %593 = vdwg.mxu0
  %594 = vmatprep.subr.bf16.mxu0 0
  %595 = vmatpush1.bf16.msra.mxu0 0
  %596 = vmatprep.subr.bf16.mxu0 0
  %597 = vmatpush1.bf16.msra.mxu0 0
  %598 = vmatprep.subr.bf16.mxu0 0
  %599 = vmatpush1.bf16.msra.mxu0 0
  %600 = vmatprep.subr.bf16.mxu0 0
  %601 = vmatpush1.bf16.msra.mxu0 0
  %602 = vmatprep.subr.bf16.mxu0 0
  %603 = vmatpush1.bf16.msra.mxu0 %v302
  %604 = vmatprep.subr.bf16.mxu0 0
  %605 = vmatpush1.bf16.msra.mxu0 %v301
  %606 = vmatprep.subr.bf16.mxu0 0
  %607 = vmatpush1.bf16.msra.mxu0 %v300
  %608 = vmatprep.subr.bf16.mxu0 0
  %609 = vmatpush1.bf16.msra.mxu0 %v299
  %610 = vmatprep.subr.bf16.mxu0 0
  %611 = vmatpush2.bf16.msra.mxu0 0
  %612 = vmatprep.subr.bf16.mxu0 0
  %613 = vmatpush2.bf16.msra.mxu0 0
  %614 = vmatprep.subr.bf16.mxu0 0
  %615 = vmatpush2.bf16.msra.mxu0 0
  %616 = vmatprep.subr.bf16.mxu0 0
  %617 = vmatpush2.bf16.msra.mxu0 0
  %618 = vmatprep.subr.bf16.mxu0 0
  %619 = vmatpush2.bf16.msra.mxu0 0
  %620 = vmatprep.subr.bf16.mxu0 0
  %621 = vmatpush2.bf16.msra.mxu0 0
  %622 = vmatprep.subr.bf16.mxu0 0
  %623 = vmatpush2.bf16.msra.mxu0 0
  %624 = vmatprep.subr.bf16.mxu0 0
  %625 = vmatpush2.bf16.msra.mxu0 0
  %626 = vmatprep.mubr.bf16.mxu0 0
  %627 = vmatmul.mubr.bf16.gmra.mxu0 %v512
  %v628 = vpop.f32.mrf.mxu0
  %v629 = vadd.f32 %v589, %v628
  %v630 = vpop.f32.mrf.mxu0
  %v631 = vpop.f32.mrf.mxu0
  %v632 = vpop.f32.mrf.mxu0
  %633 = vdwg.mxu0
  %v634 = vmul.f32 %v629, 0.2
  %v635 = vmax.f32 %v629, %v634
  %v636 = vadd.f32 %v635, %v470
  %v637 = vpack.c.bf16 %v636, %v636
  %s638 = scalar_lea.vmem %s4, 64
  %v639 = vld [vmem:[%s638] sm:$0xf]
  %v640 = vld [vmem:[%s638 + $0x4] sm:$0xf]
  %v641 = vld [vmem:[%s638 + $0x8] sm:$0xf]
  %v642 = vld [vmem:[%s638 + $0xc] sm:$0xf]
  %v643 = vld [vmem:[%s638 + $0x10] sm:$0xf]
  %v644 = vld [vmem:[%s638 + $0x14] sm:$0xf]
  %v645 = vld [vmem:[%s638 + $0x18] sm:$0xf]
  %v646 = vld [vmem:[%s638 + $0x1c] sm:$0xf]
  %v647 = vld [vmem:[%s638 + $0x20] sm:$0xf]
  %v648 = vld [vmem:[%s638 + $0x24] sm:$0xf]
  %v649 = vld [vmem:[%s638 + $0x28] sm:$0xf]
  %v650 = vld [vmem:[%s638 + $0x2c] sm:$0xf]
  %v651 = vld [vmem:[%s638 + $0x30] sm:$0xf]
  %v652 = vld [vmem:[%s638 + $0x34] sm:$0xf]
  %v653 = vld [vmem:[%s638 + $0x38] sm:$0xf]
  %v654 = vld [vmem:[%s638 + $0x3c] sm:$0xf]
  %v671 = vunpack.c.l.b16 %v639
  %v672 = vunpack.c.l.b16 %v640
  %v673 = vunpack.c.l.b16 %v641
  %v674 = vunpack.c.l.b16 %v642
  %v675 = vunpack.c.l.b16 %v643
  %v676 = vunpack.c.l.b16 %v644
  %v677 = vunpack.c.l.b16 %v645
  %v678 = vunpack.c.l.b16 %v646
  %v679 = vunpack.c.l.b16 %v647
  %v680 = vunpack.c.l.b16 %v648
  %v681 = vunpack.c.l.b16 %v649
  %v682 = vunpack.c.l.b16 %v650
  %v683 = vunpack.c.l.b16 %v651
  %v684 = vunpack.c.l.b16 %v652
  %v685 = vunpack.c.l.b16 %v653
  %v686 = vunpack.c.l.b16 %v654
  %v687 = vpack.c.b16 %v672, %v671
  %v688 = vpack.c.b16 %v674, %v673
  %v689 = vpack.c.b16 %v676, %v675
  %v690 = vpack.c.b16 %v678, %v677
  %v691 = vpack.c.b16 %v680, %v679
  %v692 = vpack.c.b16 %v682, %v681
  %v693 = vpack.c.b16 %v684, %v683
  %v694 = vpack.c.b16 %v686, %v685
  %703 = vmatprep.subr.bf16.mxu0 0
  %704 = vmatpush1.bf16.msra.mxu0 %v694
  %705 = vmatprep.subr.bf16.mxu0 0
  %706 = vmatpush1.bf16.msra.mxu0 %v693
  %707 = vmatprep.subr.bf16.mxu0 0
  %708 = vmatpush1.bf16.msra.mxu0 %v692
  %709 = vmatprep.subr.bf16.mxu0 0
  %710 = vmatpush1.bf16.msra.mxu0 %v691
  %711 = vmatprep.subr.bf16.mxu0 0
  %712 = vmatpush1.bf16.msra.mxu0 %v690
  %713 = vmatprep.subr.bf16.mxu0 0
  %714 = vmatpush1.bf16.msra.mxu0 %v689
  %715 = vmatprep.subr.bf16.mxu0 0
  %716 = vmatpush1.bf16.msra.mxu0 %v688
  %717 = vmatprep.subr.bf16.mxu0 0
  %718 = vmatpush1.bf16.msra.mxu0 %v687
  %719 = vmatprep.subr.bf16.mxu0 0
  %720 = vmatpush2.bf16.msra.mxu0 0
  %721 = vmatprep.subr.bf16.mxu0 0
  %722 = vmatpush2.bf16.msra.mxu0 0
  %723 = vmatprep.subr.bf16.mxu0 0
  %724 = vmatpush2.bf16.msra.mxu0 0
  %725 = vmatprep.subr.bf16.mxu0 0
  %726 = vmatpush2.bf16.msra.mxu0 0
  %727 = vmatprep.subr.bf16.mxu0 0
  %728 = vmatpush2.bf16.msra.mxu0 0
  %729 = vmatprep.subr.bf16.mxu0 0
  %730 = vmatpush2.bf16.msra.mxu0 0
  %731 = vmatprep.subr.bf16.mxu0 0
  %732 = vmatpush2.bf16.msra.mxu0 0
  %733 = vmatprep.subr.bf16.mxu0 0
  %734 = vmatpush2.bf16.msra.mxu0 0
  %735 = vmatprep.mubr.bf16.mxu0 0
  %736 = vmatmul.mubr.bf16.gmra.mxu0 %v637
  %v737 = vpop.f32.mrf.mxu0
  %v738 = vadd.f32 0.0, %v737
  %v739 = vpop.f32.mrf.mxu0
  %v740 = vpop.f32.mrf.mxu0
  %v741 = vpop.f32.mrf.mxu0
  %742 = vdwg.mxu0
  %v759 = vunpack.c.l.b16 %v474
  %v760 = vunpack.c.l.b16 %v475
  %v761 = vunpack.c.l.b16 %v476
  %v762 = vunpack.c.l.b16 %v477
  %v763 = vunpack.c.l.b16 %v478
  %v764 = vunpack.c.l.b16 %v479
  %v765 = vunpack.c.l.b16 %v480
  %v766 = vunpack.c.l.b16 %v481
  %v767 = vunpack.c.l.b16 %v482
  %v768 = vunpack.c.l.b16 %v483
  %v769 = vunpack.c.l.b16 %v484
  %v770 = vunpack.c.l.b16 %v485
  %v771 = vunpack.c.l.b16 %v486
  %v772 = vunpack.c.l.b16 %v487
  %v773 = vunpack.c.l.b16 %v488
  %v774 = vunpack.c.l.b16 %v489
  %v775 = vpack.c.b16 %v760, %v759
  %v776 = vpack.c.b16 %v762, %v761
  %v777 = vpack.c.b16 %v764, %v763
  %v778 = vpack.c.b16 %v766, %v765
  %v779 = vpack.c.b16 %v768, %v767
  %v780 = vpack.c.b16 %v770, %v769
  %v781 = vpack.c.b16 %v772, %v771
  %v782 = vpack.c.b16 %v774, %v773
  %791 = vmatprep.subr.bf16.mxu0 0
  %792 = vmatpush1.bf16.msra.mxu0 %v782
  %793 = vmatprep.subr.bf16.mxu0 0
  %794 = vmatpush1.bf16.msra.mxu0 %v781
  %795 = vmatprep.subr.bf16.mxu0 0
  %796 = vmatpush1.bf16.msra.mxu0 %v780
  %797 = vmatprep.subr.bf16.mxu0 0
  %798 = vmatpush1.bf16.msra.mxu0 %v779
  %799 = vmatprep.subr.bf16.mxu0 0
  %800 = vmatpush1.bf16.msra.mxu0 %v778
  %801 = vmatprep.subr.bf16.mxu0 0
  %802 = vmatpush1.bf16.msra.mxu0 %v777
  %803 = vmatprep.subr.bf16.mxu0 0
  %804 = vmatpush1.bf16.msra.mxu0 %v776
  %805 = vmatprep.subr.bf16.mxu0 0
  %806 = vmatpush1.bf16.msra.mxu0 %v775
  %807 = vmatprep.subr.bf16.mxu0 0
  %808 = vmatpush2.bf16.msra.mxu0 0
  %809 = vmatprep.subr.bf16.mxu0 0
  %810 = vmatpush2.bf16.msra.mxu0 0
  %811 = vmatprep.subr.bf16.mxu0 0
  %812 = vmatpush2.bf16.msra.mxu0 0
  %813 = vmatprep.subr.bf16.mxu0 0
  %814 = vmatpush2.bf16.msra.mxu0 0
  %815 = vmatprep.subr.bf16.mxu0 0
  %816 = vmatpush2.bf16.msra.mxu0 0
  %817 = vmatprep.subr.bf16.mxu0 0
  %818 = vmatpush2.bf16.msra.mxu0 0
  %819 = vmatprep.subr.bf16.mxu0 0
  %820 = vmatpush2.bf16.msra.mxu0 0
  %821 = vmatprep.subr.bf16.mxu0 0
  %822 = vmatpush2.bf16.msra.mxu0 0
  %823 = vmatprep.mubr.bf16.mxu0 0
  %824 = vmatmul.mubr.bf16.gmra.mxu0 %v473
  %v825 = vpop.f32.mrf.mxu0
  %v826 = vadd.f32 %v738, %v825
  %v827 = vpop.f32.mrf.mxu0
  %v828 = vpop.f32.mrf.mxu0
  %v829 = vpop.f32.mrf.mxu0
  %830 = vdwg.mxu0
  %s831 = scalar_lea.vmem %s0, 40
  %v832 = vld [vmem:[%s831] sm:$0xff]
  %v833 = vld [vmem:[%s831 + $0x8] sm:$0xff]
  %v834 = vld [vmem:[%s831 + $0x10] sm:$0xf]
  %v838 = vunpack.c.l.b16 %v832
  %v839 = vunpack.c.h.b16 %v832
  %v840 = vunpack.c.l.b16 %v833
  %v841 = vunpack.c.h.b16 %v833
  %v842 = vunpack.c.l.b16 %v834
  %v843 = vpack.c.b16 %v838, %v838
  %v844 = vpack.c.b16 %v839, %v839
  %v845 = vpack.c.b16 %v840, %v840
  %v846 = vpack.c.b16 %v841, %v841
  %v847 = vpack.c.b16 %v842, %v842
  %v853 = vsel %vm339, %v847, 0
  %855 = vmatprep.subr.bf16.mxu0 0
  %856 = vmatpush1.bf16.msra.mxu0 %v274
  %857 = vmatprep.subr.bf16.mxu0 0
  %858 = vmatpush1.bf16.msra.mxu0 %v273
  %859 = vmatprep.subr.bf16.mxu0 0
  %860 = vmatpush1.bf16.msra.mxu0 %v272
  %861 = vmatprep.subr.bf16.mxu0 0
  %862 = vmatpush1.bf16.msra.mxu0 %v271
  %863 = vmatprep.subr.bf16.mxu0 0
  %864 = vmatpush1.bf16.msra.mxu0 %v270
  %865 = vmatprep.subr.bf16.mxu0 0
  %866 = vmatpush1.bf16.msra.mxu0 %v269
  %867 = vmatprep.subr.bf16.mxu0 0
  %868 = vmatpush1.bf16.msra.mxu0 %v268
  %869 = vmatprep.subr.bf16.mxu0 0
  %870 = vmatpush1.bf16.msra.mxu0 %v267
  %871 = vmatprep.subr.bf16.mxu0 0
  %872 = vmatpush2.bf16.msra.mxu0 %v282
  %873 = vmatprep.subr.bf16.mxu0 0
  %874 = vmatpush2.bf16.msra.mxu0 %v281
  %875 = vmatprep.subr.bf16.mxu0 0
  %876 = vmatpush2.bf16.msra.mxu0 %v280
  %877 = vmatprep.subr.bf16.mxu0 0
  %878 = vmatpush2.bf16.msra.mxu0 %v279
  %879 = vmatprep.subr.bf16.mxu0 0
  %880 = vmatpush2.bf16.msra.mxu0 %v278
  %881 = vmatprep.subr.bf16.mxu0 0
  %882 = vmatpush2.bf16.msra.mxu0 %v277
  %883 = vmatprep.subr.bf16.mxu0 0
  %884 = vmatpush2.bf16.msra.mxu0 %v276
  %885 = vmatprep.subr.bf16.mxu0 0
  %886 = vmatpush2.bf16.msra.mxu0 %v275
  %887 = vmatprep.mubr.bf16.mxu0 %v844
  %888 = vmatmul.mubr.bf16.gmra.mxu0 %v843
  %v889 = vpop.f32.mrf.mxu0
  %v890 = vadd.f32 %v104, %v889
  %v891 = vpop.f32.mrf.mxu0
  %v892 = vpop.f32.mrf.mxu0
  %v893 = vpop.f32.mrf.mxu0
  %894 = vdwg.mxu0
  %895 = vmatprep.subr.bf16.mxu0 0
  %896 = vmatpush1.bf16.msra.mxu0 %v290
  %897 = vmatprep.subr.bf16.mxu0 0
  %898 = vmatpush1.bf16.msra.mxu0 %v289
  %899 = vmatprep.subr.bf16.mxu0 0
  %900 = vmatpush1.bf16.msra.mxu0 %v288
  %901 = vmatprep.subr.bf16.mxu0 0
  %902 = vmatpush1.bf16.msra.mxu0 %v287
  %903 = vmatprep.subr.bf16.mxu0 0
  %904 = vmatpush1.bf16.msra.mxu0 %v286
  %905 = vmatprep.subr.bf16.mxu0 0
  %906 = vmatpush1.bf16.msra.mxu0 %v285
  %907 = vmatprep.subr.bf16.mxu0 0
  %908 = vmatpush1.bf16.msra.mxu0 %v284
  %909 = vmatprep.subr.bf16.mxu0 0
  %910 = vmatpush1.bf16.msra.mxu0 %v283
  %911 = vmatprep.subr.bf16.mxu0 0
  %912 = vmatpush2.bf16.msra.mxu0 %v298
  %913 = vmatprep.subr.bf16.mxu0 0
  %914 = vmatpush2.bf16.msra.mxu0 %v297
  %915 = vmatprep.subr.bf16.mxu0 0
  %916 = vmatpush2.bf16.msra.mxu0 %v296
  %917 = vmatprep.subr.bf16.mxu0 0
  %918 = vmatpush2.bf16.msra.mxu0 %v295
  %919 = vmatprep.subr.bf16.mxu0 0
  %920 = vmatpush2.bf16.msra.mxu0 %v294
  %921 = vmatprep.subr.bf16.mxu0 0
  %922 = vmatpush2.bf16.msra.mxu0 %v293
  %923 = vmatprep.subr.bf16.mxu0 0
  %924 = vmatpush2.bf16.msra.mxu0 %v292
  %925 = vmatprep.subr.bf16.mxu0 0
  %926 = vmatpush2.bf16.msra.mxu0 %v291
  %927 = vmatprep.mubr.bf16.mxu0 %v846
  %928 = vmatmul.mubr.bf16.gmra.mxu0 %v845
  %v929 = vpop.f32.mrf.mxu0
  %v930 = vadd.f32 %v890, %v929
  %v931 = vpop.f32.mrf.mxu0
  %v932 = vpop.f32.mrf.mxu0
  %v933 = vpop.f32.mrf.mxu0
  %934 = vdwg.mxu0
  %935 = vmatprep.subr.bf16.mxu0 0
  %936 = vmatpush1.bf16.msra.mxu0 0
  %937 = vmatprep.subr.bf16.mxu0 0
  %938 = vmatpush1.bf16.msra.mxu0 0
  %939 = vmatprep.subr.bf16.mxu0 0
  %940 = vmatpush1.bf16.msra.mxu0 0
  %941 = vmatprep.subr.bf16.mxu0 0
  %942 = vmatpush1.bf16.msra.mxu0 0
  %943 = vmatprep.subr.bf16.mxu0 0
  %944 = vmatpush1.bf16.msra.mxu0 %v302
  %945 = vmatprep.subr.bf16.mxu0 0
  %946 = vmatpush1.bf16.msra.mxu0 %v301
  %947 = vmatprep.subr.bf16.mxu0 0
  %948 = vmatpush1.bf16.msra.mxu0 %v300
  %949 = vmatprep.subr.bf16.mxu0 0
  %950 = vmatpush1.bf16.msra.mxu0 %v299
  %951 = vmatprep.subr.bf16.mxu0 0
  %952 = vmatpush2.bf16.msra.mxu0 0
  %953 = vmatprep.subr.bf16.mxu0 0
  %954 = vmatpush2.bf16.msra.mxu0 0
  %955 = vmatprep.subr.bf16.mxu0 0
  %956 = vmatpush2.bf16.msra.mxu0 0
  %957 = vmatprep.subr.bf16.mxu0 0
  %958 = vmatpush2.bf16.msra.mxu0 0
  %959 = vmatprep.subr.bf16.mxu0 0
  %960 = vmatpush2.bf16.msra.mxu0 0
  %961 = vmatprep.subr.bf16.mxu0 0
  %962 = vmatpush2.bf16.msra.mxu0 0
  %963 = vmatprep.subr.bf16.mxu0 0
  %964 = vmatpush2.bf16.msra.mxu0 0
  %965 = vmatprep.subr.bf16.mxu0 0
  %966 = vmatpush2.bf16.msra.mxu0 0
  %967 = vmatprep.mubr.bf16.mxu0 0
  %968 = vmatmul.mubr.bf16.gmra.mxu0 %v853
  %v969 = vpop.f32.mrf.mxu0
  %v970 = vadd.f32 %v930, %v969
  %v971 = vpop.f32.mrf.mxu0
  %v972 = vpop.f32.mrf.mxu0
  %v973 = vpop.f32.mrf.mxu0
  %974 = vdwg.mxu0
  %v975 = vmul.f32 %v970, 0.2
  %v976 = vmax.f32 %v970, %v975
  %v977 = vadd.f32 %v976, %v470
  %v978 = vpack.c.bf16 %v977, %v977
  %s979 = scalar_lea.vmem %s4, 128
  %v980 = vld [vmem:[%s979] sm:$0xf]
  %v981 = vld [vmem:[%s979 + $0x4] sm:$0xf]
  %v982 = vld [vmem:[%s979 + $0x8] sm:$0xf]
  %v983 = vld [vmem:[%s979 + $0xc] sm:$0xf]
  %v984 = vld [vmem:[%s979 + $0x10] sm:$0xf]
  %v985 = vld [vmem:[%s979 + $0x14] sm:$0xf]
  %v986 = vld [vmem:[%s979 + $0x18] sm:$0xf]
  %v987 = vld [vmem:[%s979 + $0x1c] sm:$0xf]
  %v988 = vld [vmem:[%s979 + $0x20] sm:$0xf]
  %v989 = vld [vmem:[%s979 + $0x24] sm:$0xf]
  %v990 = vld [vmem:[%s979 + $0x28] sm:$0xf]
  %v991 = vld [vmem:[%s979 + $0x2c] sm:$0xf]
  %v992 = vld [vmem:[%s979 + $0x30] sm:$0xf]
  %v993 = vld [vmem:[%s979 + $0x34] sm:$0xf]
  %v994 = vld [vmem:[%s979 + $0x38] sm:$0xf]
  %v995 = vld [vmem:[%s979 + $0x3c] sm:$0xf]
  %v1012 = vunpack.c.l.b16 %v980
  %v1013 = vunpack.c.l.b16 %v981
  %v1014 = vunpack.c.l.b16 %v982
  %v1015 = vunpack.c.l.b16 %v983
  %v1016 = vunpack.c.l.b16 %v984
  %v1017 = vunpack.c.l.b16 %v985
  %v1018 = vunpack.c.l.b16 %v986
  %v1019 = vunpack.c.l.b16 %v987
  %v1020 = vunpack.c.l.b16 %v988
  %v1021 = vunpack.c.l.b16 %v989
  %v1022 = vunpack.c.l.b16 %v990
  %v1023 = vunpack.c.l.b16 %v991
  %v1024 = vunpack.c.l.b16 %v992
  %v1025 = vunpack.c.l.b16 %v993
  %v1026 = vunpack.c.l.b16 %v994
  %v1027 = vunpack.c.l.b16 %v995
  %v1028 = vpack.c.b16 %v1013, %v1012
  %v1029 = vpack.c.b16 %v1015, %v1014
  %v1030 = vpack.c.b16 %v1017, %v1016
  %v1031 = vpack.c.b16 %v1019, %v1018
  %v1032 = vpack.c.b16 %v1021, %v1020
  %v1033 = vpack.c.b16 %v1023, %v1022
  %v1034 = vpack.c.b16 %v1025, %v1024
  %v1035 = vpack.c.b16 %v1027, %v1026
  %1044 = vmatprep.subr.bf16.mxu0 0
  %1045 = vmatpush1.bf16.msra.mxu0 %v1035
  %1046 = vmatprep.subr.bf16.mxu0 0
  %1047 = vmatpush1.bf16.msra.mxu0 %v1034
  %1048 = vmatprep.subr.bf16.mxu0 0
  %1049 = vmatpush1.bf16.msra.mxu0 %v1033
  %1050 = vmatprep.subr.bf16.mxu0 0
  %1051 = vmatpush1.bf16.msra.mxu0 %v1032
  %1052 = vmatprep.subr.bf16.mxu0 0
  %1053 = vmatpush1.bf16.msra.mxu0 %v1031
  %1054 = vmatprep.subr.bf16.mxu0 0
  %1055 = vmatpush1.bf16.msra.mxu0 %v1030
  %1056 = vmatprep.subr.bf16.mxu0 0
  %1057 = vmatpush1.bf16.msra.mxu0 %v1029
  %1058 = vmatprep.subr.bf16.mxu0 0
  %1059 = vmatpush1.bf16.msra.mxu0 %v1028
  %1060 = vmatprep.subr.bf16.mxu0 0
  %1061 = vmatpush2.bf16.msra.mxu0 0
  %1062 = vmatprep.subr.bf16.mxu0 0
  %1063 = vmatpush2.bf16.msra.mxu0 0
  %1064 = vmatprep.subr.bf16.mxu0 0
  %1065 = vmatpush2.bf16.msra.mxu0 0
  %1066 = vmatprep.subr.bf16.mxu0 0
  %1067 = vmatpush2.bf16.msra.mxu0 0
  %1068 = vmatprep.subr.bf16.mxu0 0
  %1069 = vmatpush2.bf16.msra.mxu0 0
  %1070 = vmatprep.subr.bf16.mxu0 0
  %1071 = vmatpush2.bf16.msra.mxu0 0
  %1072 = vmatprep.subr.bf16.mxu0 0
  %1073 = vmatpush2.bf16.msra.mxu0 0
  %1074 = vmatprep.subr.bf16.mxu0 0
  %1075 = vmatpush2.bf16.msra.mxu0 0
  %1076 = vmatprep.mubr.bf16.mxu0 0
  %1077 = vmatmul.mubr.bf16.gmra.mxu0 %v978
  %v1078 = vpop.f32.mrf.mxu0
  %v1079 = vadd.f32 0.0, %v1078
  %v1080 = vpop.f32.mrf.mxu0
  %v1081 = vpop.f32.mrf.mxu0
  %v1082 = vpop.f32.mrf.mxu0
  %1083 = vdwg.mxu0
  %v1084 = vadd.f32 %v826, %v1079
  %s1085 = scalar_lea.vmem %s0, 60
  %v1086 = vld [vmem:[%s1085] sm:$0xff]
  %v1087 = vld [vmem:[%s1085 + $0x8] sm:$0xff]
  %v1088 = vld [vmem:[%s1085 + $0x10] sm:$0xf]
  %v1092 = vunpack.c.l.b16 %v1086
  %v1093 = vunpack.c.h.b16 %v1086
  %v1094 = vunpack.c.l.b16 %v1087
  %v1095 = vunpack.c.h.b16 %v1087
  %v1096 = vunpack.c.l.b16 %v1088
  %v1097 = vpack.c.b16 %v1092, %v1092
  %v1098 = vpack.c.b16 %v1093, %v1093
  %v1099 = vpack.c.b16 %v1094, %v1094
  %v1100 = vpack.c.b16 %v1095, %v1095
  %v1101 = vpack.c.b16 %v1096, %v1096
  %v1107 = vsel %vm339, %v1101, 0
  %1109 = vmatprep.subr.bf16.mxu0 0
  %1110 = vmatpush1.bf16.msra.mxu0 %v274
  %1111 = vmatprep.subr.bf16.mxu0 0
  %1112 = vmatpush1.bf16.msra.mxu0 %v273
  %1113 = vmatprep.subr.bf16.mxu0 0
  %1114 = vmatpush1.bf16.msra.mxu0 %v272
  %1115 = vmatprep.subr.bf16.mxu0 0
  %1116 = vmatpush1.bf16.msra.mxu0 %v271
  %1117 = vmatprep.subr.bf16.mxu0 0
  %1118 = vmatpush1.bf16.msra.mxu0 %v270
  %1119 = vmatprep.subr.bf16.mxu0 0
  %1120 = vmatpush1.bf16.msra.mxu0 %v269
  %1121 = vmatprep.subr.bf16.mxu0 0
  %1122 = vmatpush1.bf16.msra.mxu0 %v268
  %1123 = vmatprep.subr.bf16.mxu0 0
  %1124 = vmatpush1.bf16.msra.mxu0 %v267
  %1125 = vmatprep.subr.bf16.mxu0 0
  %1126 = vmatpush2.bf16.msra.mxu0 %v282
  %1127 = vmatprep.subr.bf16.mxu0 0
  %1128 = vmatpush2.bf16.msra.mxu0 %v281
  %1129 = vmatprep.subr.bf16.mxu0 0
  %1130 = vmatpush2.bf16.msra.mxu0 %v280
  %1131 = vmatprep.subr.bf16.mxu0 0
  %1132 = vmatpush2.bf16.msra.mxu0 %v279
  %1133 = vmatprep.subr.bf16.mxu0 0
  %1134 = vmatpush2.bf16.msra.mxu0 %v278
  %1135 = vmatprep.subr.bf16.mxu0 0
  %1136 = vmatpush2.bf16.msra.mxu0 %v277
  %1137 = vmatprep.subr.bf16.mxu0 0
  %1138 = vmatpush2.bf16.msra.mxu0 %v276
  %1139 = vmatprep.subr.bf16.mxu0 0
  %1140 = vmatpush2.bf16.msra.mxu0 %v275
  %1141 = vmatprep.mubr.bf16.mxu0 %v1098
  %1142 = vmatmul.mubr.bf16.gmra.mxu0 %v1097
  %v1143 = vpop.f32.mrf.mxu0
  %v1144 = vadd.f32 %v104, %v1143
  %v1145 = vpop.f32.mrf.mxu0
  %v1146 = vpop.f32.mrf.mxu0
  %v1147 = vpop.f32.mrf.mxu0
  %1148 = vdwg.mxu0
  %1149 = vmatprep.subr.bf16.mxu0 0
  %1150 = vmatpush1.bf16.msra.mxu0 %v290
  %1151 = vmatprep.subr.bf16.mxu0 0
  %1152 = vmatpush1.bf16.msra.mxu0 %v289
  %1153 = vmatprep.subr.bf16.mxu0 0
  %1154 = vmatpush1.bf16.msra.mxu0 %v288
  %1155 = vmatprep.subr.bf16.mxu0 0
  %1156 = vmatpush1.bf16.msra.mxu0 %v287
  %1157 = vmatprep.subr.bf16.mxu0 0
  %1158 = vmatpush1.bf16.msra.mxu0 %v286
  %1159 = vmatprep.subr.bf16.mxu0 0
  %1160 = vmatpush1.bf16.msra.mxu0 %v285
  %1161 = vmatprep.subr.bf16.mxu0 0
  %1162 = vmatpush1.bf16.msra.mxu0 %v284
  %1163 = vmatprep.subr.bf16.mxu0 0
  %1164 = vmatpush1.bf16.msra.mxu0 %v283
  %1165 = vmatprep.subr.bf16.mxu0 0
  %1166 = vmatpush2.bf16.msra.mxu0 %v298
  %1167 = vmatprep.subr.bf16.mxu0 0
  %1168 = vmatpush2.bf16.msra.mxu0 %v297
  %1169 = vmatprep.subr.bf16.mxu0 0
  %1170 = vmatpush2.bf16.msra.mxu0 %v296
  %1171 = vmatprep.subr.bf16.mxu0 0
  %1172 = vmatpush2.bf16.msra.mxu0 %v295
  %1173 = vmatprep.subr.bf16.mxu0 0
  %1174 = vmatpush2.bf16.msra.mxu0 %v294
  %1175 = vmatprep.subr.bf16.mxu0 0
  %1176 = vmatpush2.bf16.msra.mxu0 %v293
  %1177 = vmatprep.subr.bf16.mxu0 0
  %1178 = vmatpush2.bf16.msra.mxu0 %v292
  %1179 = vmatprep.subr.bf16.mxu0 0
  %1180 = vmatpush2.bf16.msra.mxu0 %v291
  %1181 = vmatprep.mubr.bf16.mxu0 %v1100
  %1182 = vmatmul.mubr.bf16.gmra.mxu0 %v1099
  %v1183 = vpop.f32.mrf.mxu0
  %v1184 = vadd.f32 %v1144, %v1183
  %v1185 = vpop.f32.mrf.mxu0
  %v1186 = vpop.f32.mrf.mxu0
  %v1187 = vpop.f32.mrf.mxu0
  %1188 = vdwg.mxu0
  %1189 = vmatprep.subr.bf16.mxu0 0
  %1190 = vmatpush1.bf16.msra.mxu0 0
  %1191 = vmatprep.subr.bf16.mxu0 0
  %1192 = vmatpush1.bf16.msra.mxu0 0
  %1193 = vmatprep.subr.bf16.mxu0 0
  %1194 = vmatpush1.bf16.msra.mxu0 0
  %1195 = vmatprep.subr.bf16.mxu0 0
  %1196 = vmatpush1.bf16.msra.mxu0 0
  %1197 = vmatprep.subr.bf16.mxu0 0
  %1198 = vmatpush1.bf16.msra.mxu0 %v302
  %1199 = vmatprep.subr.bf16.mxu0 0
  %1200 = vmatpush1.bf16.msra.mxu0 %v301
  %1201 = vmatprep.subr.bf16.mxu0 0
  %1202 = vmatpush1.bf16.msra.mxu0 %v300
  %1203 = vmatprep.subr.bf16.mxu0 0
  %1204 = vmatpush1.bf16.msra.mxu0 %v299
  %1205 = vmatprep.subr.bf16.mxu0 0
  %1206 = vmatpush2.bf16.msra.mxu0 0
  %1207 = vmatprep.subr.bf16.mxu0 0
  %1208 = vmatpush2.bf16.msra.mxu0 0
  %1209 = vmatprep.subr.bf16.mxu0 0
  %1210 = vmatpush2.bf16.msra.mxu0 0
  %1211 = vmatprep.subr.bf16.mxu0 0
  %1212 = vmatpush2.bf16.msra.mxu0 0
  %1213 = vmatprep.subr.bf16.mxu0 0
  %1214 = vmatpush2.bf16.msra.mxu0 0
  %1215 = vmatprep.subr.bf16.mxu0 0
  %1216 = vmatpush2.bf16.msra.mxu0 0
  %1217 = vmatprep.subr.bf16.mxu0 0
  %1218 = vmatpush2.bf16.msra.mxu0 0
  %1219 = vmatprep.subr.bf16.mxu0 0
  %1220 = vmatpush2.bf16.msra.mxu0 0
  %1221 = vmatprep.mubr.bf16.mxu0 0
  %1222 = vmatmul.mubr.bf16.gmra.mxu0 %v1107
  %v1223 = vpop.f32.mrf.mxu0
  %v1224 = vadd.f32 %v1184, %v1223
  %v1225 = vpop.f32.mrf.mxu0
  %v1226 = vpop.f32.mrf.mxu0
  %v1227 = vpop.f32.mrf.mxu0
  %1228 = vdwg.mxu0
  %v1229 = vmul.f32 %v1224, 0.2
  %v1230 = vmax.f32 %v1224, %v1229
  %v1231 = vadd.f32 %v1230, %v470
  %v1232 = vpack.c.bf16 %v1231, %v1231
  %s1233 = scalar_lea.vmem %s4, 192
  %v1234 = vld [vmem:[%s1233] sm:$0xf]
  %v1235 = vld [vmem:[%s1233 + $0x4] sm:$0xf]
  %v1236 = vld [vmem:[%s1233 + $0x8] sm:$0xf]
  %v1237 = vld [vmem:[%s1233 + $0xc] sm:$0xf]
  %v1238 = vld [vmem:[%s1233 + $0x10] sm:$0xf]
  %v1239 = vld [vmem:[%s1233 + $0x14] sm:$0xf]
  %v1240 = vld [vmem:[%s1233 + $0x18] sm:$0xf]
  %v1241 = vld [vmem:[%s1233 + $0x1c] sm:$0xf]
  %v1242 = vld [vmem:[%s1233 + $0x20] sm:$0xf]
  %v1243 = vld [vmem:[%s1233 + $0x24] sm:$0xf]
  %v1244 = vld [vmem:[%s1233 + $0x28] sm:$0xf]
  %v1245 = vld [vmem:[%s1233 + $0x2c] sm:$0xf]
  %v1246 = vld [vmem:[%s1233 + $0x30] sm:$0xf]
  %v1247 = vld [vmem:[%s1233 + $0x34] sm:$0xf]
  %v1248 = vld [vmem:[%s1233 + $0x38] sm:$0xf]
  %v1249 = vld [vmem:[%s1233 + $0x3c] sm:$0xf]
  %v1266 = vunpack.c.l.b16 %v1234
  %v1267 = vunpack.c.l.b16 %v1235
  %v1268 = vunpack.c.l.b16 %v1236
  %v1269 = vunpack.c.l.b16 %v1237
  %v1270 = vunpack.c.l.b16 %v1238
  %v1271 = vunpack.c.l.b16 %v1239
  %v1272 = vunpack.c.l.b16 %v1240
  %v1273 = vunpack.c.l.b16 %v1241
  %v1274 = vunpack.c.l.b16 %v1242
  %v1275 = vunpack.c.l.b16 %v1243
  %v1276 = vunpack.c.l.b16 %v1244
  %v1277 = vunpack.c.l.b16 %v1245
  %v1278 = vunpack.c.l.b16 %v1246
  %v1279 = vunpack.c.l.b16 %v1247
  %v1280 = vunpack.c.l.b16 %v1248
  %v1281 = vunpack.c.l.b16 %v1249
  %v1282 = vpack.c.b16 %v1267, %v1266
  %v1283 = vpack.c.b16 %v1269, %v1268
  %v1284 = vpack.c.b16 %v1271, %v1270
  %v1285 = vpack.c.b16 %v1273, %v1272
  %v1286 = vpack.c.b16 %v1275, %v1274
  %v1287 = vpack.c.b16 %v1277, %v1276
  %v1288 = vpack.c.b16 %v1279, %v1278
  %v1289 = vpack.c.b16 %v1281, %v1280
  %1298 = vmatprep.subr.bf16.mxu0 0
  %1299 = vmatpush1.bf16.msra.mxu0 %v1289
  %1300 = vmatprep.subr.bf16.mxu0 0
  %1301 = vmatpush1.bf16.msra.mxu0 %v1288
  %1302 = vmatprep.subr.bf16.mxu0 0
  %1303 = vmatpush1.bf16.msra.mxu0 %v1287
  %1304 = vmatprep.subr.bf16.mxu0 0
  %1305 = vmatpush1.bf16.msra.mxu0 %v1286
  %1306 = vmatprep.subr.bf16.mxu0 0
  %1307 = vmatpush1.bf16.msra.mxu0 %v1285
  %1308 = vmatprep.subr.bf16.mxu0 0
  %1309 = vmatpush1.bf16.msra.mxu0 %v1284
  %1310 = vmatprep.subr.bf16.mxu0 0
  %1311 = vmatpush1.bf16.msra.mxu0 %v1283
  %1312 = vmatprep.subr.bf16.mxu0 0
  %1313 = vmatpush1.bf16.msra.mxu0 %v1282
  %1314 = vmatprep.subr.bf16.mxu0 0
  %1315 = vmatpush2.bf16.msra.mxu0 0
  %1316 = vmatprep.subr.bf16.mxu0 0
  %1317 = vmatpush2.bf16.msra.mxu0 0
  %1318 = vmatprep.subr.bf16.mxu0 0
  %1319 = vmatpush2.bf16.msra.mxu0 0
  %1320 = vmatprep.subr.bf16.mxu0 0
  %1321 = vmatpush2.bf16.msra.mxu0 0
  %1322 = vmatprep.subr.bf16.mxu0 0
  %1323 = vmatpush2.bf16.msra.mxu0 0
  %1324 = vmatprep.subr.bf16.mxu0 0
  %1325 = vmatpush2.bf16.msra.mxu0 0
  %1326 = vmatprep.subr.bf16.mxu0 0
  %1327 = vmatpush2.bf16.msra.mxu0 0
  %1328 = vmatprep.subr.bf16.mxu0 0
  %1329 = vmatpush2.bf16.msra.mxu0 0
  %1330 = vmatprep.mubr.bf16.mxu0 0
  %1331 = vmatmul.mubr.bf16.gmra.mxu0 %v1232
  %v1332 = vpop.f32.mrf.mxu0
  %v1333 = vadd.f32 0.0, %v1332
  %v1334 = vpop.f32.mrf.mxu0
  %v1335 = vpop.f32.mrf.mxu0
  %v1336 = vpop.f32.mrf.mxu0
  %1337 = vdwg.mxu0
  %v1338 = vadd.f32 %v1084, %v1333
  %v1339 = vld [vmem:[%s5] sm:$0x1]
  %v1341 = vlaneseq
  %v1342 = vshrl.u32 %v1341, 7
  %v1343 = vsub.s32 0, %v1342
  %v1344 = vrot.slane %v1339, %v1343
  %v1346 = vadd.f32 %v1338, %v1344
  %v1347 = vlaneseq
  %v1348 = vand.u32 %v1347, 127
  %v1349 = vmul.f32 %v1346, 0.5
  %v1350 = vtanh.pop %v1349
  %v1351 = vadd.f32 %v1350, 1.0
  %v1352 = vmul.f32 %v1351, 0.5
  %vm1353 = vcmp.ge.s32.totalorder %v1348, 1
  %vm1354 = vcmp.le.s32.totalorder %v1348, 11
  %vm1355 = vmand %vm1353, %vm1354
  %v1356 = vsel %vm1355, %v1346, -1e+30
  %1357 = vmax.xlane.f32.xlu0 %v1356
  %v1358 = vpop.xlane.xlu0 %1357
  %v1359 = vsub.f32 %v1356, %v1358
  %v1360 = vmul.f32 %v1359, 1.442695
  %v1361 = vpow.pop %v1360
  %1362 = vadd.xlane.f32.xlu0 %v1361
  %v1363 = vpop.xlane.xlu0 %1362
  %v1364 = vrcp.pop %v1363
  %v1365 = vmul.f32 %v1361, %v1364
  %vm1366 = vcmp.eq.s32.totalorder %v1348, 0
  %v1367 = vsel %vm1366, %v1352, %v1365
  %1368 = vst [vmem:[%s6] sm:$0xff] %v1367
  // Predicated region
  $region26: #{discriminator_forward.7} parent=0 // pred_check
    _
  $region27: #{discriminator_forward.7} parent=0 // pred_check_branch
    %1370 = sbr.rel (0) target = $region29
  $region28: #{discriminator_forward.7} parent=0 // pred_region
    _
  $region29: #{discriminator_forward.7} parent=0 // pred_fallthru
    _
  // Predicated region
  $region30: #{discriminator_forward.7} parent=0 // pred_check
    _
  $region31: #{discriminator_forward.7} parent=0 // pred_check_branch
    %1372 = sbr.rel (0) target = $region33
  $region32: #{discriminator_forward.7} parent=0 // pred_region
    _
  $region33: #{discriminator_forward.7} parent=0 // pred_fallthru
    _

</llo_original>
